<compile_context>
chip_gen: v7x
topology: tpu7x:2x2x1
jax: 0.10.0
libtpu: 0.0.40
codegen_flags: <defaults>
</compile_context>

<pallas_src>
import functools

import jax
import jax.numpy as jnp
from jax import lax
from jax.experimental import pallas as pl
from jax.experimental.pallas import tpu as pltpu

EPS = 1e-5


# ---------------------------------------------------------------------------
# In-register band conv helpers (no padded scratch, no zero-fill passes).
# ---------------------------------------------------------------------------
def _shift_w(x, sw):
    """result[:, j, :] = x[:, j + sw, :], zeros outside.  x: (Hb, Wp, C)."""
    Hb, Wp, C = x.shape
    if sw == 1:
        return jnp.concatenate([x[:, 1:], jnp.zeros((Hb, 1, C), x.dtype)], axis=1)
    if sw == -1:
        return jnp.concatenate([jnp.zeros((Hb, 1, C), x.dtype), x[:, :-1]], axis=1)
    return x


def _rows_for_kh(top, main, bot, kh):
    """Band rows shifted so rows[i] = input_row(i + kh - 1).
    top/bot: (1, Wp, C) halo rows (already masked), main: (TH, Wp, C)."""
    if kh == 0:
        return jnp.concatenate([top, main[:-1]], axis=0)
    if kh == 1:
        return main
    return jnp.concatenate([main[1:], bot], axis=0)


def _conv3x3_band(top, main, bot, w_ref):
    """3x3 'same' conv of one row band as 3 accumulating im2col MXU matmuls
    (one per kernel row -> 1/3 the peak patch footprint of a 9-tap slab).
    w_ref: (3, 3*C, Cout).  Returns f32 accumulator (TH*Wp, Cout)."""
    TH, Wp, C = main.shape
    acc = None
    for kh in range(3):
        rows = _rows_for_kh(top, main, bot, kh)                     # (TH,Wp,C)
        slab = jnp.concatenate([_shift_w(rows, sw) for sw in (-1, 0, 1)],
                               axis=-1).reshape(TH * Wp, 3 * C)
        part = jnp.dot(slab, w_ref[kh], preferred_element_type=jnp.float32)
        acc = part if acc is None else acc + part
    return acc


# ---------------------------------------------------------------------------
# Pass A: 2x2 maxpool + conv1 (3 accumulating matmuls) + per-tile BN1 stats.
# ---------------------------------------------------------------------------
def _pool_conv1_kernel(x_ref, xt_ref, xb_ref, w_ref, a1_ref, st_ref):
    # x_ref : (TH, 2, Wp, 2, Cin)  current band, H/W pre-split in 2-pairs
    # xt/xb : (2, Wp, 2, Cin)      halo pooled-rows (clamped reads, masked here)
    r = pl.program_id(1)
    last = pl.num_programs(1) - 1

    main = jnp.max(jnp.max(x_ref[...], axis=3), axis=1)             # (TH,Wp,Cin)
    top = jnp.max(jnp.max(xt_ref[...], axis=2), axis=0)[None]       # (1,Wp,Cin)
    bot = jnp.max(jnp.max(xb_ref[...], axis=2), axis=0)[None]
    top = jnp.where(r > 0, top, jnp.zeros_like(top))        # zero pad @ image top
    bot = jnp.where(r < last, bot, jnp.zeros_like(bot))     # zero pad @ image bot

    acc = _conv3x3_band(top, main, bot, w_ref)               # (TH*Wp, Cout) f32
    # NOTE: conv bias omitted -- exactly cancelled by train-mode BN mean.
    a1_ref[...] = acc.reshape(a1_ref.shape).astype(a1_ref.dtype)
    st_ref[0:1, :] = jnp.sum(acc, axis=0, keepdims=True)
    st_ref[1:2, :] = jnp.sum(acc * acc, axis=0, keepdims=True)


# ---------------------------------------------------------------------------
# Pass B: BN1 (precomputed scale/shift) + ReLU + conv2 + per-tile BN2 stats.
# ---------------------------------------------------------------------------
def _bn1_conv2_kernel(a1_ref, a1t_ref, a1b_ref, sc_ref, sh_ref, w_ref,
                      a2_ref, st_ref):
    r = pl.program_id(1)
    last = pl.num_programs(1) - 1
    scale = sc_ref[...]                                       # (1, C) f32
    shift = sh_ref[...]
    cdt = a1_ref.dtype

    def bn_relu(a):                                           # f32 BN + ReLU
        return jnp.maximum(a.astype(jnp.float32) * scale + shift, 0.0)

    main = bn_relu(a1_ref[...]).astype(cdt)                   # (TH, Wp, C)
    top = bn_relu(a1t_ref[...])[None]                         # (1, Wp, C) f32
    bot = bn_relu(a1b_ref[...])[None]
    # conv2 zero-pads y1 at the image border, i.e. AFTER BN + ReLU:
    top = jnp.where(r > 0, top, jnp.zeros_like(top)).astype(cdt)
    bot = jnp.where(r < last, bot, jnp.zeros_like(bot)).astype(cdt)

    acc = _conv3x3_band(top, main, bot, w_ref)                # (TH*Wp, Cout) f32
    a2_ref[...] = acc.reshape(a2_ref.shape).astype(a2_ref.dtype)
    st_ref[0:1, :] = jnp.sum(acc, axis=0, keepdims=True)
    st_ref[1:2, :] = jnp.sum(acc * acc, axis=0, keepdims=True)


# ---------------------------------------------------------------------------
# Pass C: BN2 (precomputed scale/shift) + ReLU.
# ---------------------------------------------------------------------------
def _bn2_relu_kernel(a2_ref, sc_ref, sh_ref, out_ref):
    y = jnp.maximum(a2_ref[...].astype(jnp.float32) * sc_ref[...] + sh_ref[...],
                    0.0)
    out_ref[...] = y.astype(out_ref.dtype)


# ---------------------------------------------------------------------------
# Wrapper
# ---------------------------------------------------------------------------
def _pick_band_rows(hp, target=64):
    """Largest divisor of hp that is <= target (pooled rows per grid step)."""
    best = hp
    for th in range(2, hp + 1):
        if hp % th == 0 and th <= target:
            best = th
    return best


def _bn_affine(stats, gamma, beta, n_rows):
    """Fold per-tile (sum, sumsq) into train-mode BN (1,C) scale/shift rows."""
    s = jnp.sum(stats.astype(jnp.float32), axis=(0, 1))       # (2, C)
    mean = s[0] / n_rows
    var = jnp.maximum(s[1] / n_rows - mean * mean, 0.0)       # biased variance
    # TODO(synk): one-pass E[x^2]-E[x]^2 can cancel when |mean| >> std; use a
    #             shifted / Welford accumulation if this ever feeds training.
    scale = gamma.astype(jnp.float32) * lax.rsqrt(var + EPS)
    shift = beta.astype(jnp.float32) - mean * scale
    return scale.reshape(1, -1), shift.reshape(1, -1)


def _vmem_limit_bytes():
    try:  # ~3/4 of physical VMEM: 96 MiB on v5e/v6e, 48 MiB on v7x
        return int(pltpu.get_tpu_info().vmem_capacity_bytes * 3 // 4)
    except Exception:
        return 48 * 1024 * 1024


def down_forward(x_nchw, params, *, compute_dtype=jnp.bfloat16, band_rows=None):
    """Pallas implementation of Down(in_c, out_c).forward (NCHW in / NCHW out).

    compute_dtype: dtype of the MXU inputs (pooled taps, weights) and of the
      inter-pass a1/a2 intermediates.  bfloat16 recommended on every TPU
      generation (the MXU is native bf16 on v5e/v6e/v7x); accumulation, BN
      statistics and BN/ReLU math are always float32.
    band_rows: pooled rows per grid step (1-row halo handled in-kernel);
      must divide H//2 and be >= 2.  Default: largest divisor <= 64.
    Valid for train-mode BatchNorm only (conv biases are dropped because the
    batch-mean subtraction cancels them exactly).
    """
    w1, b1, g1, be1, w2, b2, g2, be2 = params
    del b1, b2   # exactly cancelled by train-mode BatchNorm mean subtraction
    N, Cin, H, W = x_nchw.shape
    assert H % 2 == 0 and W % 2 == 0
    Hp, Wp = H // 2, W // 2
    Cout = w1.shape[0]
    assert Hp >= 2
    TH = _pick_band_rows(Hp) if band_rows is None else band_rows
    assert TH >= 2 and Hp % TH == 0
    nb = Hp // TH
    R = N * Hp * Wp                      # rows entering each BatchNorm

    # XLA glue: NCHW -> NHWC with H/W pre-split in 2-pairs (so the 2x2 pool is
    # two axis-max reductions) and OIHW weights -> (kh, 3*Cin, Cout) im2col
    # layout.  Taps / weights / intermediates stay in compute_dtype.
    # TODO(synk): keep the surrounding model NHWC to drop these transposes.
    x = (jnp.transpose(x_nchw, (0, 2, 3, 1))
         .reshape(N, Hp, 2, Wp, 2, Cin).astype(compute_dtype))
    w1f = (jnp.transpose(w1, (2, 3, 1, 0))
           .reshape(3, 3 * Cin, Cout).astype(compute_dtype))
    w2f = (jnp.transpose(w2, (2, 3, 1, 0))
           .reshape(3, 3 * Cout, Cout).astype(compute_dtype))

    cparams = pltpu.CompilerParams(
        dimension_semantics=("parallel", "parallel"),
        vmem_limit_bytes=_vmem_limit_bytes())

    # ---- pass A: maxpool + conv1, per-band BN1 partial stats ----
    a1, stats1 = pl.pallas_call(
        _pool_conv1_kernel,
        grid=(N, nb),
        in_specs=[
            pl.BlockSpec((None, TH, 2, Wp, 2, Cin),
                         lambda n, r: (n, r, 0, 0, 0, 0)),
            pl.BlockSpec((None, None, 2, Wp, 2, Cin),
                         lambda n, r: (n, jnp.maximum(r * TH - 1, 0),
                                       0, 0, 0, 0)),
            pl.BlockSpec((None, None, 2, Wp, 2, Cin),
                         lambda n, r: (n, jnp.minimum((r + 1) * TH, Hp - 1),
                                       0, 0, 0, 0)),
            pl.BlockSpec((3, 3 * Cin, Cout), lambda n, r: (0, 0, 0)),
        ],
        out_specs=(
            pl.BlockSpec((None, TH, Wp, Cout), lambda n, r: (n, r, 0, 0)),
            pl.BlockSpec((None, None, 2, Cout), lambda n, r: (n, r, 0, 0)),
        ),
        out_shape=(
            jax.ShapeDtypeStruct((N, Hp, Wp, Cout), compute_dtype),
            jax.ShapeDtypeStruct((N, nb, 2, Cout), jnp.float32),
        ),
        compiler_params=cparams,
    )(x, x, x, w1f)

    # Global BN1 scale/shift: tiny XLA reduction, hoisted out of the kernels.
    sc1, sh1 = _bn_affine(stats1, g1, be1, R)

    # ---- pass B: BN1 + ReLU + conv2, per-band BN2 partial stats ----
    a2, stats2 = pl.pallas_call(
        _bn1_conv2_kernel,
        grid=(N, nb),
        in_specs=[
            pl.BlockSpec((None, TH, Wp, Cout), lambda n, r: (n, r, 0, 0)),
            pl.BlockSpec((None, None, Wp, Cout),
                         lambda n, r: (n, jnp.maximum(r * TH - 1, 0), 0, 0)),
            pl.BlockSpec((None, None, Wp, Cout),
                         lambda n, r: (n, jnp.minimum((r + 1) * TH, Hp - 1),
                                       0, 0)),
            pl.BlockSpec((1, Cout), lambda n, r: (0, 0)),
            pl.BlockSpec((1, Cout), lambda n, r: (0, 0)),
            pl.BlockSpec((3, 3 * Cout, Cout), lambda n, r: (0, 0, 0)),
        ],
        out_specs=(
            pl.BlockSpec((None, TH, Wp, Cout), lambda n, r: (n, r, 0, 0)),
            pl.BlockSpec((None, None, 2, Cout), lambda n, r: (n, r, 0, 0)),
        ),
        out_shape=(
            jax.ShapeDtypeStruct((N, Hp, Wp, Cout), compute_dtype),
            jax.ShapeDtypeStruct((N, nb, 2, Cout), jnp.float32),
        ),
        compiler_params=cparams,
    )(a1, a1, a1, sc1, sh1, w2f)

    sc2, sh2 = _bn_affine(stats2, g2, be2, R)

    # ---- pass C: BN2 + ReLU ----
    out4 = pl.pallas_call(
        _bn2_relu_kernel,
        grid=(N, nb),
        in_specs=[
            pl.BlockSpec((None, TH, Wp, Cout), lambda n, r: (n, r, 0, 0)),
            pl.BlockSpec((1, Cout), lambda n, r: (0, 0)),
            pl.BlockSpec((1, Cout), lambda n, r: (0, 0)),
        ],
        out_specs=pl.BlockSpec((None, TH, Wp, Cout), lambda n, r: (n, r, 0, 0)),
        out_shape=jax.ShapeDtypeStruct((N, Hp, Wp, Cout), jnp.float32),
        compiler_params=cparams,
    )(a2, sc2, sh2)

    # TODO(synk): BatchNorm running-stat buffer updates (training side effect)
    #             are not modeled.
    return jnp.transpose(out4, (0, 3, 1, 2))


# ---------------------------------------------------------------------------
# Pure-JAX reference (same math as the PyTorch module in train mode).
# ---------------------------------------------------------------------------
def ref_down(x, params):
    w1, b1, g1, be1, w2, b2, g2, be2 = params
    p = lax.reduce_window(x, -jnp.inf, lax.max, (1, 1, 2, 2), (1, 1, 2, 2),
                          'VALID')

    def block(z, w, b, g, be):
        y = lax.conv_general_dilated(
            z, w, (1, 1), ((1, 1), (1, 1)),
            dimension_numbers=('NCHW', 'OIHW', 'NCHW'))
        y = y + b[None, :, None, None]
        m = y.mean(axis=(0, 2, 3), keepdims=True)
        v = y.var(axis=(0, 2, 3), keepdims=True)   # biased, as PyTorch BN fwd
        y = (y - m) / jnp.sqrt(v + EPS) * g[None, :, None, None] \
            + be[None, :, None, None]
        return jnp.maximum(y, 0.0)

    return block(block(p, w1, b1, g1, be1), w2, b2, g2, be2)


if __name__ == "__main__":
    N, Cin, H, W, Cout = 2, 4, 16, 16, 8
    ks = jax.random.split(jax.random.PRNGKey(0), 9)
    x = jax.random.normal(ks[0], (N, Cin, H, W), jnp.float32)
    # deterministic synthetic parameters (shapes from the module's __init__)
    w1 = 0.3 * jax.random.normal(ks[1], (Cout, Cin, 3, 3), jnp.float32)
    b1 = 0.1 * jax.random.normal(ks[2], (Cout,), jnp.float32)
    g1 = 1.0 + 0.1 * jax.random.normal(ks[3], (Cout,), jnp.float32)
    be1 = 0.1 * jax.random.normal(ks[4], (Cout,), jnp.float32)
    w2 = 0.3 * jax.random.normal(ks[5], (Cout, Cout, 3, 3), jnp.float32)
    b2 = 0.1 * jax.random.normal(ks[6], (Cout,), jnp.float32)
    g2 = 1.0 + 0.1 * jax.random.normal(ks[7], (Cout,), jnp.float32)
    be2 = 0.1 * jax.random.normal(ks[8], (Cout,), jnp.float32)
    params = (w1, b1, g1, be1, w2, b2, g2, be2)

    ref = jax.block_until_ready(ref_down(x, params))

    # f32 MXU path, 2 row bands of 4 pooled rows (exercises halos): tight check.
    out_f32 = jax.block_until_ready(
        jax.jit(functools.partial(down_forward, compute_dtype=jnp.float32,
                                  band_rows=4))(x, params))
    assert out_f32.shape == (N, Cout, H // 2, W // 2), out_f32.shape
    err = float(jnp.max(jnp.abs(out_f32 - ref)))
    if not jnp.allclose(out_f32, ref, atol=2e-3, rtol=2e-3):
        raise AssertionError(f"f32 banded path mismatch, max abs err = {err}")

    # f32 path with the default band heuristic (single band at this size).
    out_f32b = jax.block_until_ready(
        jax.jit(functools.partial(down_forward,
                                  compute_dtype=jnp.float32))(x, params))
    err = float(jnp.max(jnp.abs(out_f32b - ref)))
    if not jnp.allclose(out_f32b, ref, atol=2e-3, rtol=2e-3):
        raise AssertionError(f"f32 single-band path mismatch, max abs err = {err}")

    # Default performance path: bf16 taps/weights/intermediates, f32 accum/BN.
    out_bf16 = jax.block_until_ready(
        jax.jit(functools.partial(down_forward, band_rows=4))(x, params))
    err = float(jnp.max(jnp.abs(out_bf16 - ref)))
    if not jnp.allclose(out_bf16, ref, atol=2.5e-1, rtol=2.5e-1):
        raise AssertionError(f"bf16 path deviates too far, max abs err = {err}")

    print("KERNEL_OK")
</pallas_src>

<mosaic_0001>
module attributes {stable_mosaic.version = 11 : i64} {
  func.func @_pool_conv1_kernel(%arg0: i32, %arg1: i32, %arg2: memref<1x4x2x8x2x4xf32, #tpu.memory_space<vmem>>, %arg3: memref<1x1x2x8x2x4xf32, #tpu.memory_space<vmem>>, %arg4: memref<1x1x2x8x2x4xf32, #tpu.memory_space<vmem>>, %arg5: memref<3x12x8xf32, #tpu.memory_space<vmem>>, %arg6: memref<1x4x8x8xf32, #tpu.memory_space<vmem>>, %arg7: memref<1x1x2x8xf32, #tpu.memory_space<vmem>>) attributes {dimension_semantics = [#tpu.dimension_semantics<parallel>, #tpu.dimension_semantics<parallel>], iteration_bounds = array<i64: 2, 2>, scalar_prefetch = 0 : i64, scratch_operands = 0 : i64, tpu.core_type = #tpu.core_type<tc>, window_params = [{transform_indices = @transform_0, window_bounds = array<i64: 1, 4, 2, 8, 2, 4>}, {transform_indices = @transform_1, window_bounds = array<i64: 1, 1, 2, 8, 2, 4>}, {transform_indices = @transform_2, window_bounds = array<i64: 1, 1, 2, 8, 2, 4>}, {pipeline_mode = #tpu.pipeline_mode<synchronous>, transform_indices = @transform_3, window_bounds = array<i64: 3, 12, 8>}, {transform_indices = @transform_4, window_bounds = array<i64: 1, 4, 8, 8>}, {transform_indices = @transform_5, window_bounds = array<i64: 1, 1, 2, 8>}]} {
    %c0 = arith.constant 0 : index
    %c0_0 = arith.constant 0 : index
    %c0_1 = arith.constant 0 : index
    %c0_2 = arith.constant 0 : index
    %c0_3 = arith.constant 0 : index
    %c0_4 = arith.constant 0 : index
    %0 = vector.load %arg2[%c0, %c0_0, %c0_1, %c0_2, %c0_3, %c0_4] : memref<1x4x2x8x2x4xf32, #tpu.memory_space<vmem>>, vector<1x4x2x8x2x4xf32>
    %1 = vector.shape_cast %0 : vector<1x4x2x8x2x4xf32> to vector<4x2x8x2x4xf32>
    %cst = arith.constant dense<0xFF800000> : vector<4x2x8x4xf32>
    %2 = vector.multi_reduction <maximumf>, %1, %cst [3] : vector<4x2x8x2x4xf32> to vector<4x2x8x4xf32>
    %cst_5 = arith.constant dense<0xFF800000> : vector<4x8x4xf32>
    %3 = vector.multi_reduction <maximumf>, %2, %cst_5 [1] : vector<4x2x8x4xf32> to vector<4x8x4xf32>
    %c0_6 = arith.constant 0 : index
    %c0_7 = arith.constant 0 : index
    %c0_8 = arith.constant 0 : index
    %c0_9 = arith.constant 0 : index
    %c0_10 = arith.constant 0 : index
    %c0_11 = arith.constant 0 : index
    %4 = vector.load %arg3[%c0_6, %c0_7, %c0_8, %c0_9, %c0_10, %c0_11] : memref<1x1x2x8x2x4xf32, #tpu.memory_space<vmem>>, vector<1x1x2x8x2x4xf32>
    %5 = vector.shape_cast %4 : vector<1x1x2x8x2x4xf32> to vector<2x8x2x4xf32>
    %cst_12 = arith.constant dense<0xFF800000> : vector<2x8x4xf32>
    %6 = vector.multi_reduction <maximumf>, %5, %cst_12 [2] : vector<2x8x2x4xf32> to vector<2x8x4xf32>
    %cst_13 = arith.constant dense<0xFF800000> : vector<8x4xf32>
    %7 = vector.multi_reduction <maximumf>, %6, %cst_13 [0] : vector<2x8x4xf32> to vector<8x4xf32>
    %8 = vector.shape_cast %7 : vector<8x4xf32> to vector<1x8x4xf32>
    %c0_14 = arith.constant 0 : index
    %c0_15 = arith.constant 0 : index
    %c0_16 = arith.constant 0 : index
    %c0_17 = arith.constant 0 : index
    %c0_18 = arith.constant 0 : index
    %c0_19 = arith.constant 0 : index
    %9 = vector.load %arg4[%c0_14, %c0_15, %c0_16, %c0_17, %c0_18, %c0_19] : memref<1x1x2x8x2x4xf32, #tpu.memory_space<vmem>>, vector<1x1x2x8x2x4xf32>
    %10 = vector.shape_cast %9 : vector<1x1x2x8x2x4xf32> to vector<2x8x2x4xf32>
    %cst_20 = arith.constant dense<0xFF800000> : vector<2x8x4xf32>
    %11 = vector.multi_reduction <maximumf>, %10, %cst_20 [2] : vector<2x8x2x4xf32> to vector<2x8x4xf32>
    %cst_21 = arith.constant dense<0xFF800000> : vector<8x4xf32>
    %12 = vector.multi_reduction <maximumf>, %11, %cst_21 [0] : vector<2x8x4xf32> to vector<8x4xf32>
    %13 = vector.shape_cast %12 : vector<8x4xf32> to vector<1x8x4xf32>
    %c0_i32 = arith.constant 0 : i32
    %14 = arith.cmpi sgt, %arg1, %c0_i32 : i32
    %cst_22 = arith.constant 0.000000e+00 : f32
    %15 = vector.broadcast %cst_22 : f32 to vector<1x8x4xf32>
    %16 = arith.select %14, %8, %15 : vector<1x8x4xf32>
    %c1_i32 = arith.constant 1 : i32
    %17 = arith.cmpi slt, %arg1, %c1_i32 : i32
    %cst_23 = arith.constant 0.000000e+00 : f32
    %18 = vector.broadcast %cst_23 : f32 to vector<1x8x4xf32>
    %19 = arith.select %17, %13, %18 : vector<1x8x4xf32>
    %20 = vector.extract_strided_slice %3 {offsets = [0, 0, 0], sizes = [3, 8, 4], strides = [1, 1, 1]} : vector<4x8x4xf32> to vector<3x8x4xf32>
    %21 = tpu.concatenate %16, %20 in 0 : vector<1x8x4xf32>, vector<3x8x4xf32> -> vector<4x8x4xf32>
    %cst_24 = arith.constant 0.000000e+00 : f32
    %22 = vector.broadcast %cst_24 : f32 to vector<4x1x4xf32>
    %23 = vector.extract_strided_slice %21 {offsets = [0, 0, 0], sizes = [4, 7, 4], strides = [1, 1, 1]} : vector<4x8x4xf32> to vector<4x7x4xf32>
    %24 = tpu.concatenate %22, %23 in 1 : vector<4x1x4xf32>, vector<4x7x4xf32> -> vector<4x8x4xf32>
    %25 = vector.extract_strided_slice %21 {offsets = [0, 1, 0], sizes = [4, 7, 4], strides = [1, 1, 1]} : vector<4x8x4xf32> to vector<4x7x4xf32>
    %cst_25 = arith.constant 0.000000e+00 : f32
    %26 = vector.broadcast %cst_25 : f32 to vector<4x1x4xf32>
    %27 = tpu.concatenate %25, %26 in 1 : vector<4x7x4xf32>, vector<4x1x4xf32> -> vector<4x8x4xf32>
    %28 = tpu.concatenate %24, %21, %27 in 2 : vector<4x8x4xf32>, vector<4x8x4xf32>, vector<4x8x4xf32> -> vector<4x8x12xf32>
    %29 = vector.shape_cast %28 : vector<4x8x12xf32> to vector<32x12xf32>
    %c0_26 = arith.constant 0 : index
    %c0_27 = arith.constant 0 : index
    %c0_28 = arith.constant 0 : index
    %30 = vector.load %arg5[%c0_26, %c0_27, %c0_28] : memref<3x12x8xf32, #tpu.memory_space<vmem>>, vector<1x12x8xf32>
    %31 = vector.shape_cast %30 : vector<1x12x8xf32> to vector<12x8xf32>
    %cst_29 = arith.constant dense<0.000000e+00> : vector<32x8xf32>
    %32 = tpu.matmul %29, %31, %cst_29 {dimension_numbers = #tpu.dot_dimension_numbers<[1], [0], [0], [1], [0, 0, 1, 1], [], []>} : vector<32x12xf32>, vector<12x8xf32>, vector<32x8xf32> -> vector<32x8xf32>
    %cst_30 = arith.constant 0.000000e+00 : f32
    %33 = vector.broadcast %cst_30 : f32 to vector<4x1x4xf32>
    %34 = vector.extract_strided_slice %3 {offsets = [0, 0, 0], sizes = [4, 7, 4], strides = [1, 1, 1]} : vector<4x8x4xf32> to vector<4x7x4xf32>
    %35 = tpu.concatenate %33, %34 in 1 : vector<4x1x4xf32>, vector<4x7x4xf32> -> vector<4x8x4xf32>
    %36 = vector.extract_strided_slice %3 {offsets = [0, 1, 0], sizes = [4, 7, 4], strides = [1, 1, 1]} : vector<4x8x4xf32> to vector<4x7x4xf32>
    %cst_31 = arith.constant 0.000000e+00 : f32
    %37 = vector.broadcast %cst_31 : f32 to vector<4x1x4xf32>
    %38 = tpu.concatenate %36, %37 in 1 : vector<4x7x4xf32>, vector<4x1x4xf32> -> vector<4x8x4xf32>
    %39 = tpu.concatenate %35, %3, %38 in 2 : vector<4x8x4xf32>, vector<4x8x4xf32>, vector<4x8x4xf32> -> vector<4x8x12xf32>
    %40 = vector.shape_cast %39 : vector<4x8x12xf32> to vector<32x12xf32>
    %c1 = arith.constant 1 : index
    %c0_32 = arith.constant 0 : index
    %c0_33 = arith.constant 0 : index
    %41 = vector.load %arg5[%c1, %c0_32, %c0_33] : memref<3x12x8xf32, #tpu.memory_space<vmem>>, vector<1x12x8xf32>
    %42 = vector.shape_cast %41 : vector<1x12x8xf32> to vector<12x8xf32>
    %cst_34 = arith.constant dense<0.000000e+00> : vector<32x8xf32>
    %43 = tpu.matmul %40, %42, %cst_34 {dimension_numbers = #tpu.dot_dimension_numbers<[1], [0], [0], [1], [0, 0, 1, 1], [], []>} : vector<32x12xf32>, vector<12x8xf32>, vector<32x8xf32> -> vector<32x8xf32>
    %44 = arith.addf %32, %43 : vector<32x8xf32>
    %45 = vector.extract_strided_slice %3 {offsets = [1, 0, 0], sizes = [3, 8, 4], strides = [1, 1, 1]} : vector<4x8x4xf32> to vector<3x8x4xf32>
    %46 = tpu.concatenate %45, %19 in 0 : vector<3x8x4xf32>, vector<1x8x4xf32> -> vector<4x8x4xf32>
    %cst_35 = arith.constant 0.000000e+00 : f32
    %47 = vector.broadcast %cst_35 : f32 to vector<4x1x4xf32>
    %48 = vector.extract_strided_slice %46 {offsets = [0, 0, 0], sizes = [4, 7, 4], strides = [1, 1, 1]} : vector<4x8x4xf32> to vector<4x7x4xf32>
    %49 = tpu.concatenate %47, %48 in 1 : vector<4x1x4xf32>, vector<4x7x4xf32> -> vector<4x8x4xf32>
    %50 = vector.extract_strided_slice %46 {offsets = [0, 1, 0], sizes = [4, 7, 4], strides = [1, 1, 1]} : vector<4x8x4xf32> to vector<4x7x4xf32>
    %cst_36 = arith.constant 0.000000e+00 : f32
    %51 = vector.broadcast %cst_36 : f32 to vector<4x1x4xf32>
    %52 = tpu.concatenate %50, %51 in 1 : vector<4x7x4xf32>, vector<4x1x4xf32> -> vector<4x8x4xf32>
    %53 = tpu.concatenate %49, %46, %52 in 2 : vector<4x8x4xf32>, vector<4x8x4xf32>, vector<4x8x4xf32> -> vector<4x8x12xf32>
    %54 = vector.shape_cast %53 : vector<4x8x12xf32> to vector<32x12xf32>
    %c2 = arith.constant 2 : index
    %c0_37 = arith.constant 0 : index
    %c0_38 = arith.constant 0 : index
    %55 = vector.load %arg5[%c2, %c0_37, %c0_38] : memref<3x12x8xf32, #tpu.memory_space<vmem>>, vector<1x12x8xf32>
    %56 = vector.shape_cast %55 : vector<1x12x8xf32> to vector<12x8xf32>
    %cst_39 = arith.constant dense<0.000000e+00> : vector<32x8xf32>
    %57 = tpu.matmul %54, %56, %cst_39 {dimension_numbers = #tpu.dot_dimension_numbers<[1], [0], [0], [1], [0, 0, 1, 1], [], []>} : vector<32x12xf32>, vector<12x8xf32>, vector<32x8xf32> -> vector<32x8xf32>
    %58 = arith.addf %44, %57 : vector<32x8xf32>
    %59 = vector.shape_cast %58 : vector<32x8xf32> to vector<4x8x8xf32>
    %c0_40 = arith.constant 0 : index
    %c0_41 = arith.constant 0 : index
    %c0_42 = arith.constant 0 : index
    %c0_43 = arith.constant 0 : index
    %60 = vector.load %arg6[%c0_40, %c0_41, %c0_42, %c0_43] : memref<1x4x8x8xf32, #tpu.memory_space<vmem>>, vector<1x4x8x8xf32>
    %61 = vector.shape_cast %60 : vector<1x4x8x8xf32> to vector<4x8x8xf32>
    %62 = vector.shape_cast %59 : vector<4x8x8xf32> to vector<1x4x8x8xf32>
    tpu.vector_store %arg6[%c0_40, %c0_41, %c0_42, %c0_43], %62 {strides = array<i32>} : memref<1x4x8x8xf32, #tpu.memory_space<vmem>>, vector<1x4x8x8xf32>,
    %cst_44 = arith.constant dense<0.000000e+00> : vector<8xf32>
    %63 = vector.multi_reduction <add>, %58, %cst_44 [0] : vector<32x8xf32> to vector<8xf32>
    %64 = vector.shape_cast %63 : vector<8xf32> to vector<1x8xf32>
    %c0_45 = arith.constant 0 : index
    %c0_46 = arith.constant 0 : index
    %c0_47 = arith.constant 0 : index
    %c0_48 = arith.constant 0 : index
    %65 = vector.load %arg7[%c0_45, %c0_46, %c0_47, %c0_48] : memref<1x1x2x8xf32, #tpu.memory_space<vmem>>, vector<1x1x1x8xf32>
    %66 = vector.shape_cast %65 : vector<1x1x1x8xf32> to vector<1x8xf32>
    %67 = vector.shape_cast %64 : vector<1x8xf32> to vector<1x1x1x8xf32>
    tpu.vector_store %arg7[%c0_45, %c0_46, %c0_47, %c0_48], %67 {strides = array<i32>} : memref<1x1x2x8xf32, #tpu.memory_space<vmem>>, vector<1x1x1x8xf32>,
    %68 = arith.mulf %58, %58 : vector<32x8xf32>
    %cst_49 = arith.constant dense<0.000000e+00> : vector<8xf32>
    %69 = vector.multi_reduction <add>, %68, %cst_49 [0] : vector<32x8xf32> to vector<8xf32>
    %70 = vector.shape_cast %69 : vector<8xf32> to vector<1x8xf32>
    %c0_50 = arith.constant 0 : index
    %c0_51 = arith.constant 0 : index
    %c1_52 = arith.constant 1 : index
    %c0_53 = arith.constant 0 : index
    %71 = vector.load %arg7[%c0_50, %c0_51, %c1_52, %c0_53] : memref<1x1x2x8xf32, #tpu.memory_space<vmem>>, vector<1x1x1x8xf32>
    %72 = vector.shape_cast %71 : vector<1x1x1x8xf32> to vector<1x8xf32>
    %73 = vector.shape_cast %70 : vector<1x8xf32> to vector<1x1x1x8xf32>
    tpu.vector_store %arg7[%c0_50, %c0_51, %c1_52, %c0_53], %73 {strides = array<i32>} : memref<1x1x2x8xf32, #tpu.memory_space<vmem>>, vector<1x1x1x8xf32>,
    return
  }
  func.func @transform_0(%arg0: i32, %arg1: i32) -> (i32, i32, i32, i32, i32, i32) {
    %c0_i32 = arith.constant 0 : i32
    %c0_i32_0 = arith.constant 0 : i32
    %c0_i32_1 = arith.constant 0 : i32
    %c0_i32_2 = arith.constant 0 : i32
    %c0_i32_3 = arith.constant 0 : i32
    return %arg0, %arg1, %c0_i32, %c0_i32_0, %c0_i32_1, %c0_i32_2 : i32, i32, i32, i32, i32, i32
  }
  func.func @transform_1(%arg0: i32, %arg1: i32) -> (i32, i32, i32, i32, i32, i32) {
    %c4_i32 = arith.constant 4 : i32
    %0 = arith.muli %arg1, %c4_i32 : i32
    %c1_i32 = arith.constant 1 : i32
    %1 = arith.subi %0, %c1_i32 : i32
    %c0_i32 = arith.constant 0 : i32
    %2 = arith.maxsi %1, %c0_i32 : i32
    %c0_i32_0 = arith.constant 0 : i32
    %c0_i32_1 = arith.constant 0 : i32
    %c0_i32_2 = arith.constant 0 : i32
    %c0_i32_3 = arith.constant 0 : i32
    %c0_i32_4 = arith.constant 0 : i32
    return %arg0, %2, %c0_i32_0, %c0_i32_1, %c0_i32_2, %c0_i32_3 : i32, i32, i32, i32, i32, i32
  }
  func.func @transform_2(%arg0: i32, %arg1: i32) -> (i32, i32, i32, i32, i32, i32) {
    %c1_i32 = arith.constant 1 : i32
    %0 = arith.addi %arg1, %c1_i32 : i32
    %c4_i32 = arith.constant 4 : i32
    %1 = arith.muli %0, %c4_i32 : i32
    %c7_i32 = arith.constant 7 : i32
    %2 = arith.minsi %1, %c7_i32 : i32
    %c0_i32 = arith.constant 0 : i32
    %c0_i32_0 = arith.constant 0 : i32
    %c0_i32_1 = arith.constant 0 : i32
    %c0_i32_2 = arith.constant 0 : i32
    %c0_i32_3 = arith.constant 0 : i32
    return %arg0, %2, %c0_i32, %c0_i32_0, %c0_i32_1, %c0_i32_2 : i32, i32, i32, i32, i32, i32
  }
  func.func @transform_3(%arg0: i32, %arg1: i32) -> (i32, i32, i32) {
    %c0_i32 = arith.constant 0 : i32
    %c0_i32_0 = arith.constant 0 : i32
    %c0_i32_1 = arith.constant 0 : i32
    %c0_i32_2 = arith.constant 0 : i32
    return %c0_i32, %c0_i32_0, %c0_i32_1 : i32, i32, i32
  }
  func.func @transform_4(%arg0: i32, %arg1: i32) -> (i32, i32, i32, i32) {
    %c0_i32 = arith.constant 0 : i32
    %c0_i32_0 = arith.constant 0 : i32
    %c0_i32_1 = arith.constant 0 : i32
    return %arg0, %arg1, %c0_i32, %c0_i32_0 : i32, i32, i32, i32
  }
  func.func @transform_5(%arg0: i32, %arg1: i32) -> (i32, i32, i32, i32) {
    %c0_i32 = arith.constant 0 : i32
    %c0_i32_0 = arith.constant 0 : i32
    %c0_i32_1 = arith.constant 0 : i32
    return %arg0, %arg1, %c0_i32, %c0_i32_0 : i32, i32, i32, i32
  }
}

module attributes {stable_mosaic.version = 11 : i64} {
  func.func @_bn2_relu_kernel(%arg0: i32, %arg1: i32, %arg2: memref<1x4x8x8xf32, #tpu.memory_space<vmem>>, %arg3: memref<1x8xf32, #tpu.memory_space<vmem>>, %arg4: memref<1x8xf32, #tpu.memory_space<vmem>>, %arg5: memref<1x4x8x8xf32, #tpu.memory_space<vmem>>) attributes {dimension_semantics = [#tpu.dimension_semantics<parallel>, #tpu.dimension_semantics<parallel>], iteration_bounds = array<i64: 2, 2>, scalar_prefetch = 0 : i64, scratch_operands = 0 : i64, tpu.core_type = #tpu.core_type<tc>, window_params = [{transform_indices = @transform_0, window_bounds = array<i64: 1, 4, 8, 8>}, {pipeline_mode = #tpu.pipeline_mode<synchronous>, transform_indices = @transform_1, window_bounds = array<i64: 1, 8>}, {pipeline_mode = #tpu.pipeline_mode<synchronous>, transform_indices = @transform_2, window_bounds = array<i64: 1, 8>}, {transform_indices = @transform_3, window_bounds = array<i64: 1, 4, 8, 8>}]} {
    %c0 = arith.constant 0 : index
    %c0_0 = arith.constant 0 : index
    %c0_1 = arith.constant 0 : index
    %c0_2 = arith.constant 0 : index
    %0 = vector.load %arg2[%c0, %c0_0, %c0_1, %c0_2] : memref<1x4x8x8xf32, #tpu.memory_space<vmem>>, vector<1x4x8x8xf32>
    %1 = vector.shape_cast %0 : vector<1x4x8x8xf32> to vector<4x8x8xf32>
    %c0_3 = arith.constant 0 : index
    %c0_4 = arith.constant 0 : index
    %2 = vector.load %arg3[%c0_3, %c0_4] : memref<1x8xf32, #tpu.memory_space<vmem>>, vector<1x8xf32>
    %3 = vector.shape_cast %2 : vector<1x8xf32> to vector<1x1x8xf32>
    %4 = vector.broadcast %3 : vector<1x1x8xf32> to vector<4x8x8xf32>
    %5 = arith.mulf %1, %4 : vector<4x8x8xf32>
    %c0_5 = arith.constant 0 : index
    %c0_6 = arith.constant 0 : index
    %6 = vector.load %arg4[%c0_5, %c0_6] : memref<1x8xf32, #tpu.memory_space<vmem>>, vector<1x8xf32>
    %7 = vector.shape_cast %6 : vector<1x8xf32> to vector<1x1x8xf32>
    %8 = vector.broadcast %7 : vector<1x1x8xf32> to vector<4x8x8xf32>
    %9 = arith.addf %5, %8 : vector<4x8x8xf32>
    %cst = arith.constant 0.000000e+00 : f32
    %10 = vector.broadcast %cst : f32 to vector<4x8x8xf32>
    %11 = arith.maximumf %9, %10 : vector<4x8x8xf32>
    %c0_7 = arith.constant 0 : index
    %c0_8 = arith.constant 0 : index
    %c0_9 = arith.constant 0 : index
    %c0_10 = arith.constant 0 : index
    %12 = vector.load %arg5[%c0_7, %c0_8, %c0_9, %c0_10] : memref<1x4x8x8xf32, #tpu.memory_space<vmem>>, vector<1x4x8x8xf32>
    %13 = vector.shape_cast %12 : vector<1x4x8x8xf32> to vector<4x8x8xf32>
    %14 = vector.shape_cast %11 : vector<4x8x8xf32> to vector<1x4x8x8xf32>
    tpu.vector_store %arg5[%c0_7, %c0_8, %c0_9, %c0_10], %14 {strides = array<i32>} : memref<1x4x8x8xf32, #tpu.memory_space<vmem>>, vector<1x4x8x8xf32>,
    return
  }
  func.func @transform_0(%arg0: i32, %arg1: i32) -> (i32, i32, i32, i32) {
    %c0_i32 = arith.constant 0 : i32
    %c0_i32_0 = arith.constant 0 : i32
    %c0_i32_1 = arith.constant 0 : i32
    return %arg0, %arg1, %c0_i32, %c0_i32_0 : i32, i32, i32, i32
  }
  func.func @transform_1(%arg0: i32, %arg1: i32) -> (i32, i32) {
    %c0_i32 = arith.constant 0 : i32
    %c0_i32_0 = arith.constant 0 : i32
    %c0_i32_1 = arith.constant 0 : i32
    return %c0_i32, %c0_i32_0 : i32, i32
  }
  func.func @transform_2(%arg0: i32, %arg1: i32) -> (i32, i32) {
    %c0_i32 = arith.constant 0 : i32
    %c0_i32_0 = arith.constant 0 : i32
    %c0_i32_1 = arith.constant 0 : i32
    return %c0_i32, %c0_i32_0 : i32, i32
  }
  func.func @transform_3(%arg0: i32, %arg1: i32) -> (i32, i32, i32, i32) {
    %c0_i32 = arith.constant 0 : i32
    %c0_i32_0 = arith.constant 0 : i32
    %c0_i32_1 = arith.constant 0 : i32
    return %arg0, %arg1, %c0_i32, %c0_i32_0 : i32, i32, i32, i32
  }
}

module attributes {stable_mosaic.version = 11 : i64} {
  func.func @_bn1_conv2_kernel(%arg0: i32, %arg1: i32, %arg2: memref<1x4x8x8xf32, #tpu.memory_space<vmem>>, %arg3: memref<1x1x8x8xf32, #tpu.memory_space<vmem>>, %arg4: memref<1x1x8x8xf32, #tpu.memory_space<vmem>>, %arg5: memref<1x8xf32, #tpu.memory_space<vmem>>, %arg6: memref<1x8xf32, #tpu.memory_space<vmem>>, %arg7: memref<3x24x8xf32, #tpu.memory_space<vmem>>, %arg8: memref<1x4x8x8xf32, #tpu.memory_space<vmem>>, %arg9: memref<1x1x2x8xf32, #tpu.memory_space<vmem>>) attributes {dimension_semantics = [#tpu.dimension_semantics<parallel>, #tpu.dimension_semantics<parallel>], iteration_bounds = array<i64: 2, 2>, scalar_prefetch = 0 : i64, scratch_operands = 0 : i64, tpu.core_type = #tpu.core_type<tc>, window_params = [{transform_indices = @transform_0, window_bounds = array<i64: 1, 4, 8, 8>}, {transform_indices = @transform_1, window_bounds = array<i64: 1, 1, 8, 8>}, {transform_indices = @transform_2, window_bounds = array<i64: 1, 1, 8, 8>}, {pipeline_mode = #tpu.pipeline_mode<synchronous>, transform_indices = @transform_3, window_bounds = array<i64: 1, 8>}, {pipeline_mode = #tpu.pipeline_mode<synchronous>, transform_indices = @transform_4, window_bounds = array<i64: 1, 8>}, {pipeline_mode = #tpu.pipeline_mode<synchronous>, transform_indices = @transform_5, window_bounds = array<i64: 3, 24, 8>}, {transform_indices = @transform_6, window_bounds = array<i64: 1, 4, 8, 8>}, {transform_indices = @transform_7, window_bounds = array<i64: 1, 1, 2, 8>}]} {
    %c0 = arith.constant 0 : index
    %c0_0 = arith.constant 0 : index
    %0 = vector.load %arg5[%c0, %c0_0] : memref<1x8xf32, #tpu.memory_space<vmem>>, vector<1x8xf32>
    %c0_1 = arith.constant 0 : index
    %c0_2 = arith.constant 0 : index
    %1 = vector.load %arg6[%c0_1, %c0_2] : memref<1x8xf32, #tpu.memory_space<vmem>>, vector<1x8xf32>
    %c0_3 = arith.constant 0 : index
    %c0_4 = arith.constant 0 : index
    %c0_5 = arith.constant 0 : index
    %c0_6 = arith.constant 0 : index
    %2 = vector.load %arg2[%c0_3, %c0_4, %c0_5, %c0_6] : memref<1x4x8x8xf32, #tpu.memory_space<vmem>>, vector<1x4x8x8xf32>
    %3 = vector.shape_cast %2 : vector<1x4x8x8xf32> to vector<4x8x8xf32>
    %4 = vector.shape_cast %0 : vector<1x8xf32> to vector<1x1x8xf32>
    %5 = vector.broadcast %4 : vector<1x1x8xf32> to vector<4x8x8xf32>
    %6 = arith.mulf %3, %5 : vector<4x8x8xf32>
    %7 = vector.shape_cast %1 : vector<1x8xf32> to vector<1x1x8xf32>
    %8 = vector.broadcast %7 : vector<1x1x8xf32> to vector<4x8x8xf32>
    %9 = arith.addf %6, %8 : vector<4x8x8xf32>
    %cst = arith.constant 0.000000e+00 : f32
    %10 = vector.broadcast %cst : f32 to vector<4x8x8xf32>
    %11 = arith.maximumf %9, %10 : vector<4x8x8xf32>
    %c0_7 = arith.constant 0 : index
    %c0_8 = arith.constant 0 : index
    %c0_9 = arith.constant 0 : index
    %c0_10 = arith.constant 0 : index
    %12 = vector.load %arg3[%c0_7, %c0_8, %c0_9, %c0_10] : memref<1x1x8x8xf32, #tpu.memory_space<vmem>>, vector<1x1x8x8xf32>
    %13 = vector.shape_cast %12 : vector<1x1x8x8xf32> to vector<8x8xf32>
    %14 = vector.broadcast %0 : vector<1x8xf32> to vector<8x8xf32>
    %15 = arith.mulf %13, %14 : vector<8x8xf32>
    %16 = vector.broadcast %1 : vector<1x8xf32> to vector<8x8xf32>
    %17 = arith.addf %15, %16 : vector<8x8xf32>
    %cst_11 = arith.constant 0.000000e+00 : f32
    %18 = vector.broadcast %cst_11 : f32 to vector<8x8xf32>
    %19 = arith.maximumf %17, %18 : vector<8x8xf32>
    %20 = vector.shape_cast %19 : vector<8x8xf32> to vector<1x8x8xf32>
    %c0_12 = arith.constant 0 : index
    %c0_13 = arith.constant 0 : index
    %c0_14 = arith.constant 0 : index
    %c0_15 = arith.constant 0 : index
    %21 = vector.load %arg4[%c0_12, %c0_13, %c0_14, %c0_15] : memref<1x1x8x8xf32, #tpu.memory_space<vmem>>, vector<1x1x8x8xf32>
    %22 = vector.shape_cast %21 : vector<1x1x8x8xf32> to vector<8x8xf32>
    %23 = vector.broadcast %0 : vector<1x8xf32> to vector<8x8xf32>
    %24 = arith.mulf %22, %23 : vector<8x8xf32>
    %25 = vector.broadcast %1 : vector<1x8xf32> to vector<8x8xf32>
    %26 = arith.addf %24, %25 : vector<8x8xf32>
    %cst_16 = arith.constant 0.000000e+00 : f32
    %27 = vector.broadcast %cst_16 : f32 to vector<8x8xf32>
    %28 = arith.maximumf %26, %27 : vector<8x8xf32>
    %29 = vector.shape_cast %28 : vector<8x8xf32> to vector<1x8x8xf32>
    %c0_i32 = arith.constant 0 : i32
    %30 = arith.cmpi sgt, %arg1, %c0_i32 : i32
    %cst_17 = arith.constant 0.000000e+00 : f32
    %31 = vector.broadcast %cst_17 : f32 to vector<1x8x8xf32>
    %32 = arith.select %30, %20, %31 : vector<1x8x8xf32>
    %c1_i32 = arith.constant 1 : i32
    %33 = arith.cmpi slt, %arg1, %c1_i32 : i32
    %cst_18 = arith.constant 0.000000e+00 : f32
    %34 = vector.broadcast %cst_18 : f32 to vector<1x8x8xf32>
    %35 = arith.select %33, %29, %34 : vector<1x8x8xf32>
    %36 = vector.extract_strided_slice %11 {offsets = [0, 0, 0], sizes = [3, 8, 8], strides = [1, 1, 1]} : vector<4x8x8xf32> to vector<3x8x8xf32>
    %37 = tpu.concatenate %32, %36 in 0 : vector<1x8x8xf32>, vector<3x8x8xf32> -> vector<4x8x8xf32>
    %cst_19 = arith.constant 0.000000e+00 : f32
    %38 = vector.broadcast %cst_19 : f32 to vector<4x1x8xf32>
    %39 = vector.extract_strided_slice %37 {offsets = [0, 0, 0], sizes = [4, 7, 8], strides = [1, 1, 1]} : vector<4x8x8xf32> to vector<4x7x8xf32>
    %40 = tpu.concatenate %38, %39 in 1 : vector<4x1x8xf32>, vector<4x7x8xf32> -> vector<4x8x8xf32>
    %41 = vector.extract_strided_slice %37 {offsets = [0, 1, 0], sizes = [4, 7, 8], strides = [1, 1, 1]} : vector<4x8x8xf32> to vector<4x7x8xf32>
    %cst_20 = arith.constant 0.000000e+00 : f32
    %42 = vector.broadcast %cst_20 : f32 to vector<4x1x8xf32>
    %43 = tpu.concatenate %41, %42 in 1 : vector<4x7x8xf32>, vector<4x1x8xf32> -> vector<4x8x8xf32>
    %44 = tpu.concatenate %40, %37, %43 in 2 : vector<4x8x8xf32>, vector<4x8x8xf32>, vector<4x8x8xf32> -> vector<4x8x24xf32>
    %45 = vector.shape_cast %44 : vector<4x8x24xf32> to vector<32x24xf32>
    %c0_21 = arith.constant 0 : index
    %c0_22 = arith.constant 0 : index
    %c0_23 = arith.constant 0 : index
    %46 = vector.load %arg7[%c0_21, %c0_22, %c0_23] : memref<3x24x8xf32, #tpu.memory_space<vmem>>, vector<1x24x8xf32>
    %47 = vector.shape_cast %46 : vector<1x24x8xf32> to vector<24x8xf32>
    %cst_24 = arith.constant dense<0.000000e+00> : vector<32x8xf32>
    %48 = tpu.matmul %45, %47, %cst_24 {dimension_numbers = #tpu.dot_dimension_numbers<[1], [0], [0], [1], [0, 0, 1, 1], [], []>} : vector<32x24xf32>, vector<24x8xf32>, vector<32x8xf32> -> vector<32x8xf32>
    %cst_25 = arith.constant 0.000000e+00 : f32
    %49 = vector.broadcast %cst_25 : f32 to vector<4x1x8xf32>
    %50 = vector.extract_strided_slice %11 {offsets = [0, 0, 0], sizes = [4, 7, 8], strides = [1, 1, 1]} : vector<4x8x8xf32> to vector<4x7x8xf32>
    %51 = tpu.concatenate %49, %50 in 1 : vector<4x1x8xf32>, vector<4x7x8xf32> -> vector<4x8x8xf32>
    %52 = vector.extract_strided_slice %11 {offsets = [0, 1, 0], sizes = [4, 7, 8], strides = [1, 1, 1]} : vector<4x8x8xf32> to vector<4x7x8xf32>
    %cst_26 = arith.constant 0.000000e+00 : f32
    %53 = vector.broadcast %cst_26 : f32 to vector<4x1x8xf32>
    %54 = tpu.concatenate %52, %53 in 1 : vector<4x7x8xf32>, vector<4x1x8xf32> -> vector<4x8x8xf32>
    %55 = tpu.concatenate %51, %11, %54 in 2 : vector<4x8x8xf32>, vector<4x8x8xf32>, vector<4x8x8xf32> -> vector<4x8x24xf32>
    %56 = vector.shape_cast %55 : vector<4x8x24xf32> to vector<32x24xf32>
    %c1 = arith.constant 1 : index
    %c0_27 = arith.constant 0 : index
    %c0_28 = arith.constant 0 : index
    %57 = vector.load %arg7[%c1, %c0_27, %c0_28] : memref<3x24x8xf32, #tpu.memory_space<vmem>>, vector<1x24x8xf32>
    %58 = vector.shape_cast %57 : vector<1x24x8xf32> to vector<24x8xf32>
    %cst_29 = arith.constant dense<0.000000e+00> : vector<32x8xf32>
    %59 = tpu.matmul %56, %58, %cst_29 {dimension_numbers = #tpu.dot_dimension_numbers<[1], [0], [0], [1], [0, 0, 1, 1], [], []>} : vector<32x24xf32>, vector<24x8xf32>, vector<32x8xf32> -> vector<32x8xf32>
    %60 = arith.addf %48, %59 : vector<32x8xf32>
    %61 = vector.extract_strided_slice %11 {offsets = [1, 0, 0], sizes = [3, 8, 8], strides = [1, 1, 1]} : vector<4x8x8xf32> to vector<3x8x8xf32>
    %62 = tpu.concatenate %61, %35 in 0 : vector<3x8x8xf32>, vector<1x8x8xf32> -> vector<4x8x8xf32>
    %cst_30 = arith.constant 0.000000e+00 : f32
    %63 = vector.broadcast %cst_30 : f32 to vector<4x1x8xf32>
    %64 = vector.extract_strided_slice %62 {offsets = [0, 0, 0], sizes = [4, 7, 8], strides = [1, 1, 1]} : vector<4x8x8xf32> to vector<4x7x8xf32>
    %65 = tpu.concatenate %63, %64 in 1 : vector<4x1x8xf32>, vector<4x7x8xf32> -> vector<4x8x8xf32>
    %66 = vector.extract_strided_slice %62 {offsets = [0, 1, 0], sizes = [4, 7, 8], strides = [1, 1, 1]} : vector<4x8x8xf32> to vector<4x7x8xf32>
    %cst_31 = arith.constant 0.000000e+00 : f32
    %67 = vector.broadcast %cst_31 : f32 to vector<4x1x8xf32>
    %68 = tpu.concatenate %66, %67 in 1 : vector<4x7x8xf32>, vector<4x1x8xf32> -> vector<4x8x8xf32>
    %69 = tpu.concatenate %65, %62, %68 in 2 : vector<4x8x8xf32>, vector<4x8x8xf32>, vector<4x8x8xf32> -> vector<4x8x24xf32>
    %70 = vector.shape_cast %69 : vector<4x8x24xf32> to vector<32x24xf32>
    %c2 = arith.constant 2 : index
    %c0_32 = arith.constant 0 : index
    %c0_33 = arith.constant 0 : index
    %71 = vector.load %arg7[%c2, %c0_32, %c0_33] : memref<3x24x8xf32, #tpu.memory_space<vmem>>, vector<1x24x8xf32>
    %72 = vector.shape_cast %71 : vector<1x24x8xf32> to vector<24x8xf32>
    %cst_34 = arith.constant dense<0.000000e+00> : vector<32x8xf32>
    %73 = tpu.matmul %70, %72, %cst_34 {dimension_numbers = #tpu.dot_dimension_numbers<[1], [0], [0], [1], [0, 0, 1, 1], [], []>} : vector<32x24xf32>, vector<24x8xf32>, vector<32x8xf32> -> vector<32x8xf32>
    %74 = arith.addf %60, %73 : vector<32x8xf32>
    %75 = vector.shape_cast %74 : vector<32x8xf32> to vector<4x8x8xf32>
    %c0_35 = arith.constant 0 : index
    %c0_36 = arith.constant 0 : index
    %c0_37 = arith.constant 0 : index
    %c0_38 = arith.constant 0 : index
    %76 = vector.load %arg8[%c0_35, %c0_36, %c0_37, %c0_38] : memref<1x4x8x8xf32, #tpu.memory_space<vmem>>, vector<1x4x8x8xf32>
    %77 = vector.shape_cast %76 : vector<1x4x8x8xf32> to vector<4x8x8xf32>
    %78 = vector.shape_cast %75 : vector<4x8x8xf32> to vector<1x4x8x8xf32>
    tpu.vector_store %arg8[%c0_35, %c0_36, %c0_37, %c0_38], %78 {strides = array<i32>} : memref<1x4x8x8xf32, #tpu.memory_space<vmem>>, vector<1x4x8x8xf32>,
    %cst_39 = arith.constant dense<0.000000e+00> : vector<8xf32>
    %79 = vector.multi_reduction <add>, %74, %cst_39 [0] : vector<32x8xf32> to vector<8xf32>
    %80 = vector.shape_cast %79 : vector<8xf32> to vector<1x8xf32>
    %c0_40 = arith.constant 0 : index
    %c0_41 = arith.constant 0 : index
    %c0_42 = arith.constant 0 : index
    %c0_43 = arith.constant 0 : index
    %81 = vector.load %arg9[%c0_40, %c0_41, %c0_42, %c0_43] : memref<1x1x2x8xf32, #tpu.memory_space<vmem>>, vector<1x1x1x8xf32>
    %82 = vector.shape_cast %81 : vector<1x1x1x8xf32> to vector<1x8xf32>
    %83 = vector.shape_cast %80 : vector<1x8xf32> to vector<1x1x1x8xf32>
    tpu.vector_store %arg9[%c0_40, %c0_41, %c0_42, %c0_43], %83 {strides = array<i32>} : memref<1x1x2x8xf32, #tpu.memory_space<vmem>>, vector<1x1x1x8xf32>,
    %84 = arith.mulf %74, %74 : vector<32x8xf32>
    %cst_44 = arith.constant dense<0.000000e+00> : vector<8xf32>
    %85 = vector.multi_reduction <add>, %84, %cst_44 [0] : vector<32x8xf32> to vector<8xf32>
    %86 = vector.shape_cast %85 : vector<8xf32> to vector<1x8xf32>
    %c0_45 = arith.constant 0 : index
    %c0_46 = arith.constant 0 : index
    %c1_47 = arith.constant 1 : index
    %c0_48 = arith.constant 0 : index
    %87 = vector.load %arg9[%c0_45, %c0_46, %c1_47, %c0_48] : memref<1x1x2x8xf32, #tpu.memory_space<vmem>>, vector<1x1x1x8xf32>
    %88 = vector.shape_cast %87 : vector<1x1x1x8xf32> to vector<1x8xf32>
    %89 = vector.shape_cast %86 : vector<1x8xf32> to vector<1x1x1x8xf32>
    tpu.vector_store %arg9[%c0_45, %c0_46, %c1_47, %c0_48], %89 {strides = array<i32>} : memref<1x1x2x8xf32, #tpu.memory_space<vmem>>, vector<1x1x1x8xf32>,
    return
  }
  func.func @transform_0(%arg0: i32, %arg1: i32) -> (i32, i32, i32, i32) {
    %c0_i32 = arith.constant 0 : i32
    %c0_i32_0 = arith.constant 0 : i32
    %c0_i32_1 = arith.constant 0 : i32
    return %arg0, %arg1, %c0_i32, %c0_i32_0 : i32, i32, i32, i32
  }
  func.func @transform_1(%arg0: i32, %arg1: i32) -> (i32, i32, i32, i32) {
    %c4_i32 = arith.constant 4 : i32
    %0 = arith.muli %arg1, %c4_i32 : i32
    %c1_i32 = arith.constant 1 : i32
    %1 = arith.subi %0, %c1_i32 : i32
    %c0_i32 = arith.constant 0 : i32
    %2 = arith.maxsi %1, %c0_i32 : i32
    %c0_i32_0 = arith.constant 0 : i32
    %c0_i32_1 = arith.constant 0 : i32
    %c0_i32_2 = arith.constant 0 : i32
    return %arg0, %2, %c0_i32_0, %c0_i32_1 : i32, i32, i32, i32
  }
  func.func @transform_2(%arg0: i32, %arg1: i32) -> (i32, i32, i32, i32) {
    %c1_i32 = arith.constant 1 : i32
    %0 = arith.addi %arg1, %c1_i32 : i32
    %c4_i32 = arith.constant 4 : i32
    %1 = arith.muli %0, %c4_i32 : i32
    %c7_i32 = arith.constant 7 : i32
    %2 = arith.minsi %1, %c7_i32 : i32
    %c0_i32 = arith.constant 0 : i32
    %c0_i32_0 = arith.constant 0 : i32
    %c0_i32_1 = arith.constant 0 : i32
    return %arg0, %2, %c0_i32, %c0_i32_0 : i32, i32, i32, i32
  }
  func.func @transform_3(%arg0: i32, %arg1: i32) -> (i32, i32) {
    %c0_i32 = arith.constant 0 : i32
    %c0_i32_0 = arith.constant 0 : i32
    %c0_i32_1 = arith.constant 0 : i32
    return %c0_i32, %c0_i32_0 : i32, i32
  }
  func.func @transform_4(%arg0: i32, %arg1: i32) -> (i32, i32) {
    %c0_i32 = arith.constant 0 : i32
    %c0_i32_0 = arith.constant 0 : i32
    %c0_i32_1 = arith.constant 0 : i32
    return %c0_i32, %c0_i32_0 : i32, i32
  }
  func.func @transform_5(%arg0: i32, %arg1: i32) -> (i32, i32, i32) {
    %c0_i32 = arith.constant 0 : i32
    %c0_i32_0 = arith.constant 0 : i32
    %c0_i32_1 = arith.constant 0 : i32
    %c0_i32_2 = arith.constant 0 : i32
    return %c0_i32, %c0_i32_0, %c0_i32_1 : i32, i32, i32
  }
  func.func @transform_6(%arg0: i32, %arg1: i32) -> (i32, i32, i32, i32) {
    %c0_i32 = arith.constant 0 : i32
    %c0_i32_0 = arith.constant 0 : i32
    %c0_i32_1 = arith.constant 0 : i32
    return %arg0, %arg1, %c0_i32, %c0_i32_0 : i32, i32, i32, i32
  }
  func.func @transform_7(%arg0: i32, %arg1: i32) -> (i32, i32, i32, i32) {
    %c0_i32 = arith.constant 0 : i32
    %c0_i32_0 = arith.constant 0 : i32
    %c0_i32_1 = arith.constant 0 : i32
    return %arg0, %arg1, %c0_i32, %c0_i32_0 : i32, i32, i32, i32
  }
}

</mosaic_0001>

<llo_original>
// kernel: down_forward.5
$region0: #{down_forward.5}
  #allocation0 [shape = 'u32[]', space=smem, size = 0x4, offset = 0x4, fixed_abs, tag = 'smem constant byte address 0x4 - core index']
  #allocation1 [shape = 'u32[144,128]{1,0:T(1,128)}', space=vmem, size = 0x12000, scoped, tag = 'internal scratch']
  %s0 = inlined_call_operand.vmem [shape: f32[2,8,8,8], index: 0, kind: input, shape index: {}]
  %s1 = inlined_call_operand.vmem [shape: f32[1,8], index: 1, kind: input, shape index: {}]
  %s2 = inlined_call_operand.vmem [shape: f32[1,8], index: 2, kind: input, shape index: {}]
  %s3 = inlined_call_operand.vmem [shape: f32[2,8,8,8], index: 3, kind: output, shape index: {}]
  %s4 = sld [smem:[#allocation0]]
  $region45: #{down_forward.5} parent=0
    _
  %s6 = ssub.s32 1, %s4
  %s7 = scalar_select 0, %s6, %s4
  loop: start=0, step=1, limit=6
  $region2: #{down_forward.5} parent=0 // loop_pre_header
    _
  $region3: #{down_forward.5} parent=0 // loop_header
    %s9 = sphi 0, %s13
    %p10 = scmp.ge.s32.totalorder %s9, 6
    %s16 = sphi 0, %s28
    %s17 = sphi 0, %s24
    %s18 = sphi 0, %s16
    %s19 = sphi 0, %s17
    %s20 = sphi 0, %s18
    %s21 = sphi 0, %s19
    %s33 = sphi 0, %s35
    %s36 = sphi 0, %s33
    %s37 = sphi 0, %s36
    %s53 = sphi 0, %s37
    %s57 = sphi 0, %s57
    %s59 = sphi 0, %s57
    %s60 = sphi 0, %s59
    %s74 = sphi 0, %s60
    %s78 = sphi 0, %s78
    %s80 = sphi 0, %s78
    %s81 = sphi 0, %s80
    %s95 = sphi 0, %s81
    %s103 = sphi 0, %s105
    %s106 = sphi 0, %s103
    %s107 = sphi 0, %s106
    %s123 = sphi 0, %s107
  $region4: #{down_forward.5} parent=0 // loop_header_branch
    %12 = sbr.rel (%p10) target = $region8
  $region5: #{down_forward.5} parent=0 // loop_body
    %s14 = ssub.s32 %s9, 1
    %s15 = ssub.s32 %s9, 2
    %s22 = sadd.s32 1, %s17
    %p23 = scmp.ge.s32.totalorder %s22, 2
    %s24 = scalar_select %p23, 0, %s22
    %s25 = sadd.s32 1, %s16
    %s26 = scalar_select %p23, %s25, %s16
    %p27 = scmp.ge.s32.totalorder %s26, 2
    %s28 = scalar_select %p27, 0, %s26
    %s29 = ssub.s32 %s16, %s28
    %s30 = ssub.s32 %s17, %s24
    %s31 = sor.u32 %s29, %s30
    %p32 = scmp.eq.s32.totalorder %s31, 0
    %s34 = sadd.s32 %s33, 1
    %s35 = scalar_select %p32, %s33, %s34
    %p38 = pneg %p32
    %p39 = scmp.eq.s32.totalorder %s9, 3
    %p40 = por %p38, %p39
    %p41 = scmp.ne.s32.totalorder %s33, %s36
    %p42 = scmp.eq.s32.totalorder %s9, 0
    %p43 = por %p41, %p42
    %p44 = scmp.ne.s32.totalorder %s33, %s36
    %p45 = scmp.eq.s32.totalorder %s14, 3
    %p46 = por %p44, %p45
    %p47 = scmp.ne.s32.totalorder %s36, %s37
    %p48 = scmp.eq.s32.totalorder %s14, 0
    %p49 = por %p47, %p48
    %p50 = scmp.ne.s32.totalorder %s36, %s37
    %p51 = scmp.eq.s32.totalorder %s15, 3
    %p52 = por %p50, %p51
    %p54 = scmp.ne.s32.totalorder %s37, %s53
    %p55 = scmp.eq.s32.totalorder %s15, 0
    %p56 = por %p54, %p55
    %s58 = sadd.s32 %s57, 1
    %p61 = scmp.eq.s32.totalorder %s9, 3
    %p62 = scmp.ne.s32.totalorder %s57, %s59
    %p63 = scmp.eq.s32.totalorder %s9, 0
    %p64 = por %p62, %p63
    %p65 = scmp.ne.s32.totalorder %s57, %s59
    %p66 = scmp.eq.s32.totalorder %s14, 3
    %p67 = por %p65, %p66
    %p68 = scmp.ne.s32.totalorder %s59, %s60
    %p69 = scmp.eq.s32.totalorder %s14, 0
    %p70 = por %p68, %p69
    %p71 = scmp.ne.s32.totalorder %s59, %s60
    %p72 = scmp.eq.s32.totalorder %s15, 3
    %p73 = por %p71, %p72
    %p75 = scmp.ne.s32.totalorder %s60, %s74
    %p76 = scmp.eq.s32.totalorder %s15, 0
    %p77 = por %p75, %p76
    %s79 = sadd.s32 %s78, 1
    %p82 = scmp.eq.s32.totalorder %s9, 3
    %p83 = scmp.ne.s32.totalorder %s78, %s80
    %p84 = scmp.eq.s32.totalorder %s9, 0
    %p85 = por %p83, %p84
    %p86 = scmp.ne.s32.totalorder %s78, %s80
    %p87 = scmp.eq.s32.totalorder %s14, 3
    %p88 = por %p86, %p87
    %p89 = scmp.ne.s32.totalorder %s80, %s81
    %p90 = scmp.eq.s32.totalorder %s14, 0
    %p91 = por %p89, %p90
    %p92 = scmp.ne.s32.totalorder %s80, %s81
    %p93 = scmp.eq.s32.totalorder %s15, 3
    %p94 = por %p92, %p93
    %p96 = scmp.ne.s32.totalorder %s81, %s95
    %p97 = scmp.eq.s32.totalorder %s15, 0
    %p98 = por %p96, %p97
    %s99 = ssub.s32 %s16, %s28
    %s100 = ssub.s32 %s17, %s24
    %s101 = sor.u32 %s99, %s100
    %p102 = scmp.eq.s32.totalorder %s101, 0
    %s104 = sadd.s32 %s103, 1
    %s105 = scalar_select %p102, %s103, %s104
    %p108 = pneg %p102
    %p109 = scmp.eq.s32.totalorder %s9, 3
    %p110 = por %p108, %p109
    %p111 = scmp.ne.s32.totalorder %s103, %s106
    %p112 = scmp.eq.s32.totalorder %s9, 0
    %p113 = por %p111, %p112
    %p114 = scmp.ne.s32.totalorder %s103, %s106
    %p115 = scmp.eq.s32.totalorder %s14, 3
    %p116 = por %p114, %p115
    %p117 = scmp.ne.s32.totalorder %s106, %s107
    %p118 = scmp.eq.s32.totalorder %s14, 0
    %p119 = por %p117, %p118
    %p120 = scmp.ne.s32.totalorder %s106, %s107
    %p121 = scmp.eq.s32.totalorder %s15, 3
    %p122 = por %p120, %p121
    %p124 = scmp.ne.s32.totalorder %s107, %s123
    %p125 = scmp.eq.s32.totalorder %s15, 0
    %p126 = por %p124, %p125
    %p127 = scmp.le.s32.totalorder 1, %s9
    %p128 = scmp.lt.s32.totalorder %s9, 5
    %p129 = pnand %p127, %p128
    %p130 = pneg %p129
    // Predicated region
    $region9: #{down_forward.5} parent=5 // pred_check
      _
    $region10: #{down_forward.5} parent=5 // pred_check_branch
      %132 = sbr.rel (%p129) target = $region12
    $region11: #{down_forward.5} parent=5 // pred_region
      %s133 = ssub.s32 %s9, 1
      // Predicated region
      $region13: #{down_forward.5} parent=11 // pred_check
        %p134 = pneg %p70
      $region14: #{down_forward.5} parent=11 // pred_check_branch
        %136 = sbr.rel (%p134) target = $region16
      $region15: #{down_forward.5} parent=11 // pred_region
        _
      $region16: #{down_forward.5} parent=11 // pred_fallthru
        _
      // Predicated region
      $region17: #{down_forward.5} parent=11 // pred_check
        %p137 = pneg %p91
      $region18: #{down_forward.5} parent=11 // pred_check_branch
        %139 = sbr.rel (%p137) target = $region20
      $region19: #{down_forward.5} parent=11 // pred_region
        _
      $region20: #{down_forward.5} parent=11 // pred_fallthru
        _
    $region12: #{down_forward.5} parent=5 // pred_fallthru
      _
    %p140 = scmp.lt.s32.totalorder %s9, 4
    // Predicated region
    $region21: #{down_forward.5} parent=5 // pred_check
      %p141 = pneg %p140
    $region22: #{down_forward.5} parent=5 // pred_check_branch
      %143 = sbr.rel (%p141) target = $region24
    $region23: #{down_forward.5} parent=5 // pred_region
      // Predicated region
      $region25: #{down_forward.5} parent=23 // pred_check
        %p144 = pneg %p43
      $region26: #{down_forward.5} parent=23 // pred_check_branch
        %146 = sbr.rel (%p144) target = $region28
      $region27: #{down_forward.5} parent=23 // pred_region
        %s147 = smul.u32 4, %s17
        %p148 = scmp.lt.s32.totalorder %s16, 1
        %s149 = scalar_select %p148, %s16, 1
        %p150 = scmp.lt.s32.totalorder %s147, 7
        %s151 = scalar_select %p150, %s147, 7
        %s152 = smul.addr %s149, 8
        %s153 = sadd.s32 %s151, %s152
        %s154 = smul.addr %s153, 8
        %s155 = scalar_lea.vmem %s0, %s154
        %s156 = smul.u32 4, %s17
      $region28: #{down_forward.5} parent=23 // pred_fallthru
        _
    $region24: #{down_forward.5} parent=5 // pred_fallthru
      _
    %p157 = scmp.le.s32.totalorder 1, %s9
    %p158 = scmp.lt.s32.totalorder %s9, 5
    %p159 = pnand %p157, %p158
    %p160 = pneg %p159
    // Predicated region
    $region29: #{down_forward.5} parent=5 // pred_check
      _
    $region30: #{down_forward.5} parent=5 // pred_check_branch
      %162 = sbr.rel (%p159) target = $region32
    $region31: #{down_forward.5} parent=5 // pred_region
      %s163 = ssub.s32 %s9, 1
      %s164 = smul.u32 4, %s19
      %p165 = scmp.lt.s32.totalorder %s18, 1
      %s166 = scalar_select %p165, %s18, 1
      %p167 = scmp.lt.s32.totalorder %s164, 7
      %s168 = scalar_select %p167, %s164, 7
      %s169 = smul.addr %s166, 8
      %s170 = sadd.s32 %s168, %s169
      %s171 = smul.addr %s170, 8
      %s172 = scalar_lea.vmem %s0, %s171
      %p173 = pneg %p49
      %p174 = pneg %p46
      %p175 = pneg %p70
      %p176 = pneg %p67
      %p177 = pneg %p91
      %p178 = pneg %p88
      %p179 = pneg %p119
      %p180 = pneg %p116
      %s181 = smul.u32 4, %s19
      %p182 = scmp.lt.s32.totalorder %s18, 1
      %s183 = scalar_select %p182, %s18, 1
      %p184 = scmp.lt.s32.totalorder %s181, 7
      %s185 = scalar_select %p184, %s181, 7
      %s186 = smul.addr %s183, 8
      %s187 = sadd.s32 %s185, %s186
      %s188 = smul.addr %s187, 8
      %s189 = scalar_lea.vmem %s3, %s188
      %s190 = smul.u32 4, %s19
      %p191 = scmp.lt.s32.totalorder %s18, 1
      %s192 = scalar_select %p191, %s18, 1
      %p193 = scmp.lt.s32.totalorder %s190, 7
      %s194 = scalar_select %p193, %s190, 7
      %s195 = smul.addr %s192, 8
      %s196 = sadd.s32 %s194, %s195
      %s197 = smul.addr %s196, 8
      %s198 = scalar_lea.vmem %s0, %s197
      %s199 = smul.u32 4, %s19
      %s200 = smul.u32 4, %s19
      %p201 = scmp.lt.s32.totalorder %s18, 1
      %s202 = scalar_select %p201, %s18, 1
      %p203 = scmp.lt.s32.totalorder %s200, 7
      %s204 = scalar_select %p203, %s200, 7
      %s205 = smul.addr %s202, 8
      %s206 = sadd.s32 %s204, %s205
      %s207 = smul.addr %s206, 8
      %s208 = scalar_lea.vmem %s3, %s207
      %s209 = smul.u32 4, %s19
      %v210 = vld [vmem:[%s198] sm:$0xff]
      %v211 = vld [vmem:[%s198 + $0x8] sm:$0xff]
      %v212 = vld [vmem:[%s198 + $0x10] sm:$0xff]
      %v213 = vld [vmem:[%s198 + $0x18] sm:$0xff]
      %v214 = vld [vmem:[%s1] sm:$0x1]
      %v216 = vlaneseq
      %v217 = vshrl.u32 %v216, 7
      %v218 = vsub.s32 0, %v217
      %v219 = vrot.slane %v214, %v218
      %v221 = vmul.f32 %v210, %v219
      %v222 = vmul.f32 %v211, %v219
      %v223 = vmul.f32 %v212, %v219
      %v224 = vmul.f32 %v213, %v219
      %v225 = vld [vmem:[%s2] sm:$0x1]
      %v227 = vlaneseq
      %v228 = vshrl.u32 %v227, 7
      %v229 = vsub.s32 0, %v228
      %v230 = vrot.slane %v225, %v229
      %v232 = vadd.f32 %v221, %v230
      %v233 = vadd.f32 %v222, %v230
      %v234 = vadd.f32 %v223, %v230
      %v235 = vadd.f32 %v224, %v230
      %v236 = vmax.f32 %v232, 0.0
      %v237 = vmax.f32 %v233, 0.0
      %v238 = vmax.f32 %v234, 0.0
      %v239 = vmax.f32 %v235, 0.0
      %vm240 = vcmask 64512
      %241 = vst.msk [vmem:[%s208] sm:$0xff] %vm240, %v236
      %242 = vst.msk [vmem:[%s208 + $0x8] sm:$0xff] %vm240, %v237
      %243 = vst.msk [vmem:[%s208 + $0x10] sm:$0xff] %vm240, %v238
      %244 = vst.msk [vmem:[%s208 + $0x18] sm:$0xff] %vm240, %v239
      %s245 = smul.u32 4, %s19
      %p246 = scmp.lt.s32.totalorder %s18, 1
      %s247 = scalar_select %p246, %s18, 1
      %p248 = scmp.lt.s32.totalorder %s245, 7
      %s249 = scalar_select %p248, %s245, 7
      %s250 = smul.addr %s247, 8
      %s251 = sadd.s32 %s249, %s250
      %s252 = smul.addr %s251, 8
      %s253 = scalar_lea.vmem %s3, %s252
      // Predicated region
      $region33: #{down_forward.5} parent=31 // pred_check
        %p254 = pneg %p116
      $region34: #{down_forward.5} parent=31 // pred_check_branch
        %256 = sbr.rel (%p254) target = $region36
      $region35: #{down_forward.5} parent=31 // pred_region
        %s257 = smul.u32 4, %s19
      $region36: #{down_forward.5} parent=31 // pred_fallthru
        _
    $region32: #{down_forward.5} parent=5 // pred_fallthru
      _
    %p258 = scmp.le.s32.totalorder 2, %s9
    // Predicated region
    $region37: #{down_forward.5} parent=5 // pred_check
      %p259 = pneg %p258
    $region38: #{down_forward.5} parent=5 // pred_check_branch
      %261 = sbr.rel (%p259) target = $region40
    $region39: #{down_forward.5} parent=5 // pred_region
      %s262 = ssub.s32 %s9, 2
      // Predicated region
      $region41: #{down_forward.5} parent=39 // pred_check
        %p263 = pneg %p122
      $region42: #{down_forward.5} parent=39 // pred_check_branch
        %265 = sbr.rel (%p263) target = $region44
      $region43: #{down_forward.5} parent=39 // pred_region
        %s266 = smul.u32 4, %s21
        %p267 = scmp.lt.s32.totalorder %s20, 1
        %s268 = scalar_select %p267, %s20, 1
        %p269 = scmp.lt.s32.totalorder %s266, 7
        %s270 = scalar_select %p269, %s266, 7
        %s271 = smul.addr %s268, 8
        %s272 = sadd.s32 %s270, %s271
        %s273 = smul.addr %s272, 8
        %s274 = scalar_lea.vmem %s3, %s273
      $region44: #{down_forward.5} parent=39 // pred_fallthru
        _
    $region40: #{down_forward.5} parent=5 // pred_fallthru
      _
  $region6: #{down_forward.5} parent=0 // loop_footer
    %s13 = sadd.s32 1, %s9
  $region7: #{down_forward.5} parent=0 // loop_footer_branch
    %8 = sbr.rel target = $region3
  $region8: #{down_forward.5} parent=0 // loop_exit
    _

// kernel: down_forward.4
$region0: #{down_forward.4}
  #allocation0 [shape = 'u32[]', space=smem, size = 0x4, offset = 0x4, fixed_abs, tag = 'smem constant byte address 0x4 - core index']
  #allocation1 [shape = 'u32[144,128]{1,0:T(1,128)}', space=vmem, size = 0x12000, scoped, tag = 'internal scratch']
  %s0 = inlined_call_operand.vmem [shape: f32[2,8,8,8], index: 0, kind: input, shape index: {}, may-alias: {0,1,2}]
  %s1 = inlined_call_operand.vmem [shape: f32[2,8,8,8], index: 1, kind: input, shape index: {}, may-alias: {0,1,2}]
  %s2 = inlined_call_operand.vmem [shape: f32[2,8,8,8], index: 2, kind: input, shape index: {}, may-alias: {0,1,2}]
  %s3 = inlined_call_operand.vmem [shape: f32[1,8], index: 3, kind: input, shape index: {}]
  %s4 = inlined_call_operand.vmem [shape: f32[1,8], index: 4, kind: input, shape index: {}]
  %s5 = inlined_call_operand.vmem [shape: f32[3,24,8], index: 5, kind: input, shape index: {}]
  %s6 = inlined_call_operand.vmem [shape: f32[2,8,8,8], index: 6, kind: output, shape index: {0}]
  %s7 = inlined_call_operand.vmem [shape: f32[2,2,2,8], index: 7, kind: output, shape index: {1}]
  %8 = xla_tuple %s6, %s7
  %s9 = sld [smem:[#allocation0]]
  $region65: #{down_forward.4} parent=0
    _
  %s11 = ssub.s32 1, %s9
  %s12 = scalar_select 0, %s11, %s9
  loop: start=0, step=1, limit=6
  $region2: #{down_forward.4} parent=0 // loop_pre_header
    _
  $region3: #{down_forward.4} parent=0 // loop_header
    %s14 = sphi 0, %s18
    %p15 = scmp.ge.s32.totalorder %s14, 6
    %s21 = sphi 0, %s33
    %s22 = sphi 0, %s29
    %s23 = sphi 0, %s21
    %s24 = sphi 0, %s22
    %s25 = sphi 0, %s23
    %s26 = sphi 0, %s24
    %s38 = sphi 0, %s40
    %s41 = sphi 0, %s38
    %s42 = sphi 0, %s41
    %s58 = sphi 0, %s42
    %s74 = sphi 0, %s76
    %s77 = sphi 0, %s74
    %s78 = sphi 0, %s77
    %s94 = sphi 0, %s78
    %s110 = sphi 0, %s112
    %s113 = sphi 0, %s110
    %s114 = sphi 0, %s113
    %s130 = sphi 0, %s114
    %s134 = sphi 0, %s134
    %s136 = sphi 0, %s134
    %s137 = sphi 0, %s136
    %s151 = sphi 0, %s137
    %s155 = sphi 0, %s155
    %s157 = sphi 0, %s155
    %s158 = sphi 0, %s157
    %s172 = sphi 0, %s158
    %s176 = sphi 0, %s176
    %s178 = sphi 0, %s176
    %s179 = sphi 0, %s178
    %s193 = sphi 0, %s179
    %s201 = sphi 0, %s203
    %s204 = sphi 0, %s201
    %s205 = sphi 0, %s204
    %s221 = sphi 0, %s205
    %s229 = sphi 0, %s231
    %s232 = sphi 0, %s229
    %s233 = sphi 0, %s232
    %s249 = sphi 0, %s233
  $region4: #{down_forward.4} parent=0 // loop_header_branch
    %17 = sbr.rel (%p15) target = $region8
  $region5: #{down_forward.4} parent=0 // loop_body
    %s19 = ssub.s32 %s14, 1
    %s20 = ssub.s32 %s14, 2
    %s27 = sadd.s32 1, %s22
    %p28 = scmp.ge.s32.totalorder %s27, 2
    %s29 = scalar_select %p28, 0, %s27
    %s30 = sadd.s32 1, %s21
    %s31 = scalar_select %p28, %s30, %s21
    %p32 = scmp.ge.s32.totalorder %s31, 2
    %s33 = scalar_select %p32, 0, %s31
    %s34 = ssub.s32 %s21, %s33
    %s35 = ssub.s32 %s22, %s29
    %s36 = sor.u32 %s34, %s35
    %p37 = scmp.eq.s32.totalorder %s36, 0
    %s39 = sadd.s32 %s38, 1
    %s40 = scalar_select %p37, %s38, %s39
    %p43 = pneg %p37
    %p44 = scmp.eq.s32.totalorder %s14, 3
    %p45 = por %p43, %p44
    %p46 = scmp.ne.s32.totalorder %s38, %s41
    %p47 = scmp.eq.s32.totalorder %s14, 0
    %p48 = por %p46, %p47
    %p49 = scmp.ne.s32.totalorder %s38, %s41
    %p50 = scmp.eq.s32.totalorder %s19, 3
    %p51 = por %p49, %p50
    %p52 = scmp.ne.s32.totalorder %s41, %s42
    %p53 = scmp.eq.s32.totalorder %s19, 0
    %p54 = por %p52, %p53
    %p55 = scmp.ne.s32.totalorder %s41, %s42
    %p56 = scmp.eq.s32.totalorder %s20, 3
    %p57 = por %p55, %p56
    %p59 = scmp.ne.s32.totalorder %s42, %s58
    %p60 = scmp.eq.s32.totalorder %s20, 0
    %p61 = por %p59, %p60
    %s62 = smul.u32 %s22, 4
    %s63 = ssub.s32 %s62, 1
    %p64 = scmp.gt.s32.totalorder %s63, 0
    %s65 = scalar_select %p64, %s63, 0
    %s66 = smul.u32 %s29, 4
    %s67 = ssub.s32 %s66, 1
    %p68 = scmp.gt.s32.totalorder %s67, 0
    %s69 = scalar_select %p68, %s67, 0
    %s70 = ssub.s32 %s21, %s33
    %s71 = ssub.s32 %s65, %s69
    %s72 = sor.u32 %s70, %s71
    %p73 = scmp.eq.s32.totalorder %s72, 0
    %s75 = sadd.s32 %s74, 1
    %s76 = scalar_select %p73, %s74, %s75
    %p79 = pneg %p73
    %p80 = scmp.eq.s32.totalorder %s14, 3
    %p81 = por %p79, %p80
    %p82 = scmp.ne.s32.totalorder %s74, %s77
    %p83 = scmp.eq.s32.totalorder %s14, 0
    %p84 = por %p82, %p83
    %p85 = scmp.ne.s32.totalorder %s74, %s77
    %p86 = scmp.eq.s32.totalorder %s19, 3
    %p87 = por %p85, %p86
    %p88 = scmp.ne.s32.totalorder %s77, %s78
    %p89 = scmp.eq.s32.totalorder %s19, 0
    %p90 = por %p88, %p89
    %p91 = scmp.ne.s32.totalorder %s77, %s78
    %p92 = scmp.eq.s32.totalorder %s20, 3
    %p93 = por %p91, %p92
    %p95 = scmp.ne.s32.totalorder %s78, %s94
    %p96 = scmp.eq.s32.totalorder %s20, 0
    %p97 = por %p95, %p96
    %s98 = sadd.s32 %s22, 1
    %s99 = smul.u32 %s98, 4
    %p100 = scmp.lt.s32.totalorder %s99, 7
    %s101 = scalar_select %p100, %s99, 7
    %s102 = sadd.s32 %s29, 1
    %s103 = smul.u32 %s102, 4
    %p104 = scmp.lt.s32.totalorder %s103, 7
    %s105 = scalar_select %p104, %s103, 7
    %s106 = ssub.s32 %s21, %s33
    %s107 = ssub.s32 %s101, %s105
    %s108 = sor.u32 %s106, %s107
    %p109 = scmp.eq.s32.totalorder %s108, 0
    %s111 = sadd.s32 %s110, 1
    %s112 = scalar_select %p109, %s110, %s111
    %p115 = pneg %p109
    %p116 = scmp.eq.s32.totalorder %s14, 3
    %p117 = por %p115, %p116
    %p118 = scmp.ne.s32.totalorder %s110, %s113
    %p119 = scmp.eq.s32.totalorder %s14, 0
    %p120 = por %p118, %p119
    %p121 = scmp.ne.s32.totalorder %s110, %s113
    %p122 = scmp.eq.s32.totalorder %s19, 3
    %p123 = por %p121, %p122
    %p124 = scmp.ne.s32.totalorder %s113, %s114
    %p125 = scmp.eq.s32.totalorder %s19, 0
    %p126 = por %p124, %p125
    %p127 = scmp.ne.s32.totalorder %s113, %s114
    %p128 = scmp.eq.s32.totalorder %s20, 3
    %p129 = por %p127, %p128
    %p131 = scmp.ne.s32.totalorder %s114, %s130
    %p132 = scmp.eq.s32.totalorder %s20, 0
    %p133 = por %p131, %p132
    %s135 = sadd.s32 %s134, 1
    %p138 = scmp.eq.s32.totalorder %s14, 3
    %p139 = scmp.ne.s32.totalorder %s134, %s136
    %p140 = scmp.eq.s32.totalorder %s14, 0
    %p141 = por %p139, %p140
    %p142 = scmp.ne.s32.totalorder %s134, %s136
    %p143 = scmp.eq.s32.totalorder %s19, 3
    %p144 = por %p142, %p143
    %p145 = scmp.ne.s32.totalorder %s136, %s137
    %p146 = scmp.eq.s32.totalorder %s19, 0
    %p147 = por %p145, %p146
    %p148 = scmp.ne.s32.totalorder %s136, %s137
    %p149 = scmp.eq.s32.totalorder %s20, 3
    %p150 = por %p148, %p149
    %p152 = scmp.ne.s32.totalorder %s137, %s151
    %p153 = scmp.eq.s32.totalorder %s20, 0
    %p154 = por %p152, %p153
    %s156 = sadd.s32 %s155, 1
    %p159 = scmp.eq.s32.totalorder %s14, 3
    %p160 = scmp.ne.s32.totalorder %s155, %s157
    %p161 = scmp.eq.s32.totalorder %s14, 0
    %p162 = por %p160, %p161
    %p163 = scmp.ne.s32.totalorder %s155, %s157
    %p164 = scmp.eq.s32.totalorder %s19, 3
    %p165 = por %p163, %p164
    %p166 = scmp.ne.s32.totalorder %s157, %s158
    %p167 = scmp.eq.s32.totalorder %s19, 0
    %p168 = por %p166, %p167
    %p169 = scmp.ne.s32.totalorder %s157, %s158
    %p170 = scmp.eq.s32.totalorder %s20, 3
    %p171 = por %p169, %p170
    %p173 = scmp.ne.s32.totalorder %s158, %s172
    %p174 = scmp.eq.s32.totalorder %s20, 0
    %p175 = por %p173, %p174
    %s177 = sadd.s32 %s176, 1
    %p180 = scmp.eq.s32.totalorder %s14, 3
    %p181 = scmp.ne.s32.totalorder %s176, %s178
    %p182 = scmp.eq.s32.totalorder %s14, 0
    %p183 = por %p181, %p182
    %p184 = scmp.ne.s32.totalorder %s176, %s178
    %p185 = scmp.eq.s32.totalorder %s19, 3
    %p186 = por %p184, %p185
    %p187 = scmp.ne.s32.totalorder %s178, %s179
    %p188 = scmp.eq.s32.totalorder %s19, 0
    %p189 = por %p187, %p188
    %p190 = scmp.ne.s32.totalorder %s178, %s179
    %p191 = scmp.eq.s32.totalorder %s20, 3
    %p192 = por %p190, %p191
    %p194 = scmp.ne.s32.totalorder %s179, %s193
    %p195 = scmp.eq.s32.totalorder %s20, 0
    %p196 = por %p194, %p195
    %s197 = ssub.s32 %s21, %s33
    %s198 = ssub.s32 %s22, %s29
    %s199 = sor.u32 %s197, %s198
    %p200 = scmp.eq.s32.totalorder %s199, 0
    %s202 = sadd.s32 %s201, 1
    %s203 = scalar_select %p200, %s201, %s202
    %p206 = pneg %p200
    %p207 = scmp.eq.s32.totalorder %s14, 3
    %p208 = por %p206, %p207
    %p209 = scmp.ne.s32.totalorder %s201, %s204
    %p210 = scmp.eq.s32.totalorder %s14, 0
    %p211 = por %p209, %p210
    %p212 = scmp.ne.s32.totalorder %s201, %s204
    %p213 = scmp.eq.s32.totalorder %s19, 3
    %p214 = por %p212, %p213
    %p215 = scmp.ne.s32.totalorder %s204, %s205
    %p216 = scmp.eq.s32.totalorder %s19, 0
    %p217 = por %p215, %p216
    %p218 = scmp.ne.s32.totalorder %s204, %s205
    %p219 = scmp.eq.s32.totalorder %s20, 3
    %p220 = por %p218, %p219
    %p222 = scmp.ne.s32.totalorder %s205, %s221
    %p223 = scmp.eq.s32.totalorder %s20, 0
    %p224 = por %p222, %p223
    %s225 = ssub.s32 %s21, %s33
    %s226 = ssub.s32 %s22, %s29
    %s227 = sor.u32 %s225, %s226
    %p228 = scmp.eq.s32.totalorder %s227, 0
    %s230 = sadd.s32 %s229, 1
    %s231 = scalar_select %p228, %s229, %s230
    %p234 = pneg %p228
    %p235 = scmp.eq.s32.totalorder %s14, 3
    %p236 = por %p234, %p235
    %p237 = scmp.ne.s32.totalorder %s229, %s232
    %p238 = scmp.eq.s32.totalorder %s14, 0
    %p239 = por %p237, %p238
    %p240 = scmp.ne.s32.totalorder %s229, %s232
    %p241 = scmp.eq.s32.totalorder %s19, 3
    %p242 = por %p240, %p241
    %p243 = scmp.ne.s32.totalorder %s232, %s233
    %p244 = scmp.eq.s32.totalorder %s19, 0
    %p245 = por %p243, %p244
    %p246 = scmp.ne.s32.totalorder %s232, %s233
    %p247 = scmp.eq.s32.totalorder %s20, 3
    %p248 = por %p246, %p247
    %p250 = scmp.ne.s32.totalorder %s233, %s249
    %p251 = scmp.eq.s32.totalorder %s20, 0
    %p252 = por %p250, %p251
    %p253 = scmp.le.s32.totalorder 1, %s14
    %p254 = scmp.lt.s32.totalorder %s14, 5
    %p255 = pnand %p253, %p254
    %p256 = pneg %p255
    // Predicated region
    $region9: #{down_forward.4} parent=5 // pred_check
      _
    $region10: #{down_forward.4} parent=5 // pred_check_branch
      %258 = sbr.rel (%p255) target = $region12
    $region11: #{down_forward.4} parent=5 // pred_region
      %s259 = ssub.s32 %s14, 1
      // Predicated region
      $region13: #{down_forward.4} parent=11 // pred_check
        %p260 = pneg %p147
      $region14: #{down_forward.4} parent=11 // pred_check_branch
        %262 = sbr.rel (%p260) target = $region16
      $region15: #{down_forward.4} parent=11 // pred_region
        _
      $region16: #{down_forward.4} parent=11 // pred_fallthru
        _
      // Predicated region
      $region17: #{down_forward.4} parent=11 // pred_check
        %p263 = pneg %p168
      $region18: #{down_forward.4} parent=11 // pred_check_branch
        %265 = sbr.rel (%p263) target = $region20
      $region19: #{down_forward.4} parent=11 // pred_region
        _
      $region20: #{down_forward.4} parent=11 // pred_fallthru
        _
      // Predicated region
      $region21: #{down_forward.4} parent=11 // pred_check
        %p266 = pneg %p189
      $region22: #{down_forward.4} parent=11 // pred_check_branch
        %268 = sbr.rel (%p266) target = $region24
      $region23: #{down_forward.4} parent=11 // pred_region
        _
      $region24: #{down_forward.4} parent=11 // pred_fallthru
        _
    $region12: #{down_forward.4} parent=5 // pred_fallthru
      _
    %p269 = scmp.lt.s32.totalorder %s14, 4
    // Predicated region
    $region25: #{down_forward.4} parent=5 // pred_check
      %p270 = pneg %p269
    $region26: #{down_forward.4} parent=5 // pred_check_branch
      %272 = sbr.rel (%p270) target = $region28
    $region27: #{down_forward.4} parent=5 // pred_region
      // Predicated region
      $region29: #{down_forward.4} parent=27 // pred_check
        %p273 = pneg %p48
      $region30: #{down_forward.4} parent=27 // pred_check_branch
        %275 = sbr.rel (%p273) target = $region32
      $region31: #{down_forward.4} parent=27 // pred_region
        %s276 = smul.u32 4, %s22
        %p277 = scmp.lt.s32.totalorder %s21, 1
        %s278 = scalar_select %p277, %s21, 1
        %p279 = scmp.lt.s32.totalorder %s276, 7
        %s280 = scalar_select %p279, %s276, 7
        %s281 = smul.addr %s278, 8
        %s282 = sadd.s32 %s280, %s281
        %s283 = smul.addr %s282, 8
        %s284 = scalar_lea.vmem %s0, %s283
        %s285 = smul.u32 4, %s22
      $region32: #{down_forward.4} parent=27 // pred_fallthru
        _
      // Predicated region
      $region33: #{down_forward.4} parent=27 // pred_check
        %p286 = pneg %p84
      $region34: #{down_forward.4} parent=27 // pred_check_branch
        %288 = sbr.rel (%p286) target = $region36
      $region35: #{down_forward.4} parent=27 // pred_region
        %s289 = smul.u32 %s22, 4
        %s290 = ssub.s32 %s289, 1
        %p291 = scmp.gt.s32.totalorder %s290, 0
        %s292 = scalar_select %p291, %s290, 0
        %p293 = scmp.lt.s32.totalorder %s21, 1
        %s294 = scalar_select %p293, %s21, 1
        %p295 = scmp.lt.s32.totalorder %s292, 7
        %s296 = scalar_select %p295, %s292, 7
        %s297 = smul.addr %s294, 8
        %s298 = sadd.s32 %s296, %s297
        %s299 = smul.addr %s298, 8
        %s300 = scalar_lea.vmem %s1, %s299
        %s301 = smul.u32 %s22, 4
        %s302 = ssub.s32 %s301, 1
        %p303 = scmp.gt.s32.totalorder %s302, 0
        %s304 = scalar_select %p303, %s302, 0
      $region36: #{down_forward.4} parent=27 // pred_fallthru
        _
      // Predicated region
      $region37: #{down_forward.4} parent=27 // pred_check
        %p305 = pneg %p120
      $region38: #{down_forward.4} parent=27 // pred_check_branch
        %307 = sbr.rel (%p305) target = $region40
      $region39: #{down_forward.4} parent=27 // pred_region
        %s308 = sadd.s32 %s22, 1
        %s309 = smul.u32 %s308, 4
        %p310 = scmp.lt.s32.totalorder %s309, 7
        %s311 = scalar_select %p310, %s309, 7
        %p312 = scmp.lt.s32.totalorder %s21, 1
        %s313 = scalar_select %p312, %s21, 1
        %p314 = scmp.lt.s32.totalorder %s311, 7
        %s315 = scalar_select %p314, %s311, 7
        %s316 = smul.addr %s313, 8
        %s317 = sadd.s32 %s315, %s316
        %s318 = smul.addr %s317, 8
        %s319 = scalar_lea.vmem %s2, %s318
        %s320 = sadd.s32 %s22, 1
        %s321 = smul.u32 %s320, 4
        %p322 = scmp.lt.s32.totalorder %s321, 7
        %s323 = scalar_select %p322, %s321, 7
      $region40: #{down_forward.4} parent=27 // pred_fallthru
        _
    $region28: #{down_forward.4} parent=5 // pred_fallthru
      _
    %p324 = scmp.le.s32.totalorder 1, %s14
    %p325 = scmp.lt.s32.totalorder %s14, 5
    %p326 = pnand %p324, %p325
    %p327 = pneg %p326
    // Predicated region
    $region41: #{down_forward.4} parent=5 // pred_check
      _
    $region42: #{down_forward.4} parent=5 // pred_check_branch
      %329 = sbr.rel (%p326) target = $region44
    $region43: #{down_forward.4} parent=5 // pred_region
      %s330 = ssub.s32 %s14, 1
      %s331 = smul.u32 4, %s24
      %p332 = scmp.lt.s32.totalorder %s23, 1
      %s333 = scalar_select %p332, %s23, 1
      %p334 = scmp.lt.s32.totalorder %s331, 7
      %s335 = scalar_select %p334, %s331, 7
      %s336 = smul.addr %s333, 8
      %s337 = sadd.s32 %s335, %s336
      %s338 = smul.addr %s337, 8
      %s339 = scalar_lea.vmem %s0, %s338
      %p340 = pneg %p54
      %p341 = pneg %p51
      %s342 = smul.u32 %s24, 4
      %s343 = ssub.s32 %s342, 1
      %p344 = scmp.gt.s32.totalorder %s343, 0
      %s345 = scalar_select %p344, %s343, 0
      %p346 = scmp.lt.s32.totalorder %s23, 1
      %s347 = scalar_select %p346, %s23, 1
      %p348 = scmp.lt.s32.totalorder %s345, 7
      %s349 = scalar_select %p348, %s345, 7
      %s350 = smul.addr %s347, 8
      %s351 = sadd.s32 %s349, %s350
      %s352 = smul.addr %s351, 8
      %s353 = scalar_lea.vmem %s1, %s352
      %p354 = pneg %p90
      %p355 = pneg %p87
      %s356 = sadd.s32 %s24, 1
      %s357 = smul.u32 %s356, 4
      %p358 = scmp.lt.s32.totalorder %s357, 7
      %s359 = scalar_select %p358, %s357, 7
      %p360 = scmp.lt.s32.totalorder %s23, 1
      %s361 = scalar_select %p360, %s23, 1
      %p362 = scmp.lt.s32.totalorder %s359, 7
      %s363 = scalar_select %p362, %s359, 7
      %s364 = smul.addr %s361, 8
      %s365 = sadd.s32 %s363, %s364
      %s366 = smul.addr %s365, 8
      %s367 = scalar_lea.vmem %s2, %s366
      %p368 = pneg %p126
      %p369 = pneg %p123
      %p370 = pneg %p147
      %p371 = pneg %p144
      %p372 = pneg %p168
      %p373 = pneg %p165
      %p374 = pneg %p189
      %p375 = pneg %p186
      %p376 = pneg %p217
      %p377 = pneg %p214
      %s378 = smul.u32 4, %s24
      %p379 = scmp.lt.s32.totalorder %s23, 1
      %s380 = scalar_select %p379, %s23, 1
      %p381 = scmp.lt.s32.totalorder %s378, 7
      %s382 = scalar_select %p381, %s378, 7
      %s383 = smul.addr %s380, 8
      %s384 = sadd.s32 %s382, %s383
      %s385 = smul.addr %s384, 8
      %s386 = scalar_lea.vmem %s6, %s385
      %p387 = pneg %p245
      %p388 = pneg %p242
      %p389 = scmp.lt.s32.totalorder %s23, 1
      %s390 = scalar_select %p389, %s23, 1
      %p391 = scmp.lt.s32.totalorder %s24, 1
      %s392 = scalar_select %p391, %s24, 1
      %s393 = smul.addr %s390, 2
      %s394 = sadd.s32 %s392, %s393
      %s395 = smul.addr %s394, 2
      %s396 = scalar_lea.vmem %s7, %s395
      %s397 = smul.u32 4, %s24
      %p398 = scmp.lt.s32.totalorder %s23, 1
      %s399 = scalar_select %p398, %s23, 1
      %p400 = scmp.lt.s32.totalorder %s397, 7
      %s401 = scalar_select %p400, %s397, 7
      %s402 = smul.addr %s399, 8
      %s403 = sadd.s32 %s401, %s402
      %s404 = smul.addr %s403, 8
      %s405 = scalar_lea.vmem %s0, %s404
      %s406 = smul.u32 4, %s24
      %s407 = smul.u32 %s24, 4
      %s408 = ssub.s32 %s407, 1
      %p409 = scmp.gt.s32.totalorder %s408, 0
      %s410 = scalar_select %p409, %s408, 0
      %p411 = scmp.lt.s32.totalorder %s23, 1
      %s412 = scalar_select %p411, %s23, 1
      %p413 = scmp.lt.s32.totalorder %s410, 7
      %s414 = scalar_select %p413, %s410, 7
      %s415 = smul.addr %s412, 8
      %s416 = sadd.s32 %s414, %s415
      %s417 = smul.addr %s416, 8
      %s418 = scalar_lea.vmem %s1, %s417
      %s419 = smul.u32 %s24, 4
      %s420 = ssub.s32 %s419, 1
      %p421 = scmp.gt.s32.totalorder %s420, 0
      %s422 = scalar_select %p421, %s420, 0
      %s423 = sadd.s32 %s24, 1
      %s424 = smul.u32 %s423, 4
      %p425 = scmp.lt.s32.totalorder %s424, 7
      %s426 = scalar_select %p425, %s424, 7
      %p427 = scmp.lt.s32.totalorder %s23, 1
      %s428 = scalar_select %p427, %s23, 1
      %p429 = scmp.lt.s32.totalorder %s426, 7
      %s430 = scalar_select %p429, %s426, 7
      %s431 = smul.addr %s428, 8
      %s432 = sadd.s32 %s430, %s431
      %s433 = smul.addr %s432, 8
      %s434 = scalar_lea.vmem %s2, %s433
      %s435 = sadd.s32 %s24, 1
      %s436 = smul.u32 %s435, 4
      %p437 = scmp.lt.s32.totalorder %s436, 7
      %s438 = scalar_select %p437, %s436, 7
      %s439 = smul.u32 4, %s24
      %p440 = scmp.lt.s32.totalorder %s23, 1
      %s441 = scalar_select %p440, %s23, 1
      %p442 = scmp.lt.s32.totalorder %s439, 7
      %s443 = scalar_select %p442, %s439, 7
      %s444 = smul.addr %s441, 8
      %s445 = sadd.s32 %s443, %s444
      %s446 = smul.addr %s445, 8
      %s447 = scalar_lea.vmem %s6, %s446
      %s448 = smul.u32 4, %s24
      %p449 = scmp.lt.s32.totalorder %s23, 1
      %s450 = scalar_select %p449, %s23, 1
      %p451 = scmp.lt.s32.totalorder %s24, 1
      %s452 = scalar_select %p451, %s24, 1
      %s453 = smul.addr %s450, 2
      %s454 = sadd.s32 %s452, %s453
      %s455 = smul.addr %s454, 2
      %s456 = scalar_lea.vmem %s7, %s455
      %v457 = vld [vmem:[%s3] sm:$0x1]
      %v458 = vld [vmem:[%s4] sm:$0x1]
      %v459 = vld [vmem:[%s405] sm:$0xff]
      %v460 = vld [vmem:[%s405 + $0x8] sm:$0xff]
      %v461 = vld [vmem:[%s405 + $0x10] sm:$0xff]
      %v462 = vld [vmem:[%s405 + $0x18] sm:$0xff]
      %v464 = vlaneseq
      %v465 = vshrl.u32 %v464, 7
      %v466 = vsub.s32 0, %v465
      %v467 = vrot.slane %v457, %v466
      %v469 = vmul.f32 %v459, %v467
      %v470 = vmul.f32 %v460, %v467
      %v471 = vmul.f32 %v461, %v467
      %v472 = vmul.f32 %v462, %v467
      %v474 = vlaneseq
      %v475 = vshrl.u32 %v474, 7
      %v476 = vsub.s32 0, %v475
      %v477 = vrot.slane %v458, %v476
      %v479 = vadd.f32 %v469, %v477
      %v480 = vadd.f32 %v470, %v477
      %v481 = vadd.f32 %v471, %v477
      %v482 = vadd.f32 %v472, %v477
      %v483 = vmax.f32 %v479, 0.0
      %v484 = vmax.f32 %v480, 0.0
      %v485 = vmax.f32 %v481, 0.0
      %v486 = vmax.f32 %v482, 0.0
      %v487 = vld [vmem:[%s418] sm:$0xff]
      %v488 = vmul.f32 %v487, %v467
      %v489 = vadd.f32 %v488, %v477
      %v490 = vmax.f32 %v489, 0.0
      %v491 = vld [vmem:[%s434] sm:$0xff]
      %v492 = vmul.f32 %v491, %v467
      %v493 = vadd.f32 %v492, %v477
      %v494 = vmax.f32 %v493, 0.0
      %p495 = scmp.gt.s32.totalorder %s24, 0
      %s496 = scalar_select %p495, 1, 0
      %v497 = vstv %s496
      %vm498 = vcmp.eq.s32.totalorder %v497, 1
      %v499 = vsel %vm498, %v490, 0.0
      %p500 = scmp.lt.s32.totalorder %s24, 1
      %s501 = scalar_select %p500, 1, 0
      %v502 = vstv %s501
      %vm503 = vcmp.eq.s32.totalorder %v502, 1
      %v504 = vsel %vm503, %v494, 0.0
      %v509 = vrot.slane %v499, 7
      %v510 = vrot.slane %v483, 7
      %v511 = vrot.slane %v484, 7
      %v512 = vrot.slane %v485, 7
      %vm517 = vcmask 1040384
      %v518 = vsel %vm517, 0.0, %v509
      %v519 = vsel %vm517, 0.0, %v510
      %v520 = vsel %vm517, 0.0, %v511
      %v521 = vsel %vm517, 0.0, %v512
      %v522 = vrot.slane %v499, 1
      %v523 = vrot.slane %v483, 1
      %v524 = vrot.slane %v484, 1
      %v525 = vrot.slane %v485, 1
      %vm530 = vcmask 1046528
      %v531 = vsel %vm530, %v522, 0.0
      %v532 = vsel %vm530, %v523, 0.0
      %v533 = vsel %vm530, %v524, 0.0
      %v534 = vsel %vm530, %v525, 0.0
      %535 = vrot.lane.b32.xlu0 %v499, 8
      %v536 = vpop.permute.xlu0 %535
      %537 = vrot.lane.b32.xlu0 %v483, 8
      %v538 = vpop.permute.xlu0 %537
      %539 = vrot.lane.b32.xlu0 %v484, 8
      %v540 = vpop.permute.xlu0 %539
      %541 = vrot.lane.b32.xlu0 %v485, 8
      %v542 = vpop.permute.xlu0 %541
      %551 = vrot.lane.b32.xlu0 %v531, 16
      %v552 = vpop.permute.xlu0 %551
      %553 = vrot.lane.b32.xlu0 %v532, 16
      %v554 = vpop.permute.xlu0 %553
      %555 = vrot.lane.b32.xlu0 %v533, 16
      %v556 = vpop.permute.xlu0 %555
      %557 = vrot.lane.b32.xlu0 %v534, 16
      %v558 = vpop.permute.xlu0 %557
      %vm563 = vcmask 64512
      %v564 = vsel %vm563, %v518, %v536
      %v565 = vsel %vm563, %v519, %v538
      %v566 = vsel %vm563, %v520, %v540
      %v567 = vsel %vm563, %v521, %v542
      %vm568 = vcmask 130048
      %v569 = vsel %vm568, %v564, %v552
      %v570 = vsel %vm568, %v565, %v554
      %v571 = vsel %vm568, %v566, %v556
      %v572 = vsel %vm568, %v567, %v558
      %v573 = vld [vmem:[%s5] sm:$0xff]
      %v574 = vld [vmem:[%s5 + $0x8] sm:$0xff]
      %v575 = vld [vmem:[%s5 + $0x10] sm:$0xff]
      %v577 = vrot.slane %v486, 7
      %v579 = vsel %vm517, 0.0, %v577
      %v580 = vrot.slane %v486, 1
      %v582 = vsel %vm530, %v580, 0.0
      %583 = vrot.lane.b32.xlu0 %v486, 8
      %v584 = vpop.permute.xlu0 %583
      %587 = vrot.lane.b32.xlu0 %v582, 16
      %v588 = vpop.permute.xlu0 %587
      %v590 = vsel %vm563, %v579, %v584
      %v591 = vsel %vm568, %v590, %v588
      %s592 = scalar_lea.vmem %s5, 24
      %v593 = vld [vmem:[%s592] sm:$0xff]
      %v594 = vld [vmem:[%s592 + $0x8] sm:$0xff]
      %v595 = vld [vmem:[%s592 + $0x10] sm:$0xff]
      %vm596 = vcmask 195584
      %v598 = vsel %vm596, %v570, 0
      %v601 = vsel %vm596, %v571, 0
      %v604 = vsel %vm596, %v572, 0
      %v607 = vsel %vm596, %v591, 0
      %609 = vmatprep.subr.mxu0 0.0
      %610 = vmatpush1.msra.mxu0 %v593
      %611 = vmatprep.subr.mxu0 0.0
      %612 = vmatpush1.msra.mxu0 %v594
      %613 = vmatprep.subr.mxu0 0.0
      %614 = vmatpush1.msra.mxu0 %v595
      %615 = vmatprep.subr.mxu0 0.0
      %616 = vmatpush1.msra.mxu0 0.0
      %617 = vmatprep.subr.mxu0 0.0
      %618 = vmatpush1.msra.mxu0 0.0
      %619 = vmatprep.subr.mxu0 0.0
      %620 = vmatpush1.msra.mxu0 0.0
      %621 = vmatprep.subr.mxu0 0.0
      %622 = vmatpush1.msra.mxu0 0.0
      %623 = vmatprep.subr.mxu0 0.0
      %624 = vmatpush1.msra.mxu0 0.0
      %625 = vmatprep.subr.mxu0 0.0
      %626 = vmatpush1.msra.mxu0 0.0
      %627 = vmatprep.subr.mxu0 0.0
      %628 = vmatpush1.msra.mxu0 0.0
      %629 = vmatprep.subr.mxu0 0.0
      %630 = vmatpush1.msra.mxu0 0.0
      %631 = vmatprep.subr.mxu0 0.0
      %632 = vmatpush1.msra.mxu0 0.0
      %633 = vmatprep.subr.mxu0 0.0
      %634 = vmatpush1.msra.mxu0 0.0
      %635 = vmatprep.subr.mxu0 0.0
      %636 = vmatpush1.msra.mxu0 0.0
      %637 = vmatprep.subr.mxu0 0.0
      %638 = vmatpush1.msra.mxu0 0.0
      %639 = vmatprep.subr.mxu0 0.0
      %640 = vmatpush1.msra.mxu0 0.0
      %641 = vmatprep.subr.mxu0 0.0
      %642 = vmatpush1.msra.mxu0 0.0
      %643 = vmatprep.subr.mxu0 0.0
      %644 = vmatpush1.msra.mxu0 0.0
      %645 = vmatprep.subr.mxu0 0.0
      %646 = vmatpush1.msra.mxu0 0.0
      %647 = vmatprep.subr.mxu0 0.0
      %648 = vmatpush1.msra.mxu0 0.0
      %649 = vmatprep.subr.mxu0 0.0
      %650 = vmatpush1.msra.mxu0 0.0
      %651 = vmatprep.subr.mxu0 0.0
      %652 = vmatpush1.msra.mxu0 0.0
      %653 = vmatprep.subr.mxu0 0.0
      %654 = vmatpush1.msra.mxu0 0.0
      %655 = vmatprep.subr.mxu0 0.0
      %656 = vmatpush1.msra.mxu0 0.0
      %657 = vmatprep.subr.mxu0 0.0
      %658 = vmatpush1.msra.mxu0 0.0
      %659 = vmatprep.subr.mxu0 0.0
      %660 = vmatpush1.msra.mxu0 0.0
      %661 = vmatprep.subr.mxu0 0.0
      %662 = vmatpush1.msra.mxu0 0.0
      %663 = vmatprep.subr.mxu0 0.0
      %664 = vmatpush1.msra.mxu0 0.0
      %665 = vmatprep.subr.mxu0 0.0
      %666 = vmatpush1.msra.mxu0 0.0
      %667 = vmatprep.subr.mxu0 0.0
      %668 = vmatpush1.msra.mxu0 0.0
      %669 = vmatprep.subr.mxu0 0.0
      %670 = vmatpush1.msra.mxu0 0.0
      %671 = vmatprep.subr.mxu0 0.0
      %672 = vmatpush1.msra.mxu0 0.0
      %673 = vmatprep.mubr.f32.mxu0 0.0
      %674 = vmatmul.mubr.f32.gmra.mrb[0].mxu0 %v598
      %v675 = vpop.f32.mrb[0].mxu0
      %v676 = vadd.f32 0.0, %v675
      %v677 = vpop.f32.mrb[0].mxu0
      %678 = vmatprep.mubr.f32.mxu0 0.0
      %679 = vmatmul.mubr.f32.gmra.mrb[0].mxu0 %v601
      %v680 = vpop.f32.mrb[0].mxu0
      %v681 = vadd.f32 0.0, %v680
      %v682 = vpop.f32.mrb[0].mxu0
      %683 = vmatprep.mubr.f32.mxu0 0.0
      %684 = vmatmul.mubr.f32.gmra.mrb[0].mxu0 %v604
      %v685 = vpop.f32.mrb[0].mxu0
      %v686 = vadd.f32 0.0, %v685
      %v687 = vpop.f32.mrb[0].mxu0
      %688 = vmatprep.mubr.f32.mxu0 0.0
      %689 = vmatmul.mubr.f32.gmra.mrb[0].mxu0 %v607
      %v690 = vpop.f32.mrb[0].mxu0
      %v691 = vadd.f32 0.0, %v690
      %v692 = vpop.f32.mrb[0].mxu0
      %693 = vdwg.mxu0
      %v695 = vsel %vm596, %v569, 0
      %697 = vmatprep.subr.mxu0 0.0
      %698 = vmatpush1.msra.mxu0 %v573
      %699 = vmatprep.subr.mxu0 0.0
      %700 = vmatpush1.msra.mxu0 %v574
      %701 = vmatprep.subr.mxu0 0.0
      %702 = vmatpush1.msra.mxu0 %v575
      %703 = vmatprep.subr.mxu0 0.0
      %704 = vmatpush1.msra.mxu0 0.0
      %705 = vmatprep.subr.mxu0 0.0
      %706 = vmatpush1.msra.mxu0 0.0
      %707 = vmatprep.subr.mxu0 0.0
      %708 = vmatpush1.msra.mxu0 0.0
      %709 = vmatprep.subr.mxu0 0.0
      %710 = vmatpush1.msra.mxu0 0.0
      %711 = vmatprep.subr.mxu0 0.0
      %712 = vmatpush1.msra.mxu0 0.0
      %713 = vmatprep.subr.mxu0 0.0
      %714 = vmatpush1.msra.mxu0 0.0
      %715 = vmatprep.subr.mxu0 0.0
      %716 = vmatpush1.msra.mxu0 0.0
      %717 = vmatprep.subr.mxu0 0.0
      %718 = vmatpush1.msra.mxu0 0.0
      %719 = vmatprep.subr.mxu0 0.0
      %720 = vmatpush1.msra.mxu0 0.0
      %721 = vmatprep.subr.mxu0 0.0
      %722 = vmatpush1.msra.mxu0 0.0
      %723 = vmatprep.subr.mxu0 0.0
      %724 = vmatpush1.msra.mxu0 0.0
      %725 = vmatprep.subr.mxu0 0.0
      %726 = vmatpush1.msra.mxu0 0.0
      %727 = vmatprep.subr.mxu0 0.0
      %728 = vmatpush1.msra.mxu0 0.0
      %729 = vmatprep.subr.mxu0 0.0
      %730 = vmatpush1.msra.mxu0 0.0
      %731 = vmatprep.subr.mxu0 0.0
      %732 = vmatpush1.msra.mxu0 0.0
      %733 = vmatprep.subr.mxu0 0.0
      %734 = vmatpush1.msra.mxu0 0.0
      %735 = vmatprep.subr.mxu0 0.0
      %736 = vmatpush1.msra.mxu0 0.0
      %737 = vmatprep.subr.mxu0 0.0
      %738 = vmatpush1.msra.mxu0 0.0
      %739 = vmatprep.subr.mxu0 0.0
      %740 = vmatpush1.msra.mxu0 0.0
      %741 = vmatprep.subr.mxu0 0.0
      %742 = vmatpush1.msra.mxu0 0.0
      %743 = vmatprep.subr.mxu0 0.0
      %744 = vmatpush1.msra.mxu0 0.0
      %745 = vmatprep.subr.mxu0 0.0
      %746 = vmatpush1.msra.mxu0 0.0
      %747 = vmatprep.subr.mxu0 0.0
      %748 = vmatpush1.msra.mxu0 0.0
      %749 = vmatprep.subr.mxu0 0.0
      %750 = vmatpush1.msra.mxu0 0.0
      %751 = vmatprep.subr.mxu0 0.0
      %752 = vmatpush1.msra.mxu0 0.0
      %753 = vmatprep.subr.mxu0 0.0
      %754 = vmatpush1.msra.mxu0 0.0
      %755 = vmatprep.subr.mxu0 0.0
      %756 = vmatpush1.msra.mxu0 0.0
      %757 = vmatprep.subr.mxu0 0.0
      %758 = vmatpush1.msra.mxu0 0.0
      %759 = vmatprep.subr.mxu0 0.0
      %760 = vmatpush1.msra.mxu0 0.0
      %761 = vmatprep.mubr.f32.mxu0 0.0
      %762 = vmatmul.mubr.f32.gmra.mrb[0].mxu0 %v695
      %v763 = vpop.f32.mrb[0].mxu0
      %v764 = vadd.f32 %v676, %v763
      %v765 = vpop.f32.mrb[0].mxu0
      %766 = vmatprep.mubr.f32.mxu0 0.0
      %767 = vmatmul.mubr.f32.gmra.mrb[0].mxu0 %v598
      %v768 = vpop.f32.mrb[0].mxu0
      %v769 = vadd.f32 %v681, %v768
      %v770 = vpop.f32.mrb[0].mxu0
      %771 = vmatprep.mubr.f32.mxu0 0.0
      %772 = vmatmul.mubr.f32.gmra.mrb[0].mxu0 %v601
      %v773 = vpop.f32.mrb[0].mxu0
      %v774 = vadd.f32 %v686, %v773
      %v775 = vpop.f32.mrb[0].mxu0
      %776 = vmatprep.mubr.f32.mxu0 0.0
      %777 = vmatmul.mubr.f32.gmra.mrb[0].mxu0 %v604
      %v778 = vpop.f32.mrb[0].mxu0
      %v779 = vadd.f32 %v691, %v778
      %v780 = vpop.f32.mrb[0].mxu0
      %781 = vdwg.mxu0
      %v783 = vrot.slane %v504, 7
      %v785 = vsel %vm517, 0.0, %v783
      %v786 = vrot.slane %v504, 1
      %v788 = vsel %vm530, %v786, 0.0
      %789 = vrot.lane.b32.xlu0 %v504, 8
      %v790 = vpop.permute.xlu0 %789
      %793 = vrot.lane.b32.xlu0 %v788, 16
      %v794 = vpop.permute.xlu0 %793
      %v796 = vsel %vm563, %v785, %v790
      %v797 = vsel %vm568, %v796, %v794
      %s798 = scalar_lea.vmem %s5, 48
      %v799 = vld [vmem:[%s798] sm:$0xff]
      %v800 = vld [vmem:[%s798 + $0x8] sm:$0xff]
      %v801 = vld [vmem:[%s798 + $0x10] sm:$0xff]
      %v803 = vsel %vm596, %v797, 0
      %805 = vmatprep.subr.mxu0 0.0
      %806 = vmatpush1.msra.mxu0 %v799
      %807 = vmatprep.subr.mxu0 0.0
      %808 = vmatpush1.msra.mxu0 %v800
      %809 = vmatprep.subr.mxu0 0.0
      %810 = vmatpush1.msra.mxu0 %v801
      %811 = vmatprep.subr.mxu0 0.0
      %812 = vmatpush1.msra.mxu0 0.0
      %813 = vmatprep.subr.mxu0 0.0
      %814 = vmatpush1.msra.mxu0 0.0
      %815 = vmatprep.subr.mxu0 0.0
      %816 = vmatpush1.msra.mxu0 0.0
      %817 = vmatprep.subr.mxu0 0.0
      %818 = vmatpush1.msra.mxu0 0.0
      %819 = vmatprep.subr.mxu0 0.0
      %820 = vmatpush1.msra.mxu0 0.0
      %821 = vmatprep.subr.mxu0 0.0
      %822 = vmatpush1.msra.mxu0 0.0
      %823 = vmatprep.subr.mxu0 0.0
      %824 = vmatpush1.msra.mxu0 0.0
      %825 = vmatprep.subr.mxu0 0.0
      %826 = vmatpush1.msra.mxu0 0.0
      %827 = vmatprep.subr.mxu0 0.0
      %828 = vmatpush1.msra.mxu0 0.0
      %829 = vmatprep.subr.mxu0 0.0
      %830 = vmatpush1.msra.mxu0 0.0
      %831 = vmatprep.subr.mxu0 0.0
      %832 = vmatpush1.msra.mxu0 0.0
      %833 = vmatprep.subr.mxu0 0.0
      %834 = vmatpush1.msra.mxu0 0.0
      %835 = vmatprep.subr.mxu0 0.0
      %836 = vmatpush1.msra.mxu0 0.0
      %837 = vmatprep.subr.mxu0 0.0
      %838 = vmatpush1.msra.mxu0 0.0
      %839 = vmatprep.subr.mxu0 0.0
      %840 = vmatpush1.msra.mxu0 0.0
      %841 = vmatprep.subr.mxu0 0.0
      %842 = vmatpush1.msra.mxu0 0.0
      %843 = vmatprep.subr.mxu0 0.0
      %844 = vmatpush1.msra.mxu0 0.0
      %845 = vmatprep.subr.mxu0 0.0
      %846 = vmatpush1.msra.mxu0 0.0
      %847 = vmatprep.subr.mxu0 0.0
      %848 = vmatpush1.msra.mxu0 0.0
      %849 = vmatprep.subr.mxu0 0.0
      %850 = vmatpush1.msra.mxu0 0.0
      %851 = vmatprep.subr.mxu0 0.0
      %852 = vmatpush1.msra.mxu0 0.0
      %853 = vmatprep.subr.mxu0 0.0
      %854 = vmatpush1.msra.mxu0 0.0
      %855 = vmatprep.subr.mxu0 0.0
      %856 = vmatpush1.msra.mxu0 0.0
      %857 = vmatprep.subr.mxu0 0.0
      %858 = vmatpush1.msra.mxu0 0.0
      %859 = vmatprep.subr.mxu0 0.0
      %860 = vmatpush1.msra.mxu0 0.0
      %861 = vmatprep.subr.mxu0 0.0
      %862 = vmatpush1.msra.mxu0 0.0
      %863 = vmatprep.subr.mxu0 0.0
      %864 = vmatpush1.msra.mxu0 0.0
      %865 = vmatprep.subr.mxu0 0.0
      %866 = vmatpush1.msra.mxu0 0.0
      %867 = vmatprep.subr.mxu0 0.0
      %868 = vmatpush1.msra.mxu0 0.0
      %869 = vmatprep.mubr.f32.mxu0 0.0
      %870 = vmatmul.mubr.f32.gmra.mrb[0].mxu0 %v601
      %v871 = vpop.f32.mrb[0].mxu0
      %v872 = vadd.f32 0.0, %v871
      %v873 = vpop.f32.mrb[0].mxu0
      %874 = vmatprep.mubr.f32.mxu0 0.0
      %875 = vmatmul.mubr.f32.gmra.mrb[0].mxu0 %v604
      %v876 = vpop.f32.mrb[0].mxu0
      %v877 = vadd.f32 0.0, %v876
      %v878 = vpop.f32.mrb[0].mxu0
      %879 = vmatprep.mubr.f32.mxu0 0.0
      %880 = vmatmul.mubr.f32.gmra.mrb[0].mxu0 %v607
      %v881 = vpop.f32.mrb[0].mxu0
      %v882 = vadd.f32 0.0, %v881
      %v883 = vpop.f32.mrb[0].mxu0
      %884 = vmatprep.mubr.f32.mxu0 0.0
      %885 = vmatmul.mubr.f32.gmra.mrb[0].mxu0 %v803
      %v886 = vpop.f32.mrb[0].mxu0
      %v887 = vadd.f32 0.0, %v886
      %v888 = vpop.f32.mrb[0].mxu0
      %889 = vdwg.mxu0
      %v890 = vadd.f32 %v764, %v872
      %v891 = vadd.f32 %v769, %v877
      %v892 = vadd.f32 %v774, %v882
      %v893 = vadd.f32 %v779, %v887
      %894 = vst.msk [vmem:[%s447] sm:$0xff] %vm563, %v890
      %895 = vst.msk [vmem:[%s447 + $0x8] sm:$0xff] %vm563, %v891
      %896 = vst.msk [vmem:[%s447 + $0x10] sm:$0xff] %vm563, %v892
      %897 = vst.msk [vmem:[%s447 + $0x18] sm:$0xff] %vm563, %v893
      %v898 = vsel %vm563, %v890, 0.0
      %v899 = vsel %vm563, %v891, 0.0
      %v900 = vadd.f32 %v898, %v899
      %v901 = vsel %vm563, %v892, 0.0
      %v902 = vadd.f32 %v900, %v901
      %v903 = vsel %vm563, %v893, 0.0
      %v904 = vadd.f32 %v902, %v903
      %v905 = vrot.slane %v904, 4
      %v906 = vadd.f32 %v904, %v905
      %v907 = vrot.slane %v906, 2
      %v908 = vadd.f32 %v906, %v907
      %v909 = vrot.slane %v908, 1
      %v910 = vadd.f32 %v908, %v909
      %vm911 = vcmask 57344
      %912 = vst.msk [vmem:[%s456] sm:$0x1] %vm911, %v910
      %v913 = vmul.f32 %v890, %v890
      %v914 = vmul.f32 %v891, %v891
      %v915 = vmul.f32 %v892, %v892
      %v916 = vmul.f32 %v893, %v893
      %v917 = vsel %vm563, %v913, 0.0
      %v918 = vsel %vm563, %v914, 0.0
      %v919 = vadd.f32 %v917, %v918
      %v920 = vsel %vm563, %v915, 0.0
      %v921 = vadd.f32 %v919, %v920
      %v922 = vsel %vm563, %v916, 0.0
      %v923 = vadd.f32 %v921, %v922
      %v924 = vrot.slane %v923, 4
      %v925 = vadd.f32 %v923, %v924
      %v926 = vrot.slane %v925, 2
      %v927 = vadd.f32 %v925, %v926
      %v928 = vrot.slane %v927, 1
      %v929 = vadd.f32 %v927, %v928
      %930 = vst.msk [vmem:[%s456 + $0x1] sm:$0x1] %vm911, %v929
      %s931 = smul.u32 4, %s24
      %p932 = scmp.lt.s32.totalorder %s23, 1
      %s933 = scalar_select %p932, %s23, 1
      %p934 = scmp.lt.s32.totalorder %s931, 7
      %s935 = scalar_select %p934, %s931, 7
      %s936 = smul.addr %s933, 8
      %s937 = sadd.s32 %s935, %s936
      %s938 = smul.addr %s937, 8
      %s939 = scalar_lea.vmem %s6, %s938
      %p940 = scmp.lt.s32.totalorder %s23, 1
      %s941 = scalar_select %p940, %s23, 1
      %p942 = scmp.lt.s32.totalorder %s24, 1
      %s943 = scalar_select %p942, %s24, 1
      %s944 = smul.addr %s941, 2
      %s945 = sadd.s32 %s943, %s944
      %s946 = smul.addr %s945, 2
      %s947 = scalar_lea.vmem %s7, %s946
      // Predicated region
      $region45: #{down_forward.4} parent=43 // pred_check
        %p948 = pneg %p214
      $region46: #{down_forward.4} parent=43 // pred_check_branch
        %950 = sbr.rel (%p948) target = $region48
      $region47: #{down_forward.4} parent=43 // pred_region
        %s951 = smul.u32 4, %s24
      $region48: #{down_forward.4} parent=43 // pred_fallthru
        _
      // Predicated region
      $region49: #{down_forward.4} parent=43 // pred_check
        %p952 = pneg %p242
      $region50: #{down_forward.4} parent=43 // pred_check_branch
        %954 = sbr.rel (%p952) target = $region52
      $region51: #{down_forward.4} parent=43 // pred_region
        _
      $region52: #{down_forward.4} parent=43 // pred_fallthru
        _
    $region44: #{down_forward.4} parent=5 // pred_fallthru
      _
    %p955 = scmp.le.s32.totalorder 2, %s14
    // Predicated region
    $region53: #{down_forward.4} parent=5 // pred_check
      %p956 = pneg %p955
    $region54: #{down_forward.4} parent=5 // pred_check_branch
      %958 = sbr.rel (%p956) target = $region56
    $region55: #{down_forward.4} parent=5 // pred_region
      %s959 = ssub.s32 %s14, 2
      // Predicated region
      $region57: #{down_forward.4} parent=55 // pred_check
        %p960 = pneg %p220
      $region58: #{down_forward.4} parent=55 // pred_check_branch
        %962 = sbr.rel (%p960) target = $region60
      $region59: #{down_forward.4} parent=55 // pred_region
        %s963 = smul.u32 4, %s26
        %p964 = scmp.lt.s32.totalorder %s25, 1
        %s965 = scalar_select %p964, %s25, 1
        %p966 = scmp.lt.s32.totalorder %s963, 7
        %s967 = scalar_select %p966, %s963, 7
        %s968 = smul.addr %s965, 8
        %s969 = sadd.s32 %s967, %s968
        %s970 = smul.addr %s969, 8
        %s971 = scalar_lea.vmem %s6, %s970
      $region60: #{down_forward.4} parent=55 // pred_fallthru
        _
      // Predicated region
      $region61: #{down_forward.4} parent=55 // pred_check
        %p972 = pneg %p248
      $region62: #{down_forward.4} parent=55 // pred_check_branch
        %974 = sbr.rel (%p972) target = $region64
      $region63: #{down_forward.4} parent=55 // pred_region
        %p975 = scmp.lt.s32.totalorder %s25, 1
        %s976 = scalar_select %p975, %s25, 1
        %p977 = scmp.lt.s32.totalorder %s26, 1
        %s978 = scalar_select %p977, %s26, 1
        %s979 = smul.addr %s976, 2
        %s980 = sadd.s32 %s978, %s979
        %s981 = smul.addr %s980, 2
        %s982 = scalar_lea.vmem %s7, %s981
      $region64: #{down_forward.4} parent=55 // pred_fallthru
        _
    $region56: #{down_forward.4} parent=5 // pred_fallthru
      _
  $region6: #{down_forward.4} parent=0 // loop_footer
    %s18 = sadd.s32 1, %s14
  $region7: #{down_forward.4} parent=0 // loop_footer_branch
    %13 = sbr.rel target = $region3
  $region8: #{down_forward.4} parent=0 // loop_exit
    _

// kernel: down_forward.3
$region0: #{down_forward.3}
  #allocation0 [shape = 'u32[]', space=smem, size = 0x4, offset = 0x4, fixed_abs, tag = 'smem constant byte address 0x4 - core index']
  #allocation1 [shape = 'u32[144,128]{1,0:T(1,128)}', space=vmem, size = 0x12000, scoped, tag = 'internal scratch']
  %s0 = inlined_call_operand.vmem [shape: f32[2,8,2,8,2,4], index: 0, kind: input, shape index: {}, may-alias: {0,1,2}]
  %s1 = inlined_call_operand.vmem [shape: f32[2,8,2,8,2,4], index: 1, kind: input, shape index: {}, may-alias: {0,1,2}]
  %s2 = inlined_call_operand.vmem [shape: f32[2,8,2,8,2,4], index: 2, kind: input, shape index: {}, may-alias: {0,1,2}]
  %s3 = inlined_call_operand.vmem [shape: f32[3,12,8], index: 3, kind: input, shape index: {}]
  %s4 = inlined_call_operand.vmem [shape: f32[2,8,8,8], index: 4, kind: output, shape index: {0}]
  %s5 = inlined_call_operand.vmem [shape: f32[2,2,2,8], index: 5, kind: output, shape index: {1}]
  %6 = xla_tuple %s4, %s5
  %s7 = sld [smem:[#allocation0]]
  $region57: #{down_forward.3} parent=0
    _
  %s9 = ssub.s32 1, %s7
  %s10 = scalar_select 0, %s9, %s7
  loop: start=0, step=1, limit=6
  $region2: #{down_forward.3} parent=0 // loop_pre_header
    _
  $region3: #{down_forward.3} parent=0 // loop_header
    %s12 = sphi 0, %s16
    %p13 = scmp.ge.s32.totalorder %s12, 6
    %s19 = sphi 0, %s31
    %s20 = sphi 0, %s27
    %s21 = sphi 0, %s19
    %s22 = sphi 0, %s20
    %s23 = sphi 0, %s21
    %s24 = sphi 0, %s22
    %s36 = sphi 0, %s38
    %s39 = sphi 0, %s36
    %s40 = sphi 0, %s39
    %s56 = sphi 0, %s40
    %s72 = sphi 0, %s74
    %s75 = sphi 0, %s72
    %s76 = sphi 0, %s75
    %s92 = sphi 0, %s76
    %s108 = sphi 0, %s110
    %s111 = sphi 0, %s108
    %s112 = sphi 0, %s111
    %s128 = sphi 0, %s112
    %s132 = sphi 0, %s132
    %s134 = sphi 0, %s132
    %s135 = sphi 0, %s134
    %s149 = sphi 0, %s135
    %s157 = sphi 0, %s159
    %s160 = sphi 0, %s157
    %s161 = sphi 0, %s160
    %s177 = sphi 0, %s161
    %s185 = sphi 0, %s187
    %s188 = sphi 0, %s185
    %s189 = sphi 0, %s188
    %s205 = sphi 0, %s189
  $region4: #{down_forward.3} parent=0 // loop_header_branch
    %15 = sbr.rel (%p13) target = $region8
  $region5: #{down_forward.3} parent=0 // loop_body
    %s17 = ssub.s32 %s12, 1
    %s18 = ssub.s32 %s12, 2
    %s25 = sadd.s32 1, %s20
    %p26 = scmp.ge.s32.totalorder %s25, 2
    %s27 = scalar_select %p26, 0, %s25
    %s28 = sadd.s32 1, %s19
    %s29 = scalar_select %p26, %s28, %s19
    %p30 = scmp.ge.s32.totalorder %s29, 2
    %s31 = scalar_select %p30, 0, %s29
    %s32 = ssub.s32 %s19, %s31
    %s33 = ssub.s32 %s20, %s27
    %s34 = sor.u32 %s32, %s33
    %p35 = scmp.eq.s32.totalorder %s34, 0
    %s37 = sadd.s32 %s36, 1
    %s38 = scalar_select %p35, %s36, %s37
    %p41 = pneg %p35
    %p42 = scmp.eq.s32.totalorder %s12, 3
    %p43 = por %p41, %p42
    %p44 = scmp.ne.s32.totalorder %s36, %s39
    %p45 = scmp.eq.s32.totalorder %s12, 0
    %p46 = por %p44, %p45
    %p47 = scmp.ne.s32.totalorder %s36, %s39
    %p48 = scmp.eq.s32.totalorder %s17, 3
    %p49 = por %p47, %p48
    %p50 = scmp.ne.s32.totalorder %s39, %s40
    %p51 = scmp.eq.s32.totalorder %s17, 0
    %p52 = por %p50, %p51
    %p53 = scmp.ne.s32.totalorder %s39, %s40
    %p54 = scmp.eq.s32.totalorder %s18, 3
    %p55 = por %p53, %p54
    %p57 = scmp.ne.s32.totalorder %s40, %s56
    %p58 = scmp.eq.s32.totalorder %s18, 0
    %p59 = por %p57, %p58
    %s60 = smul.u32 %s20, 4
    %s61 = ssub.s32 %s60, 1
    %p62 = scmp.gt.s32.totalorder %s61, 0
    %s63 = scalar_select %p62, %s61, 0
    %s64 = smul.u32 %s27, 4
    %s65 = ssub.s32 %s64, 1
    %p66 = scmp.gt.s32.totalorder %s65, 0
    %s67 = scalar_select %p66, %s65, 0
    %s68 = ssub.s32 %s19, %s31
    %s69 = ssub.s32 %s63, %s67
    %s70 = sor.u32 %s68, %s69
    %p71 = scmp.eq.s32.totalorder %s70, 0
    %s73 = sadd.s32 %s72, 1
    %s74 = scalar_select %p71, %s72, %s73
    %p77 = pneg %p71
    %p78 = scmp.eq.s32.totalorder %s12, 3
    %p79 = por %p77, %p78
    %p80 = scmp.ne.s32.totalorder %s72, %s75
    %p81 = scmp.eq.s32.totalorder %s12, 0
    %p82 = por %p80, %p81
    %p83 = scmp.ne.s32.totalorder %s72, %s75
    %p84 = scmp.eq.s32.totalorder %s17, 3
    %p85 = por %p83, %p84
    %p86 = scmp.ne.s32.totalorder %s75, %s76
    %p87 = scmp.eq.s32.totalorder %s17, 0
    %p88 = por %p86, %p87
    %p89 = scmp.ne.s32.totalorder %s75, %s76
    %p90 = scmp.eq.s32.totalorder %s18, 3
    %p91 = por %p89, %p90
    %p93 = scmp.ne.s32.totalorder %s76, %s92
    %p94 = scmp.eq.s32.totalorder %s18, 0
    %p95 = por %p93, %p94
    %s96 = sadd.s32 %s20, 1
    %s97 = smul.u32 %s96, 4
    %p98 = scmp.lt.s32.totalorder %s97, 7
    %s99 = scalar_select %p98, %s97, 7
    %s100 = sadd.s32 %s27, 1
    %s101 = smul.u32 %s100, 4
    %p102 = scmp.lt.s32.totalorder %s101, 7
    %s103 = scalar_select %p102, %s101, 7
    %s104 = ssub.s32 %s19, %s31
    %s105 = ssub.s32 %s99, %s103
    %s106 = sor.u32 %s104, %s105
    %p107 = scmp.eq.s32.totalorder %s106, 0
    %s109 = sadd.s32 %s108, 1
    %s110 = scalar_select %p107, %s108, %s109
    %p113 = pneg %p107
    %p114 = scmp.eq.s32.totalorder %s12, 3
    %p115 = por %p113, %p114
    %p116 = scmp.ne.s32.totalorder %s108, %s111
    %p117 = scmp.eq.s32.totalorder %s12, 0
    %p118 = por %p116, %p117
    %p119 = scmp.ne.s32.totalorder %s108, %s111
    %p120 = scmp.eq.s32.totalorder %s17, 3
    %p121 = por %p119, %p120
    %p122 = scmp.ne.s32.totalorder %s111, %s112
    %p123 = scmp.eq.s32.totalorder %s17, 0
    %p124 = por %p122, %p123
    %p125 = scmp.ne.s32.totalorder %s111, %s112
    %p126 = scmp.eq.s32.totalorder %s18, 3
    %p127 = por %p125, %p126
    %p129 = scmp.ne.s32.totalorder %s112, %s128
    %p130 = scmp.eq.s32.totalorder %s18, 0
    %p131 = por %p129, %p130
    %s133 = sadd.s32 %s132, 1
    %p136 = scmp.eq.s32.totalorder %s12, 3
    %p137 = scmp.ne.s32.totalorder %s132, %s134
    %p138 = scmp.eq.s32.totalorder %s12, 0
    %p139 = por %p137, %p138
    %p140 = scmp.ne.s32.totalorder %s132, %s134
    %p141 = scmp.eq.s32.totalorder %s17, 3
    %p142 = por %p140, %p141
    %p143 = scmp.ne.s32.totalorder %s134, %s135
    %p144 = scmp.eq.s32.totalorder %s17, 0
    %p145 = por %p143, %p144
    %p146 = scmp.ne.s32.totalorder %s134, %s135
    %p147 = scmp.eq.s32.totalorder %s18, 3
    %p148 = por %p146, %p147
    %p150 = scmp.ne.s32.totalorder %s135, %s149
    %p151 = scmp.eq.s32.totalorder %s18, 0
    %p152 = por %p150, %p151
    %s153 = ssub.s32 %s19, %s31
    %s154 = ssub.s32 %s20, %s27
    %s155 = sor.u32 %s153, %s154
    %p156 = scmp.eq.s32.totalorder %s155, 0
    %s158 = sadd.s32 %s157, 1
    %s159 = scalar_select %p156, %s157, %s158
    %p162 = pneg %p156
    %p163 = scmp.eq.s32.totalorder %s12, 3
    %p164 = por %p162, %p163
    %p165 = scmp.ne.s32.totalorder %s157, %s160
    %p166 = scmp.eq.s32.totalorder %s12, 0
    %p167 = por %p165, %p166
    %p168 = scmp.ne.s32.totalorder %s157, %s160
    %p169 = scmp.eq.s32.totalorder %s17, 3
    %p170 = por %p168, %p169
    %p171 = scmp.ne.s32.totalorder %s160, %s161
    %p172 = scmp.eq.s32.totalorder %s17, 0
    %p173 = por %p171, %p172
    %p174 = scmp.ne.s32.totalorder %s160, %s161
    %p175 = scmp.eq.s32.totalorder %s18, 3
    %p176 = por %p174, %p175
    %p178 = scmp.ne.s32.totalorder %s161, %s177
    %p179 = scmp.eq.s32.totalorder %s18, 0
    %p180 = por %p178, %p179
    %s181 = ssub.s32 %s19, %s31
    %s182 = ssub.s32 %s20, %s27
    %s183 = sor.u32 %s181, %s182
    %p184 = scmp.eq.s32.totalorder %s183, 0
    %s186 = sadd.s32 %s185, 1
    %s187 = scalar_select %p184, %s185, %s186
    %p190 = pneg %p184
    %p191 = scmp.eq.s32.totalorder %s12, 3
    %p192 = por %p190, %p191
    %p193 = scmp.ne.s32.totalorder %s185, %s188
    %p194 = scmp.eq.s32.totalorder %s12, 0
    %p195 = por %p193, %p194
    %p196 = scmp.ne.s32.totalorder %s185, %s188
    %p197 = scmp.eq.s32.totalorder %s17, 3
    %p198 = por %p196, %p197
    %p199 = scmp.ne.s32.totalorder %s188, %s189
    %p200 = scmp.eq.s32.totalorder %s17, 0
    %p201 = por %p199, %p200
    %p202 = scmp.ne.s32.totalorder %s188, %s189
    %p203 = scmp.eq.s32.totalorder %s18, 3
    %p204 = por %p202, %p203
    %p206 = scmp.ne.s32.totalorder %s189, %s205
    %p207 = scmp.eq.s32.totalorder %s18, 0
    %p208 = por %p206, %p207
    %p209 = scmp.le.s32.totalorder 1, %s12
    %p210 = scmp.lt.s32.totalorder %s12, 5
    %p211 = pnand %p209, %p210
    %p212 = pneg %p211
    // Predicated region
    $region9: #{down_forward.3} parent=5 // pred_check
      _
    $region10: #{down_forward.3} parent=5 // pred_check_branch
      %214 = sbr.rel (%p211) target = $region12
    $region11: #{down_forward.3} parent=5 // pred_region
      %s215 = ssub.s32 %s12, 1
      // Predicated region
      $region13: #{down_forward.3} parent=11 // pred_check
        %p216 = pneg %p145
      $region14: #{down_forward.3} parent=11 // pred_check_branch
        %218 = sbr.rel (%p216) target = $region16
      $region15: #{down_forward.3} parent=11 // pred_region
        _
      $region16: #{down_forward.3} parent=11 // pred_fallthru
        _
    $region12: #{down_forward.3} parent=5 // pred_fallthru
      _
    %p219 = scmp.lt.s32.totalorder %s12, 4
    // Predicated region
    $region17: #{down_forward.3} parent=5 // pred_check
      %p220 = pneg %p219
    $region18: #{down_forward.3} parent=5 // pred_check_branch
      %222 = sbr.rel (%p220) target = $region20
    $region19: #{down_forward.3} parent=5 // pred_region
      // Predicated region
      $region21: #{down_forward.3} parent=19 // pred_check
        %p223 = pneg %p46
      $region22: #{down_forward.3} parent=19 // pred_check_branch
        %225 = sbr.rel (%p223) target = $region24
      $region23: #{down_forward.3} parent=19 // pred_region
        %s226 = smul.u32 4, %s20
        %p227 = scmp.lt.s32.totalorder %s19, 1
        %s228 = scalar_select %p227, %s19, 1
        %p229 = scmp.lt.s32.totalorder %s226, 7
        %s230 = scalar_select %p229, %s226, 7
        %s231 = smul.addr %s230, 16
        %s232 = smul.addr %s228, 128
        %s233 = sadd.s32 %s231, %s232
        %s234 = smul.addr %s233, 2
        %s235 = scalar_lea.vmem %s0, %s234
        %s236 = smul.u32 4, %s20
      $region24: #{down_forward.3} parent=19 // pred_fallthru
        _
      // Predicated region
      $region25: #{down_forward.3} parent=19 // pred_check
        %p237 = pneg %p82
      $region26: #{down_forward.3} parent=19 // pred_check_branch
        %239 = sbr.rel (%p237) target = $region28
      $region27: #{down_forward.3} parent=19 // pred_region
        %s240 = smul.u32 %s20, 4
        %s241 = ssub.s32 %s240, 1
        %p242 = scmp.gt.s32.totalorder %s241, 0
        %s243 = scalar_select %p242, %s241, 0
        %p244 = scmp.lt.s32.totalorder %s19, 1
        %s245 = scalar_select %p244, %s19, 1
        %p246 = scmp.lt.s32.totalorder %s243, 7
        %s247 = scalar_select %p246, %s243, 7
        %s248 = smul.addr %s247, 16
        %s249 = smul.addr %s245, 128
        %s250 = sadd.s32 %s248, %s249
        %s251 = smul.addr %s250, 2
        %s252 = scalar_lea.vmem %s1, %s251
        %s253 = smul.u32 %s20, 4
        %s254 = ssub.s32 %s253, 1
        %p255 = scmp.gt.s32.totalorder %s254, 0
        %s256 = scalar_select %p255, %s254, 0
      $region28: #{down_forward.3} parent=19 // pred_fallthru
        _
      // Predicated region
      $region29: #{down_forward.3} parent=19 // pred_check
        %p257 = pneg %p118
      $region30: #{down_forward.3} parent=19 // pred_check_branch
        %259 = sbr.rel (%p257) target = $region32
      $region31: #{down_forward.3} parent=19 // pred_region
        %s260 = sadd.s32 %s20, 1
        %s261 = smul.u32 %s260, 4
        %p262 = scmp.lt.s32.totalorder %s261, 7
        %s263 = scalar_select %p262, %s261, 7
        %p264 = scmp.lt.s32.totalorder %s19, 1
        %s265 = scalar_select %p264, %s19, 1
        %p266 = scmp.lt.s32.totalorder %s263, 7
        %s267 = scalar_select %p266, %s263, 7
        %s268 = smul.addr %s267, 16
        %s269 = smul.addr %s265, 128
        %s270 = sadd.s32 %s268, %s269
        %s271 = smul.addr %s270, 2
        %s272 = scalar_lea.vmem %s2, %s271
        %s273 = sadd.s32 %s20, 1
        %s274 = smul.u32 %s273, 4
        %p275 = scmp.lt.s32.totalorder %s274, 7
        %s276 = scalar_select %p275, %s274, 7
      $region32: #{down_forward.3} parent=19 // pred_fallthru
        _
    $region20: #{down_forward.3} parent=5 // pred_fallthru
      _
    %p277 = scmp.le.s32.totalorder 1, %s12
    %p278 = scmp.lt.s32.totalorder %s12, 5
    %p279 = pnand %p277, %p278
    %p280 = pneg %p279
    // Predicated region
    $region33: #{down_forward.3} parent=5 // pred_check
      _
    $region34: #{down_forward.3} parent=5 // pred_check_branch
      %282 = sbr.rel (%p279) target = $region36
    $region35: #{down_forward.3} parent=5 // pred_region
      %s283 = ssub.s32 %s12, 1
      %s284 = smul.u32 4, %s22
      %p285 = scmp.lt.s32.totalorder %s21, 1
      %s286 = scalar_select %p285, %s21, 1
      %p287 = scmp.lt.s32.totalorder %s284, 7
      %s288 = scalar_select %p287, %s284, 7
      %s289 = smul.addr %s288, 16
      %s290 = smul.addr %s286, 128
      %s291 = sadd.s32 %s289, %s290
      %s292 = smul.addr %s291, 2
      %s293 = scalar_lea.vmem %s0, %s292
      %p294 = pneg %p52
      %p295 = pneg %p49
      %s296 = smul.u32 %s22, 4
      %s297 = ssub.s32 %s296, 1
      %p298 = scmp.gt.s32.totalorder %s297, 0
      %s299 = scalar_select %p298, %s297, 0
      %p300 = scmp.lt.s32.totalorder %s21, 1
      %s301 = scalar_select %p300, %s21, 1
      %p302 = scmp.lt.s32.totalorder %s299, 7
      %s303 = scalar_select %p302, %s299, 7
      %s304 = smul.addr %s303, 16
      %s305 = smul.addr %s301, 128
      %s306 = sadd.s32 %s304, %s305
      %s307 = smul.addr %s306, 2
      %s308 = scalar_lea.vmem %s1, %s307
      %p309 = pneg %p88
      %p310 = pneg %p85
      %s311 = sadd.s32 %s22, 1
      %s312 = smul.u32 %s311, 4
      %p313 = scmp.lt.s32.totalorder %s312, 7
      %s314 = scalar_select %p313, %s312, 7
      %p315 = scmp.lt.s32.totalorder %s21, 1
      %s316 = scalar_select %p315, %s21, 1
      %p317 = scmp.lt.s32.totalorder %s314, 7
      %s318 = scalar_select %p317, %s314, 7
      %s319 = smul.addr %s318, 16
      %s320 = smul.addr %s316, 128
      %s321 = sadd.s32 %s319, %s320
      %s322 = smul.addr %s321, 2
      %s323 = scalar_lea.vmem %s2, %s322
      %p324 = pneg %p124
      %p325 = pneg %p121
      %p326 = pneg %p145
      %p327 = pneg %p142
      %p328 = pneg %p173
      %p329 = pneg %p170
      %s330 = smul.u32 4, %s22
      %p331 = scmp.lt.s32.totalorder %s21, 1
      %s332 = scalar_select %p331, %s21, 1
      %p333 = scmp.lt.s32.totalorder %s330, 7
      %s334 = scalar_select %p333, %s330, 7
      %s335 = smul.addr %s332, 8
      %s336 = sadd.s32 %s334, %s335
      %s337 = smul.addr %s336, 8
      %s338 = scalar_lea.vmem %s4, %s337
      %p339 = pneg %p201
      %p340 = pneg %p198
      %p341 = scmp.lt.s32.totalorder %s21, 1
      %s342 = scalar_select %p341, %s21, 1
      %p343 = scmp.lt.s32.totalorder %s22, 1
      %s344 = scalar_select %p343, %s22, 1
      %s345 = smul.addr %s342, 2
      %s346 = sadd.s32 %s344, %s345
      %s347 = smul.addr %s346, 2
      %s348 = scalar_lea.vmem %s5, %s347
      %s349 = smul.u32 4, %s22
      %p350 = scmp.lt.s32.totalorder %s21, 1
      %s351 = scalar_select %p350, %s21, 1
      %p352 = scmp.lt.s32.totalorder %s349, 7
      %s353 = scalar_select %p352, %s349, 7
      %s354 = smul.addr %s353, 16
      %s355 = smul.addr %s351, 128
      %s356 = sadd.s32 %s354, %s355
      %s357 = smul.addr %s356, 2
      %s358 = scalar_lea.vmem %s0, %s357
      %s359 = smul.u32 4, %s22
      %s360 = smul.u32 %s22, 4
      %s361 = ssub.s32 %s360, 1
      %p362 = scmp.gt.s32.totalorder %s361, 0
      %s363 = scalar_select %p362, %s361, 0
      %p364 = scmp.lt.s32.totalorder %s21, 1
      %s365 = scalar_select %p364, %s21, 1
      %p366 = scmp.lt.s32.totalorder %s363, 7
      %s367 = scalar_select %p366, %s363, 7
      %s368 = smul.addr %s367, 16
      %s369 = smul.addr %s365, 128
      %s370 = sadd.s32 %s368, %s369
      %s371 = smul.addr %s370, 2
      %s372 = scalar_lea.vmem %s1, %s371
      %s373 = smul.u32 %s22, 4
      %s374 = ssub.s32 %s373, 1
      %p375 = scmp.gt.s32.totalorder %s374, 0
      %s376 = scalar_select %p375, %s374, 0
      %s377 = sadd.s32 %s22, 1
      %s378 = smul.u32 %s377, 4
      %p379 = scmp.lt.s32.totalorder %s378, 7
      %s380 = scalar_select %p379, %s378, 7
      %p381 = scmp.lt.s32.totalorder %s21, 1
      %s382 = scalar_select %p381, %s21, 1
      %p383 = scmp.lt.s32.totalorder %s380, 7
      %s384 = scalar_select %p383, %s380, 7
      %s385 = smul.addr %s384, 16
      %s386 = smul.addr %s382, 128
      %s387 = sadd.s32 %s385, %s386
      %s388 = smul.addr %s387, 2
      %s389 = scalar_lea.vmem %s2, %s388
      %s390 = sadd.s32 %s22, 1
      %s391 = smul.u32 %s390, 4
      %p392 = scmp.lt.s32.totalorder %s391, 7
      %s393 = scalar_select %p392, %s391, 7
      %s394 = smul.u32 4, %s22
      %p395 = scmp.lt.s32.totalorder %s21, 1
      %s396 = scalar_select %p395, %s21, 1
      %p397 = scmp.lt.s32.totalorder %s394, 7
      %s398 = scalar_select %p397, %s394, 7
      %s399 = smul.addr %s396, 8
      %s400 = sadd.s32 %s398, %s399
      %s401 = smul.addr %s400, 8
      %s402 = scalar_lea.vmem %s4, %s401
      %s403 = smul.u32 4, %s22
      %p404 = scmp.lt.s32.totalorder %s21, 1
      %s405 = scalar_select %p404, %s21, 1
      %p406 = scmp.lt.s32.totalorder %s22, 1
      %s407 = scalar_select %p406, %s22, 1
      %s408 = smul.addr %s405, 2
      %s409 = sadd.s32 %s407, %s408
      %s410 = smul.addr %s409, 2
      %s411 = scalar_lea.vmem %s5, %s410
      %v412 = vld [vmem:[%s358] sm:$0x3]
      %v413 = vld [vmem:[%s358 + $0x2] sm:$0x3]
      %v414 = vld [vmem:[%s358 + $0x4] sm:$0x3]
      %v415 = vld [vmem:[%s358 + $0x6] sm:$0x3]
      %v416 = vld [vmem:[%s358 + $0x8] sm:$0x3]
      %v417 = vld [vmem:[%s358 + $0xa] sm:$0x3]
      %v418 = vld [vmem:[%s358 + $0xc] sm:$0x3]
      %v419 = vld [vmem:[%s358 + $0xe] sm:$0x3]
      %v420 = vld [vmem:[%s358 + $0x10] sm:$0x3]
      %v421 = vld [vmem:[%s358 + $0x12] sm:$0x3]
      %v422 = vld [vmem:[%s358 + $0x14] sm:$0x3]
      %v423 = vld [vmem:[%s358 + $0x16] sm:$0x3]
      %v424 = vld [vmem:[%s358 + $0x18] sm:$0x3]
      %v425 = vld [vmem:[%s358 + $0x1a] sm:$0x3]
      %v426 = vld [vmem:[%s358 + $0x1c] sm:$0x3]
      %v427 = vld [vmem:[%s358 + $0x1e] sm:$0x3]
      %v428 = vld [vmem:[%s358 + $0x20] sm:$0x3]
      %v429 = vld [vmem:[%s358 + $0x22] sm:$0x3]
      %v430 = vld [vmem:[%s358 + $0x24] sm:$0x3]
      %v431 = vld [vmem:[%s358 + $0x26] sm:$0x3]
      %v432 = vld [vmem:[%s358 + $0x28] sm:$0x3]
      %v433 = vld [vmem:[%s358 + $0x2a] sm:$0x3]
      %v434 = vld [vmem:[%s358 + $0x2c] sm:$0x3]
      %v435 = vld [vmem:[%s358 + $0x2e] sm:$0x3]
      %v436 = vld [vmem:[%s358 + $0x30] sm:$0x3]
      %v437 = vld [vmem:[%s358 + $0x32] sm:$0x3]
      %v438 = vld [vmem:[%s358 + $0x34] sm:$0x3]
      %v439 = vld [vmem:[%s358 + $0x36] sm:$0x3]
      %v440 = vld [vmem:[%s358 + $0x38] sm:$0x3]
      %v441 = vld [vmem:[%s358 + $0x3a] sm:$0x3]
      %v442 = vld [vmem:[%s358 + $0x3c] sm:$0x3]
      %v443 = vld [vmem:[%s358 + $0x3e] sm:$0x3]
      %v444 = vld [vmem:[%s358 + $0x40] sm:$0x3]
      %v445 = vld [vmem:[%s358 + $0x42] sm:$0x3]
      %v446 = vld [vmem:[%s358 + $0x44] sm:$0x3]
      %v447 = vld [vmem:[%s358 + $0x46] sm:$0x3]
      %v448 = vld [vmem:[%s358 + $0x48] sm:$0x3]
      %v449 = vld [vmem:[%s358 + $0x4a] sm:$0x3]
      %v450 = vld [vmem:[%s358 + $0x4c] sm:$0x3]
      %v451 = vld [vmem:[%s358 + $0x4e] sm:$0x3]
      %v452 = vld [vmem:[%s358 + $0x50] sm:$0x3]
      %v453 = vld [vmem:[%s358 + $0x52] sm:$0x3]
      %v454 = vld [vmem:[%s358 + $0x54] sm:$0x3]
      %v455 = vld [vmem:[%s358 + $0x56] sm:$0x3]
      %v456 = vld [vmem:[%s358 + $0x58] sm:$0x3]
      %v457 = vld [vmem:[%s358 + $0x5a] sm:$0x3]
      %v458 = vld [vmem:[%s358 + $0x5c] sm:$0x3]
      %v459 = vld [vmem:[%s358 + $0x5e] sm:$0x3]
      %v460 = vld [vmem:[%s358 + $0x60] sm:$0x3]
      %v461 = vld [vmem:[%s358 + $0x62] sm:$0x3]
      %v462 = vld [vmem:[%s358 + $0x64] sm:$0x3]
      %v463 = vld [vmem:[%s358 + $0x66] sm:$0x3]
      %v464 = vld [vmem:[%s358 + $0x68] sm:$0x3]
      %v465 = vld [vmem:[%s358 + $0x6a] sm:$0x3]
      %v466 = vld [vmem:[%s358 + $0x6c] sm:$0x3]
      %v467 = vld [vmem:[%s358 + $0x6e] sm:$0x3]
      %v468 = vld [vmem:[%s358 + $0x70] sm:$0x3]
      %v469 = vld [vmem:[%s358 + $0x72] sm:$0x3]
      %v470 = vld [vmem:[%s358 + $0x74] sm:$0x3]
      %v471 = vld [vmem:[%s358 + $0x76] sm:$0x3]
      %v472 = vld [vmem:[%s358 + $0x78] sm:$0x3]
      %v473 = vld [vmem:[%s358 + $0x7a] sm:$0x3]
      %v474 = vld [vmem:[%s358 + $0x7c] sm:$0x3]
      %v475 = vld [vmem:[%s358 + $0x7e] sm:$0x3]
      %vm476 = vcmask 25600
      %v477 = vsel %vm476, %v412, -inf
      %v478 = vrot.slane %v477, 4
      %v479 = vmax.f32 %v477, %v478
      %v480 = vrot.slane %v479, 2
      %v481 = vmax.f32 %v479, %v480
      %v482 = vrot.slane %v481, 1
      %v483 = vmax.f32 %v481, %v482
      %v484 = vsel %vm476, %v413, -inf
      %v485 = vrot.slane %v484, 4
      %v486 = vmax.f32 %v484, %v485
      %v487 = vrot.slane %v486, 2
      %v488 = vmax.f32 %v486, %v487
      %v489 = vrot.slane %v488, 1
      %v490 = vmax.f32 %v488, %v489
      %v491 = vsel %vm476, %v414, -inf
      %v492 = vrot.slane %v491, 4
      %v493 = vmax.f32 %v491, %v492
      %v494 = vrot.slane %v493, 2
      %v495 = vmax.f32 %v493, %v494
      %v496 = vrot.slane %v495, 1
      %v497 = vmax.f32 %v495, %v496
      %v498 = vsel %vm476, %v415, -inf
      %v499 = vrot.slane %v498, 4
      %v500 = vmax.f32 %v498, %v499
      %v501 = vrot.slane %v500, 2
      %v502 = vmax.f32 %v500, %v501
      %v503 = vrot.slane %v502, 1
      %v504 = vmax.f32 %v502, %v503
      %v505 = vsel %vm476, %v416, -inf
      %v506 = vrot.slane %v505, 4
      %v507 = vmax.f32 %v505, %v506
      %v508 = vrot.slane %v507, 2
      %v509 = vmax.f32 %v507, %v508
      %v510 = vrot.slane %v509, 1
      %v511 = vmax.f32 %v509, %v510
      %v512 = vsel %vm476, %v417, -inf
      %v513 = vrot.slane %v512, 4
      %v514 = vmax.f32 %v512, %v513
      %v515 = vrot.slane %v514, 2
      %v516 = vmax.f32 %v514, %v515
      %v517 = vrot.slane %v516, 1
      %v518 = vmax.f32 %v516, %v517
      %v519 = vsel %vm476, %v418, -inf
      %v520 = vrot.slane %v519, 4
      %v521 = vmax.f32 %v519, %v520
      %v522 = vrot.slane %v521, 2
      %v523 = vmax.f32 %v521, %v522
      %v524 = vrot.slane %v523, 1
      %v525 = vmax.f32 %v523, %v524
      %v526 = vsel %vm476, %v419, -inf
      %v527 = vrot.slane %v526, 4
      %v528 = vmax.f32 %v526, %v527
      %v529 = vrot.slane %v528, 2
      %v530 = vmax.f32 %v528, %v529
      %v531 = vrot.slane %v530, 1
      %v532 = vmax.f32 %v530, %v531
      %v533 = vsel %vm476, %v420, -inf
      %v534 = vrot.slane %v533, 4
      %v535 = vmax.f32 %v533, %v534
      %v536 = vrot.slane %v535, 2
      %v537 = vmax.f32 %v535, %v536
      %v538 = vrot.slane %v537, 1
      %v539 = vmax.f32 %v537, %v538
      %v540 = vsel %vm476, %v421, -inf
      %v541 = vrot.slane %v540, 4
      %v542 = vmax.f32 %v540, %v541
      %v543 = vrot.slane %v542, 2
      %v544 = vmax.f32 %v542, %v543
      %v545 = vrot.slane %v544, 1
      %v546 = vmax.f32 %v544, %v545
      %v547 = vsel %vm476, %v422, -inf
      %v548 = vrot.slane %v547, 4
      %v549 = vmax.f32 %v547, %v548
      %v550 = vrot.slane %v549, 2
      %v551 = vmax.f32 %v549, %v550
      %v552 = vrot.slane %v551, 1
      %v553 = vmax.f32 %v551, %v552
      %v554 = vsel %vm476, %v423, -inf
      %v555 = vrot.slane %v554, 4
      %v556 = vmax.f32 %v554, %v555
      %v557 = vrot.slane %v556, 2
      %v558 = vmax.f32 %v556, %v557
      %v559 = vrot.slane %v558, 1
      %v560 = vmax.f32 %v558, %v559
      %v561 = vsel %vm476, %v424, -inf
      %v562 = vrot.slane %v561, 4
      %v563 = vmax.f32 %v561, %v562
      %v564 = vrot.slane %v563, 2
      %v565 = vmax.f32 %v563, %v564
      %v566 = vrot.slane %v565, 1
      %v567 = vmax.f32 %v565, %v566
      %v568 = vsel %vm476, %v425, -inf
      %v569 = vrot.slane %v568, 4
      %v570 = vmax.f32 %v568, %v569
      %v571 = vrot.slane %v570, 2
      %v572 = vmax.f32 %v570, %v571
      %v573 = vrot.slane %v572, 1
      %v574 = vmax.f32 %v572, %v573
      %v575 = vsel %vm476, %v426, -inf
      %v576 = vrot.slane %v575, 4
      %v577 = vmax.f32 %v575, %v576
      %v578 = vrot.slane %v577, 2
      %v579 = vmax.f32 %v577, %v578
      %v580 = vrot.slane %v579, 1
      %v581 = vmax.f32 %v579, %v580
      %v582 = vsel %vm476, %v427, -inf
      %v583 = vrot.slane %v582, 4
      %v584 = vmax.f32 %v582, %v583
      %v585 = vrot.slane %v584, 2
      %v586 = vmax.f32 %v584, %v585
      %v587 = vrot.slane %v586, 1
      %v588 = vmax.f32 %v586, %v587
      %v589 = vsel %vm476, %v428, -inf
      %v590 = vrot.slane %v589, 4
      %v591 = vmax.f32 %v589, %v590
      %v592 = vrot.slane %v591, 2
      %v593 = vmax.f32 %v591, %v592
      %v594 = vrot.slane %v593, 1
      %v595 = vmax.f32 %v593, %v594
      %v596 = vsel %vm476, %v429, -inf
      %v597 = vrot.slane %v596, 4
      %v598 = vmax.f32 %v596, %v597
      %v599 = vrot.slane %v598, 2
      %v600 = vmax.f32 %v598, %v599
      %v601 = vrot.slane %v600, 1
      %v602 = vmax.f32 %v600, %v601
      %v603 = vsel %vm476, %v430, -inf
      %v604 = vrot.slane %v603, 4
      %v605 = vmax.f32 %v603, %v604
      %v606 = vrot.slane %v605, 2
      %v607 = vmax.f32 %v605, %v606
      %v608 = vrot.slane %v607, 1
      %v609 = vmax.f32 %v607, %v608
      %v610 = vsel %vm476, %v431, -inf
      %v611 = vrot.slane %v610, 4
      %v612 = vmax.f32 %v610, %v611
      %v613 = vrot.slane %v612, 2
      %v614 = vmax.f32 %v612, %v613
      %v615 = vrot.slane %v614, 1
      %v616 = vmax.f32 %v614, %v615
      %v617 = vsel %vm476, %v432, -inf
      %v618 = vrot.slane %v617, 4
      %v619 = vmax.f32 %v617, %v618
      %v620 = vrot.slane %v619, 2
      %v621 = vmax.f32 %v619, %v620
      %v622 = vrot.slane %v621, 1
      %v623 = vmax.f32 %v621, %v622
      %v624 = vsel %vm476, %v433, -inf
      %v625 = vrot.slane %v624, 4
      %v626 = vmax.f32 %v624, %v625
      %v627 = vrot.slane %v626, 2
      %v628 = vmax.f32 %v626, %v627
      %v629 = vrot.slane %v628, 1
      %v630 = vmax.f32 %v628, %v629
      %v631 = vsel %vm476, %v434, -inf
      %v632 = vrot.slane %v631, 4
      %v633 = vmax.f32 %v631, %v632
      %v634 = vrot.slane %v633, 2
      %v635 = vmax.f32 %v633, %v634
      %v636 = vrot.slane %v635, 1
      %v637 = vmax.f32 %v635, %v636
      %v638 = vsel %vm476, %v435, -inf
      %v639 = vrot.slane %v638, 4
      %v640 = vmax.f32 %v638, %v639
      %v641 = vrot.slane %v640, 2
      %v642 = vmax.f32 %v640, %v641
      %v643 = vrot.slane %v642, 1
      %v644 = vmax.f32 %v642, %v643
      %v645 = vsel %vm476, %v436, -inf
      %v646 = vrot.slane %v645, 4
      %v647 = vmax.f32 %v645, %v646
      %v648 = vrot.slane %v647, 2
      %v649 = vmax.f32 %v647, %v648
      %v650 = vrot.slane %v649, 1
      %v651 = vmax.f32 %v649, %v650
      %v652 = vsel %vm476, %v437, -inf
      %v653 = vrot.slane %v652, 4
      %v654 = vmax.f32 %v652, %v653
      %v655 = vrot.slane %v654, 2
      %v656 = vmax.f32 %v654, %v655
      %v657 = vrot.slane %v656, 1
      %v658 = vmax.f32 %v656, %v657
      %v659 = vsel %vm476, %v438, -inf
      %v660 = vrot.slane %v659, 4
      %v661 = vmax.f32 %v659, %v660
      %v662 = vrot.slane %v661, 2
      %v663 = vmax.f32 %v661, %v662
      %v664 = vrot.slane %v663, 1
      %v665 = vmax.f32 %v663, %v664
      %v666 = vsel %vm476, %v439, -inf
      %v667 = vrot.slane %v666, 4
      %v668 = vmax.f32 %v666, %v667
      %v669 = vrot.slane %v668, 2
      %v670 = vmax.f32 %v668, %v669
      %v671 = vrot.slane %v670, 1
      %v672 = vmax.f32 %v670, %v671
      %v673 = vsel %vm476, %v440, -inf
      %v674 = vrot.slane %v673, 4
      %v675 = vmax.f32 %v673, %v674
      %v676 = vrot.slane %v675, 2
      %v677 = vmax.f32 %v675, %v676
      %v678 = vrot.slane %v677, 1
      %v679 = vmax.f32 %v677, %v678
      %v680 = vsel %vm476, %v441, -inf
      %v681 = vrot.slane %v680, 4
      %v682 = vmax.f32 %v680, %v681
      %v683 = vrot.slane %v682, 2
      %v684 = vmax.f32 %v682, %v683
      %v685 = vrot.slane %v684, 1
      %v686 = vmax.f32 %v684, %v685
      %v687 = vsel %vm476, %v442, -inf
      %v688 = vrot.slane %v687, 4
      %v689 = vmax.f32 %v687, %v688
      %v690 = vrot.slane %v689, 2
      %v691 = vmax.f32 %v689, %v690
      %v692 = vrot.slane %v691, 1
      %v693 = vmax.f32 %v691, %v692
      %v694 = vsel %vm476, %v443, -inf
      %v695 = vrot.slane %v694, 4
      %v696 = vmax.f32 %v694, %v695
      %v697 = vrot.slane %v696, 2
      %v698 = vmax.f32 %v696, %v697
      %v699 = vrot.slane %v698, 1
      %v700 = vmax.f32 %v698, %v699
      %v701 = vsel %vm476, %v444, -inf
      %v702 = vrot.slane %v701, 4
      %v703 = vmax.f32 %v701, %v702
      %v704 = vrot.slane %v703, 2
      %v705 = vmax.f32 %v703, %v704
      %v706 = vrot.slane %v705, 1
      %v707 = vmax.f32 %v705, %v706
      %v708 = vsel %vm476, %v445, -inf
      %v709 = vrot.slane %v708, 4
      %v710 = vmax.f32 %v708, %v709
      %v711 = vrot.slane %v710, 2
      %v712 = vmax.f32 %v710, %v711
      %v713 = vrot.slane %v712, 1
      %v714 = vmax.f32 %v712, %v713
      %v715 = vsel %vm476, %v446, -inf
      %v716 = vrot.slane %v715, 4
      %v717 = vmax.f32 %v715, %v716
      %v718 = vrot.slane %v717, 2
      %v719 = vmax.f32 %v717, %v718
      %v720 = vrot.slane %v719, 1
      %v721 = vmax.f32 %v719, %v720
      %v722 = vsel %vm476, %v447, -inf
      %v723 = vrot.slane %v722, 4
      %v724 = vmax.f32 %v722, %v723
      %v725 = vrot.slane %v724, 2
      %v726 = vmax.f32 %v724, %v725
      %v727 = vrot.slane %v726, 1
      %v728 = vmax.f32 %v726, %v727
      %v729 = vsel %vm476, %v448, -inf
      %v730 = vrot.slane %v729, 4
      %v731 = vmax.f32 %v729, %v730
      %v732 = vrot.slane %v731, 2
      %v733 = vmax.f32 %v731, %v732
      %v734 = vrot.slane %v733, 1
      %v735 = vmax.f32 %v733, %v734
      %v736 = vsel %vm476, %v449, -inf
      %v737 = vrot.slane %v736, 4
      %v738 = vmax.f32 %v736, %v737
      %v739 = vrot.slane %v738, 2
      %v740 = vmax.f32 %v738, %v739
      %v741 = vrot.slane %v740, 1
      %v742 = vmax.f32 %v740, %v741
      %v743 = vsel %vm476, %v450, -inf
      %v744 = vrot.slane %v743, 4
      %v745 = vmax.f32 %v743, %v744
      %v746 = vrot.slane %v745, 2
      %v747 = vmax.f32 %v745, %v746
      %v748 = vrot.slane %v747, 1
      %v749 = vmax.f32 %v747, %v748
      %v750 = vsel %vm476, %v451, -inf
      %v751 = vrot.slane %v750, 4
      %v752 = vmax.f32 %v750, %v751
      %v753 = vrot.slane %v752, 2
      %v754 = vmax.f32 %v752, %v753
      %v755 = vrot.slane %v754, 1
      %v756 = vmax.f32 %v754, %v755
      %v757 = vsel %vm476, %v452, -inf
      %v758 = vrot.slane %v757, 4
      %v759 = vmax.f32 %v757, %v758
      %v760 = vrot.slane %v759, 2
      %v761 = vmax.f32 %v759, %v760
      %v762 = vrot.slane %v761, 1
      %v763 = vmax.f32 %v761, %v762
      %v764 = vsel %vm476, %v453, -inf
      %v765 = vrot.slane %v764, 4
      %v766 = vmax.f32 %v764, %v765
      %v767 = vrot.slane %v766, 2
      %v768 = vmax.f32 %v766, %v767
      %v769 = vrot.slane %v768, 1
      %v770 = vmax.f32 %v768, %v769
      %v771 = vsel %vm476, %v454, -inf
      %v772 = vrot.slane %v771, 4
      %v773 = vmax.f32 %v771, %v772
      %v774 = vrot.slane %v773, 2
      %v775 = vmax.f32 %v773, %v774
      %v776 = vrot.slane %v775, 1
      %v777 = vmax.f32 %v775, %v776
      %v778 = vsel %vm476, %v455, -inf
      %v779 = vrot.slane %v778, 4
      %v780 = vmax.f32 %v778, %v779
      %v781 = vrot.slane %v780, 2
      %v782 = vmax.f32 %v780, %v781
      %v783 = vrot.slane %v782, 1
      %v784 = vmax.f32 %v782, %v783
      %v785 = vsel %vm476, %v456, -inf
      %v786 = vrot.slane %v785, 4
      %v787 = vmax.f32 %v785, %v786
      %v788 = vrot.slane %v787, 2
      %v789 = vmax.f32 %v787, %v788
      %v790 = vrot.slane %v789, 1
      %v791 = vmax.f32 %v789, %v790
      %v792 = vsel %vm476, %v457, -inf
      %v793 = vrot.slane %v792, 4
      %v794 = vmax.f32 %v792, %v793
      %v795 = vrot.slane %v794, 2
      %v796 = vmax.f32 %v794, %v795
      %v797 = vrot.slane %v796, 1
      %v798 = vmax.f32 %v796, %v797
      %v799 = vsel %vm476, %v458, -inf
      %v800 = vrot.slane %v799, 4
      %v801 = vmax.f32 %v799, %v800
      %v802 = vrot.slane %v801, 2
      %v803 = vmax.f32 %v801, %v802
      %v804 = vrot.slane %v803, 1
      %v805 = vmax.f32 %v803, %v804
      %v806 = vsel %vm476, %v459, -inf
      %v807 = vrot.slane %v806, 4
      %v808 = vmax.f32 %v806, %v807
      %v809 = vrot.slane %v808, 2
      %v810 = vmax.f32 %v808, %v809
      %v811 = vrot.slane %v810, 1
      %v812 = vmax.f32 %v810, %v811
      %v813 = vsel %vm476, %v460, -inf
      %v814 = vrot.slane %v813, 4
      %v815 = vmax.f32 %v813, %v814
      %v816 = vrot.slane %v815, 2
      %v817 = vmax.f32 %v815, %v816
      %v818 = vrot.slane %v817, 1
      %v819 = vmax.f32 %v817, %v818
      %v820 = vsel %vm476, %v461, -inf
      %v821 = vrot.slane %v820, 4
      %v822 = vmax.f32 %v820, %v821
      %v823 = vrot.slane %v822, 2
      %v824 = vmax.f32 %v822, %v823
      %v825 = vrot.slane %v824, 1
      %v826 = vmax.f32 %v824, %v825
      %v827 = vsel %vm476, %v462, -inf
      %v828 = vrot.slane %v827, 4
      %v829 = vmax.f32 %v827, %v828
      %v830 = vrot.slane %v829, 2
      %v831 = vmax.f32 %v829, %v830
      %v832 = vrot.slane %v831, 1
      %v833 = vmax.f32 %v831, %v832
      %v834 = vsel %vm476, %v463, -inf
      %v835 = vrot.slane %v834, 4
      %v836 = vmax.f32 %v834, %v835
      %v837 = vrot.slane %v836, 2
      %v838 = vmax.f32 %v836, %v837
      %v839 = vrot.slane %v838, 1
      %v840 = vmax.f32 %v838, %v839
      %v841 = vsel %vm476, %v464, -inf
      %v842 = vrot.slane %v841, 4
      %v843 = vmax.f32 %v841, %v842
      %v844 = vrot.slane %v843, 2
      %v845 = vmax.f32 %v843, %v844
      %v846 = vrot.slane %v845, 1
      %v847 = vmax.f32 %v845, %v846
      %v848 = vsel %vm476, %v465, -inf
      %v849 = vrot.slane %v848, 4
      %v850 = vmax.f32 %v848, %v849
      %v851 = vrot.slane %v850, 2
      %v852 = vmax.f32 %v850, %v851
      %v853 = vrot.slane %v852, 1
      %v854 = vmax.f32 %v852, %v853
      %v855 = vsel %vm476, %v466, -inf
      %v856 = vrot.slane %v855, 4
      %v857 = vmax.f32 %v855, %v856
      %v858 = vrot.slane %v857, 2
      %v859 = vmax.f32 %v857, %v858
      %v860 = vrot.slane %v859, 1
      %v861 = vmax.f32 %v859, %v860
      %v862 = vsel %vm476, %v467, -inf
      %v863 = vrot.slane %v862, 4
      %v864 = vmax.f32 %v862, %v863
      %v865 = vrot.slane %v864, 2
      %v866 = vmax.f32 %v864, %v865
      %v867 = vrot.slane %v866, 1
      %v868 = vmax.f32 %v866, %v867
      %v869 = vsel %vm476, %v468, -inf
      %v870 = vrot.slane %v869, 4
      %v871 = vmax.f32 %v869, %v870
      %v872 = vrot.slane %v871, 2
      %v873 = vmax.f32 %v871, %v872
      %v874 = vrot.slane %v873, 1
      %v875 = vmax.f32 %v873, %v874
      %v876 = vsel %vm476, %v469, -inf
      %v877 = vrot.slane %v876, 4
      %v878 = vmax.f32 %v876, %v877
      %v879 = vrot.slane %v878, 2
      %v880 = vmax.f32 %v878, %v879
      %v881 = vrot.slane %v880, 1
      %v882 = vmax.f32 %v880, %v881
      %v883 = vsel %vm476, %v470, -inf
      %v884 = vrot.slane %v883, 4
      %v885 = vmax.f32 %v883, %v884
      %v886 = vrot.slane %v885, 2
      %v887 = vmax.f32 %v885, %v886
      %v888 = vrot.slane %v887, 1
      %v889 = vmax.f32 %v887, %v888
      %v890 = vsel %vm476, %v471, -inf
      %v891 = vrot.slane %v890, 4
      %v892 = vmax.f32 %v890, %v891
      %v893 = vrot.slane %v892, 2
      %v894 = vmax.f32 %v892, %v893
      %v895 = vrot.slane %v894, 1
      %v896 = vmax.f32 %v894, %v895
      %v897 = vsel %vm476, %v472, -inf
      %v898 = vrot.slane %v897, 4
      %v899 = vmax.f32 %v897, %v898
      %v900 = vrot.slane %v899, 2
      %v901 = vmax.f32 %v899, %v900
      %v902 = vrot.slane %v901, 1
      %v903 = vmax.f32 %v901, %v902
      %v904 = vsel %vm476, %v473, -inf
      %v905 = vrot.slane %v904, 4
      %v906 = vmax.f32 %v904, %v905
      %v907 = vrot.slane %v906, 2
      %v908 = vmax.f32 %v906, %v907
      %v909 = vrot.slane %v908, 1
      %v910 = vmax.f32 %v908, %v909
      %v911 = vsel %vm476, %v474, -inf
      %v912 = vrot.slane %v911, 4
      %v913 = vmax.f32 %v911, %v912
      %v914 = vrot.slane %v913, 2
      %v915 = vmax.f32 %v913, %v914
      %v916 = vrot.slane %v915, 1
      %v917 = vmax.f32 %v915, %v916
      %v918 = vsel %vm476, %v475, -inf
      %v919 = vrot.slane %v918, 4
      %v920 = vmax.f32 %v918, %v919
      %v921 = vrot.slane %v920, 2
      %v922 = vmax.f32 %v920, %v921
      %v923 = vrot.slane %v922, 1
      %v924 = vmax.f32 %v922, %v923
      %vm925 = vcmask 31744
      %v926 = vsel %vm925, %v483, -inf
      %v927 = vsel %vm925, %v539, -inf
      %v928 = vmax.f32 %v926, %v927
      %v929 = vsel %vm925, %v490, -inf
      %v930 = vsel %vm925, %v546, -inf
      %v931 = vmax.f32 %v929, %v930
      %v932 = vsel %vm925, %v497, -inf
      %v933 = vsel %vm925, %v553, -inf
      %v934 = vmax.f32 %v932, %v933
      %v935 = vsel %vm925, %v504, -inf
      %v936 = vsel %vm925, %v560, -inf
      %v937 = vmax.f32 %v935, %v936
      %v938 = vsel %vm925, %v511, -inf
      %v939 = vsel %vm925, %v567, -inf
      %v940 = vmax.f32 %v938, %v939
      %v941 = vsel %vm925, %v518, -inf
      %v942 = vsel %vm925, %v574, -inf
      %v943 = vmax.f32 %v941, %v942
      %v944 = vsel %vm925, %v525, -inf
      %v945 = vsel %vm925, %v581, -inf
      %v946 = vmax.f32 %v944, %v945
      %v947 = vsel %vm925, %v532, -inf
      %v948 = vsel %vm925, %v588, -inf
      %v949 = vmax.f32 %v947, %v948
      %v950 = vsel %vm925, %v595, -inf
      %v951 = vsel %vm925, %v651, -inf
      %v952 = vmax.f32 %v950, %v951
      %v953 = vsel %vm925, %v602, -inf
      %v954 = vsel %vm925, %v658, -inf
      %v955 = vmax.f32 %v953, %v954
      %v956 = vsel %vm925, %v609, -inf
      %v957 = vsel %vm925, %v665, -inf
      %v958 = vmax.f32 %v956, %v957
      %v959 = vsel %vm925, %v616, -inf
      %v960 = vsel %vm925, %v672, -inf
      %v961 = vmax.f32 %v959, %v960
      %v962 = vsel %vm925, %v623, -inf
      %v963 = vsel %vm925, %v679, -inf
      %v964 = vmax.f32 %v962, %v963
      %v965 = vsel %vm925, %v630, -inf
      %v966 = vsel %vm925, %v686, -inf
      %v967 = vmax.f32 %v965, %v966
      %v968 = vsel %vm925, %v637, -inf
      %v969 = vsel %vm925, %v693, -inf
      %v970 = vmax.f32 %v968, %v969
      %v971 = vsel %vm925, %v644, -inf
      %v972 = vsel %vm925, %v700, -inf
      %v973 = vmax.f32 %v971, %v972
      %v974 = vsel %vm925, %v707, -inf
      %v975 = vsel %vm925, %v763, -inf
      %v976 = vmax.f32 %v974, %v975
      %v977 = vsel %vm925, %v714, -inf
      %v978 = vsel %vm925, %v770, -inf
      %v979 = vmax.f32 %v977, %v978
      %v980 = vsel %vm925, %v721, -inf
      %v981 = vsel %vm925, %v777, -inf
      %v982 = vmax.f32 %v980, %v981
      %v983 = vsel %vm925, %v728, -inf
      %v984 = vsel %vm925, %v784, -inf
      %v985 = vmax.f32 %v983, %v984
      %v986 = vsel %vm925, %v735, -inf
      %v987 = vsel %vm925, %v791, -inf
      %v988 = vmax.f32 %v986, %v987
      %v989 = vsel %vm925, %v742, -inf
      %v990 = vsel %vm925, %v798, -inf
      %v991 = vmax.f32 %v989, %v990
      %v992 = vsel %vm925, %v749, -inf
      %v993 = vsel %vm925, %v805, -inf
      %v994 = vmax.f32 %v992, %v993
      %v995 = vsel %vm925, %v756, -inf
      %v996 = vsel %vm925, %v812, -inf
      %v997 = vmax.f32 %v995, %v996
      %v998 = vsel %vm925, %v819, -inf
      %v999 = vsel %vm925, %v875, -inf
      %v1000 = vmax.f32 %v998, %v999
      %v1001 = vsel %vm925, %v826, -inf
      %v1002 = vsel %vm925, %v882, -inf
      %v1003 = vmax.f32 %v1001, %v1002
      %v1004 = vsel %vm925, %v833, -inf
      %v1005 = vsel %vm925, %v889, -inf
      %v1006 = vmax.f32 %v1004, %v1005
      %v1007 = vsel %vm925, %v840, -inf
      %v1008 = vsel %vm925, %v896, -inf
      %v1009 = vmax.f32 %v1007, %v1008
      %v1010 = vsel %vm925, %v847, -inf
      %v1011 = vsel %vm925, %v903, -inf
      %v1012 = vmax.f32 %v1010, %v1011
      %v1013 = vsel %vm925, %v854, -inf
      %v1014 = vsel %vm925, %v910, -inf
      %v1015 = vmax.f32 %v1013, %v1014
      %v1016 = vsel %vm925, %v861, -inf
      %v1017 = vsel %vm925, %v917, -inf
      %v1018 = vmax.f32 %v1016, %v1017
      %v1019 = vsel %vm925, %v868, -inf
      %v1020 = vsel %vm925, %v924, -inf
      %v1021 = vmax.f32 %v1019, %v1020
      %v1022 = vld [vmem:[%s372] sm:$0x3]
      %v1023 = vld [vmem:[%s372 + $0x2] sm:$0x3]
      %v1024 = vld [vmem:[%s372 + $0x4] sm:$0x3]
      %v1025 = vld [vmem:[%s372 + $0x6] sm:$0x3]
      %v1026 = vld [vmem:[%s372 + $0x8] sm:$0x3]
      %v1027 = vld [vmem:[%s372 + $0xa] sm:$0x3]
      %v1028 = vld [vmem:[%s372 + $0xc] sm:$0x3]
      %v1029 = vld [vmem:[%s372 + $0xe] sm:$0x3]
      %v1030 = vld [vmem:[%s372 + $0x10] sm:$0x3]
      %v1031 = vld [vmem:[%s372 + $0x12] sm:$0x3]
      %v1032 = vld [vmem:[%s372 + $0x14] sm:$0x3]
      %v1033 = vld [vmem:[%s372 + $0x16] sm:$0x3]
      %v1034 = vld [vmem:[%s372 + $0x18] sm:$0x3]
      %v1035 = vld [vmem:[%s372 + $0x1a] sm:$0x3]
      %v1036 = vld [vmem:[%s372 + $0x1c] sm:$0x3]
      %v1037 = vld [vmem:[%s372 + $0x1e] sm:$0x3]
      %v1038 = vsel %vm476, %v1022, -inf
      %v1039 = vrot.slane %v1038, 4
      %v1040 = vmax.f32 %v1038, %v1039
      %v1041 = vrot.slane %v1040, 2
      %v1042 = vmax.f32 %v1040, %v1041
      %v1043 = vrot.slane %v1042, 1
      %v1044 = vmax.f32 %v1042, %v1043
      %v1045 = vsel %vm476, %v1023, -inf
      %v1046 = vrot.slane %v1045, 4
      %v1047 = vmax.f32 %v1045, %v1046
      %v1048 = vrot.slane %v1047, 2
      %v1049 = vmax.f32 %v1047, %v1048
      %v1050 = vrot.slane %v1049, 1
      %v1051 = vmax.f32 %v1049, %v1050
      %v1052 = vsel %vm476, %v1024, -inf
      %v1053 = vrot.slane %v1052, 4
      %v1054 = vmax.f32 %v1052, %v1053
      %v1055 = vrot.slane %v1054, 2
      %v1056 = vmax.f32 %v1054, %v1055
      %v1057 = vrot.slane %v1056, 1
      %v1058 = vmax.f32 %v1056, %v1057
      %v1059 = vsel %vm476, %v1025, -inf
      %v1060 = vrot.slane %v1059, 4
      %v1061 = vmax.f32 %v1059, %v1060
      %v1062 = vrot.slane %v1061, 2
      %v1063 = vmax.f32 %v1061, %v1062
      %v1064 = vrot.slane %v1063, 1
      %v1065 = vmax.f32 %v1063, %v1064
      %v1066 = vsel %vm476, %v1026, -inf
      %v1067 = vrot.slane %v1066, 4
      %v1068 = vmax.f32 %v1066, %v1067
      %v1069 = vrot.slane %v1068, 2
      %v1070 = vmax.f32 %v1068, %v1069
      %v1071 = vrot.slane %v1070, 1
      %v1072 = vmax.f32 %v1070, %v1071
      %v1073 = vsel %vm476, %v1027, -inf
      %v1074 = vrot.slane %v1073, 4
      %v1075 = vmax.f32 %v1073, %v1074
      %v1076 = vrot.slane %v1075, 2
      %v1077 = vmax.f32 %v1075, %v1076
      %v1078 = vrot.slane %v1077, 1
      %v1079 = vmax.f32 %v1077, %v1078
      %v1080 = vsel %vm476, %v1028, -inf
      %v1081 = vrot.slane %v1080, 4
      %v1082 = vmax.f32 %v1080, %v1081
      %v1083 = vrot.slane %v1082, 2
      %v1084 = vmax.f32 %v1082, %v1083
      %v1085 = vrot.slane %v1084, 1
      %v1086 = vmax.f32 %v1084, %v1085
      %v1087 = vsel %vm476, %v1029, -inf
      %v1088 = vrot.slane %v1087, 4
      %v1089 = vmax.f32 %v1087, %v1088
      %v1090 = vrot.slane %v1089, 2
      %v1091 = vmax.f32 %v1089, %v1090
      %v1092 = vrot.slane %v1091, 1
      %v1093 = vmax.f32 %v1091, %v1092
      %v1094 = vsel %vm476, %v1030, -inf
      %v1095 = vrot.slane %v1094, 4
      %v1096 = vmax.f32 %v1094, %v1095
      %v1097 = vrot.slane %v1096, 2
      %v1098 = vmax.f32 %v1096, %v1097
      %v1099 = vrot.slane %v1098, 1
      %v1100 = vmax.f32 %v1098, %v1099
      %v1101 = vsel %vm476, %v1031, -inf
      %v1102 = vrot.slane %v1101, 4
      %v1103 = vmax.f32 %v1101, %v1102
      %v1104 = vrot.slane %v1103, 2
      %v1105 = vmax.f32 %v1103, %v1104
      %v1106 = vrot.slane %v1105, 1
      %v1107 = vmax.f32 %v1105, %v1106
      %v1108 = vsel %vm476, %v1032, -inf
      %v1109 = vrot.slane %v1108, 4
      %v1110 = vmax.f32 %v1108, %v1109
      %v1111 = vrot.slane %v1110, 2
      %v1112 = vmax.f32 %v1110, %v1111
      %v1113 = vrot.slane %v1112, 1
      %v1114 = vmax.f32 %v1112, %v1113
      %v1115 = vsel %vm476, %v1033, -inf
      %v1116 = vrot.slane %v1115, 4
      %v1117 = vmax.f32 %v1115, %v1116
      %v1118 = vrot.slane %v1117, 2
      %v1119 = vmax.f32 %v1117, %v1118
      %v1120 = vrot.slane %v1119, 1
      %v1121 = vmax.f32 %v1119, %v1120
      %v1122 = vsel %vm476, %v1034, -inf
      %v1123 = vrot.slane %v1122, 4
      %v1124 = vmax.f32 %v1122, %v1123
      %v1125 = vrot.slane %v1124, 2
      %v1126 = vmax.f32 %v1124, %v1125
      %v1127 = vrot.slane %v1126, 1
      %v1128 = vmax.f32 %v1126, %v1127
      %v1129 = vsel %vm476, %v1035, -inf
      %v1130 = vrot.slane %v1129, 4
      %v1131 = vmax.f32 %v1129, %v1130
      %v1132 = vrot.slane %v1131, 2
      %v1133 = vmax.f32 %v1131, %v1132
      %v1134 = vrot.slane %v1133, 1
      %v1135 = vmax.f32 %v1133, %v1134
      %v1136 = vsel %vm476, %v1036, -inf
      %v1137 = vrot.slane %v1136, 4
      %v1138 = vmax.f32 %v1136, %v1137
      %v1139 = vrot.slane %v1138, 2
      %v1140 = vmax.f32 %v1138, %v1139
      %v1141 = vrot.slane %v1140, 1
      %v1142 = vmax.f32 %v1140, %v1141
      %v1143 = vsel %vm476, %v1037, -inf
      %v1144 = vrot.slane %v1143, 4
      %v1145 = vmax.f32 %v1143, %v1144
      %v1146 = vrot.slane %v1145, 2
      %v1147 = vmax.f32 %v1145, %v1146
      %v1148 = vrot.slane %v1147, 1
      %v1149 = vmax.f32 %v1147, %v1148
      %v1150 = vsel %vm925, %v1044, -inf
      %v1151 = vsel %vm925, %v1100, -inf
      %v1152 = vmax.f32 %v1150, %v1151
      %v1153 = vsel %vm925, %v1051, -inf
      %v1154 = vsel %vm925, %v1107, -inf
      %v1155 = vmax.f32 %v1153, %v1154
      %v1156 = vsel %vm925, %v1058, -inf
      %v1157 = vsel %vm925, %v1114, -inf
      %v1158 = vmax.f32 %v1156, %v1157
      %v1159 = vsel %vm925, %v1065, -inf
      %v1160 = vsel %vm925, %v1121, -inf
      %v1161 = vmax.f32 %v1159, %v1160
      %v1162 = vsel %vm925, %v1072, -inf
      %v1163 = vsel %vm925, %v1128, -inf
      %v1164 = vmax.f32 %v1162, %v1163
      %v1165 = vsel %vm925, %v1079, -inf
      %v1166 = vsel %vm925, %v1135, -inf
      %v1167 = vmax.f32 %v1165, %v1166
      %v1168 = vsel %vm925, %v1086, -inf
      %v1169 = vsel %vm925, %v1142, -inf
      %v1170 = vmax.f32 %v1168, %v1169
      %v1171 = vsel %vm925, %v1093, -inf
      %v1172 = vsel %vm925, %v1149, -inf
      %v1173 = vmax.f32 %v1171, %v1172
      %v1174 = vld [vmem:[%s389] sm:$0x3]
      %v1175 = vld [vmem:[%s389 + $0x2] sm:$0x3]
      %v1176 = vld [vmem:[%s389 + $0x4] sm:$0x3]
      %v1177 = vld [vmem:[%s389 + $0x6] sm:$0x3]
      %v1178 = vld [vmem:[%s389 + $0x8] sm:$0x3]
      %v1179 = vld [vmem:[%s389 + $0xa] sm:$0x3]
      %v1180 = vld [vmem:[%s389 + $0xc] sm:$0x3]
      %v1181 = vld [vmem:[%s389 + $0xe] sm:$0x3]
      %v1182 = vld [vmem:[%s389 + $0x10] sm:$0x3]
      %v1183 = vld [vmem:[%s389 + $0x12] sm:$0x3]
      %v1184 = vld [vmem:[%s389 + $0x14] sm:$0x3]
      %v1185 = vld [vmem:[%s389 + $0x16] sm:$0x3]
      %v1186 = vld [vmem:[%s389 + $0x18] sm:$0x3]
      %v1187 = vld [vmem:[%s389 + $0x1a] sm:$0x3]
      %v1188 = vld [vmem:[%s389 + $0x1c] sm:$0x3]
      %v1189 = vld [vmem:[%s389 + $0x1e] sm:$0x3]
      %v1190 = vsel %vm476, %v1174, -inf
      %v1191 = vrot.slane %v1190, 4
      %v1192 = vmax.f32 %v1190, %v1191
      %v1193 = vrot.slane %v1192, 2
      %v1194 = vmax.f32 %v1192, %v1193
      %v1195 = vrot.slane %v1194, 1
      %v1196 = vmax.f32 %v1194, %v1195
      %v1197 = vsel %vm476, %v1175, -inf
      %v1198 = vrot.slane %v1197, 4
      %v1199 = vmax.f32 %v1197, %v1198
      %v1200 = vrot.slane %v1199, 2
      %v1201 = vmax.f32 %v1199, %v1200
      %v1202 = vrot.slane %v1201, 1
      %v1203 = vmax.f32 %v1201, %v1202
      %v1204 = vsel %vm476, %v1176, -inf
      %v1205 = vrot.slane %v1204, 4
      %v1206 = vmax.f32 %v1204, %v1205
      %v1207 = vrot.slane %v1206, 2
      %v1208 = vmax.f32 %v1206, %v1207
      %v1209 = vrot.slane %v1208, 1
      %v1210 = vmax.f32 %v1208, %v1209
      %v1211 = vsel %vm476, %v1177, -inf
      %v1212 = vrot.slane %v1211, 4
      %v1213 = vmax.f32 %v1211, %v1212
      %v1214 = vrot.slane %v1213, 2
      %v1215 = vmax.f32 %v1213, %v1214
      %v1216 = vrot.slane %v1215, 1
      %v1217 = vmax.f32 %v1215, %v1216
      %v1218 = vsel %vm476, %v1178, -inf
      %v1219 = vrot.slane %v1218, 4
      %v1220 = vmax.f32 %v1218, %v1219
      %v1221 = vrot.slane %v1220, 2
      %v1222 = vmax.f32 %v1220, %v1221
      %v1223 = vrot.slane %v1222, 1
      %v1224 = vmax.f32 %v1222, %v1223
      %v1225 = vsel %vm476, %v1179, -inf
      %v1226 = vrot.slane %v1225, 4
      %v1227 = vmax.f32 %v1225, %v1226
      %v1228 = vrot.slane %v1227, 2
      %v1229 = vmax.f32 %v1227, %v1228
      %v1230 = vrot.slane %v1229, 1
      %v1231 = vmax.f32 %v1229, %v1230
      %v1232 = vsel %vm476, %v1180, -inf
      %v1233 = vrot.slane %v1232, 4
      %v1234 = vmax.f32 %v1232, %v1233
      %v1235 = vrot.slane %v1234, 2
      %v1236 = vmax.f32 %v1234, %v1235
      %v1237 = vrot.slane %v1236, 1
      %v1238 = vmax.f32 %v1236, %v1237
      %v1239 = vsel %vm476, %v1181, -inf
      %v1240 = vrot.slane %v1239, 4
      %v1241 = vmax.f32 %v1239, %v1240
      %v1242 = vrot.slane %v1241, 2
      %v1243 = vmax.f32 %v1241, %v1242
      %v1244 = vrot.slane %v1243, 1
      %v1245 = vmax.f32 %v1243, %v1244
      %v1246 = vsel %vm476, %v1182, -inf
      %v1247 = vrot.slane %v1246, 4
      %v1248 = vmax.f32 %v1246, %v1247
      %v1249 = vrot.slane %v1248, 2
      %v1250 = vmax.f32 %v1248, %v1249
      %v1251 = vrot.slane %v1250, 1
      %v1252 = vmax.f32 %v1250, %v1251
      %v1253 = vsel %vm476, %v1183, -inf
      %v1254 = vrot.slane %v1253, 4
      %v1255 = vmax.f32 %v1253, %v1254
      %v1256 = vrot.slane %v1255, 2
      %v1257 = vmax.f32 %v1255, %v1256
      %v1258 = vrot.slane %v1257, 1
      %v1259 = vmax.f32 %v1257, %v1258
      %v1260 = vsel %vm476, %v1184, -inf
      %v1261 = vrot.slane %v1260, 4
      %v1262 = vmax.f32 %v1260, %v1261
      %v1263 = vrot.slane %v1262, 2
      %v1264 = vmax.f32 %v1262, %v1263
      %v1265 = vrot.slane %v1264, 1
      %v1266 = vmax.f32 %v1264, %v1265
      %v1267 = vsel %vm476, %v1185, -inf
      %v1268 = vrot.slane %v1267, 4
      %v1269 = vmax.f32 %v1267, %v1268
      %v1270 = vrot.slane %v1269, 2
      %v1271 = vmax.f32 %v1269, %v1270
      %v1272 = vrot.slane %v1271, 1
      %v1273 = vmax.f32 %v1271, %v1272
      %v1274 = vsel %vm476, %v1186, -inf
      %v1275 = vrot.slane %v1274, 4
      %v1276 = vmax.f32 %v1274, %v1275
      %v1277 = vrot.slane %v1276, 2
      %v1278 = vmax.f32 %v1276, %v1277
      %v1279 = vrot.slane %v1278, 1
      %v1280 = vmax.f32 %v1278, %v1279
      %v1281 = vsel %vm476, %v1187, -inf
      %v1282 = vrot.slane %v1281, 4
      %v1283 = vmax.f32 %v1281, %v1282
      %v1284 = vrot.slane %v1283, 2
      %v1285 = vmax.f32 %v1283, %v1284
      %v1286 = vrot.slane %v1285, 1
      %v1287 = vmax.f32 %v1285, %v1286
      %v1288 = vsel %vm476, %v1188, -inf
      %v1289 = vrot.slane %v1288, 4
      %v1290 = vmax.f32 %v1288, %v1289
      %v1291 = vrot.slane %v1290, 2
      %v1292 = vmax.f32 %v1290, %v1291
      %v1293 = vrot.slane %v1292, 1
      %v1294 = vmax.f32 %v1292, %v1293
      %v1295 = vsel %vm476, %v1189, -inf
      %v1296 = vrot.slane %v1295, 4
      %v1297 = vmax.f32 %v1295, %v1296
      %v1298 = vrot.slane %v1297, 2
      %v1299 = vmax.f32 %v1297, %v1298
      %v1300 = vrot.slane %v1299, 1
      %v1301 = vmax.f32 %v1299, %v1300
      %v1302 = vsel %vm925, %v1196, -inf
      %v1303 = vsel %vm925, %v1252, -inf
      %v1304 = vmax.f32 %v1302, %v1303
      %v1305 = vsel %vm925, %v1203, -inf
      %v1306 = vsel %vm925, %v1259, -inf
      %v1307 = vmax.f32 %v1305, %v1306
      %v1308 = vsel %vm925, %v1210, -inf
      %v1309 = vsel %vm925, %v1266, -inf
      %v1310 = vmax.f32 %v1308, %v1309
      %v1311 = vsel %vm925, %v1217, -inf
      %v1312 = vsel %vm925, %v1273, -inf
      %v1313 = vmax.f32 %v1311, %v1312
      %v1314 = vsel %vm925, %v1224, -inf
      %v1315 = vsel %vm925, %v1280, -inf
      %v1316 = vmax.f32 %v1314, %v1315
      %v1317 = vsel %vm925, %v1231, -inf
      %v1318 = vsel %vm925, %v1287, -inf
      %v1319 = vmax.f32 %v1317, %v1318
      %v1320 = vsel %vm925, %v1238, -inf
      %v1321 = vsel %vm925, %v1294, -inf
      %v1322 = vmax.f32 %v1320, %v1321
      %v1323 = vsel %vm925, %v1245, -inf
      %v1324 = vsel %vm925, %v1301, -inf
      %v1325 = vmax.f32 %v1323, %v1324
      %p1326 = scmp.gt.s32.totalorder %s22, 0
      %s1327 = scalar_select %p1326, 1, 0
      %v1328 = vstv %s1327
      %vm1329 = vcmp.eq.s32.totalorder %v1328, 1
      %v1330 = vsel %vm1329, %v1152, 0.0
      %v1331 = vsel %vm1329, %v1155, 0.0
      %v1332 = vsel %vm1329, %v1158, 0.0
      %v1333 = vsel %vm1329, %v1161, 0.0
      %v1334 = vsel %vm1329, %v1164, 0.0
      %v1335 = vsel %vm1329, %v1167, 0.0
      %v1336 = vsel %vm1329, %v1170, 0.0
      %v1337 = vsel %vm1329, %v1173, 0.0
      %p1338 = scmp.lt.s32.totalorder %s22, 1
      %s1339 = scalar_select %p1338, 1, 0
      %v1340 = vstv %s1339
      %vm1341 = vcmp.eq.s32.totalorder %v1340, 1
      %v1342 = vsel %vm1341, %v1304, 0.0
      %v1343 = vsel %vm1341, %v1307, 0.0
      %v1344 = vsel %vm1341, %v1310, 0.0
      %v1345 = vsel %vm1341, %v1313, 0.0
      %v1346 = vsel %vm1341, %v1316, 0.0
      %v1347 = vsel %vm1341, %v1319, 0.0
      %v1348 = vsel %vm1341, %v1322, 0.0
      %v1349 = vsel %vm1341, %v1325, 0.0
      %v1378 = vrot.slane %v1330, 7
      %v1379 = vrot.slane %v1331, 6
      %vm1380 = vcmask 1042434
      %v1381 = vsel %vm1380, %v1379, %v1378
      %v1382 = vrot.slane %v1332, 5
      %vm1383 = vcmask 1043459
      %v1384 = vsel %vm1383, %v1382, %v1381
      %v1385 = vrot.slane %v1333, 4
      %vm1386 = vcmask 1044484
      %v1387 = vsel %vm1386, %v1385, %v1384
      %v1388 = vrot.slane %v1334, 3
      %vm1389 = vcmask 1045509
      %v1390 = vsel %vm1389, %v1388, %v1387
      %v1391 = vrot.slane %v1335, 2
      %vm1392 = vcmask 1046534
      %v1393 = vsel %vm1392, %v1391, %v1390
      %v1394 = vrot.slane %v1336, 1
      %vm1395 = vcmask 1047559
      %v1396 = vsel %vm1395, %v1394, %v1393
      %v1397 = vrot.slane %v928, 7
      %v1398 = vrot.slane %v931, 6
      %v1399 = vsel %vm1380, %v1398, %v1397
      %v1400 = vrot.slane %v934, 5
      %v1401 = vsel %vm1383, %v1400, %v1399
      %v1402 = vrot.slane %v937, 4
      %v1403 = vsel %vm1386, %v1402, %v1401
      %v1404 = vrot.slane %v940, 3
      %v1405 = vsel %vm1389, %v1404, %v1403
      %v1406 = vrot.slane %v943, 2
      %v1407 = vsel %vm1392, %v1406, %v1405
      %v1408 = vrot.slane %v946, 1
      %v1409 = vsel %vm1395, %v1408, %v1407
      %v1410 = vrot.slane %v952, 7
      %v1411 = vrot.slane %v955, 6
      %v1412 = vsel %vm1380, %v1411, %v1410
      %v1413 = vrot.slane %v958, 5
      %v1414 = vsel %vm1383, %v1413, %v1412
      %v1415 = vrot.slane %v961, 4
      %v1416 = vsel %vm1386, %v1415, %v1414
      %v1417 = vrot.slane %v964, 3
      %v1418 = vsel %vm1389, %v1417, %v1416
      %v1419 = vrot.slane %v967, 2
      %v1420 = vsel %vm1392, %v1419, %v1418
      %v1421 = vrot.slane %v970, 1
      %v1422 = vsel %vm1395, %v1421, %v1420
      %v1423 = vrot.slane %v976, 7
      %v1424 = vrot.slane %v979, 6
      %v1425 = vsel %vm1380, %v1424, %v1423
      %v1426 = vrot.slane %v982, 5
      %v1427 = vsel %vm1383, %v1426, %v1425
      %v1428 = vrot.slane %v985, 4
      %v1429 = vsel %vm1386, %v1428, %v1427
      %v1430 = vrot.slane %v988, 3
      %v1431 = vsel %vm1389, %v1430, %v1429
      %v1432 = vrot.slane %v991, 2
      %v1433 = vsel %vm1392, %v1432, %v1431
      %v1434 = vrot.slane %v994, 1
      %v1435 = vsel %vm1395, %v1434, %v1433
      %vm1440 = vcmask 1040384
      %v1441 = vsel %vm1440, 0.0, %v1396
      %v1442 = vsel %vm1440, 0.0, %v1409
      %v1443 = vsel %vm1440, 0.0, %v1422
      %v1444 = vsel %vm1440, 0.0, %v1435
      %v1449 = vrot.slane %v1332, 7
      %vm1450 = vcmask 1041409
      %v1451 = vsel %vm1450, %v1449, %v1331
      %v1452 = vrot.slane %v1333, 6
      %v1453 = vsel %vm1380, %v1452, %v1451
      %v1454 = vrot.slane %v1334, 5
      %v1455 = vsel %vm1383, %v1454, %v1453
      %v1456 = vrot.slane %v1335, 4
      %v1457 = vsel %vm1386, %v1456, %v1455
      %v1458 = vrot.slane %v1336, 3
      %v1459 = vsel %vm1389, %v1458, %v1457
      %v1460 = vrot.slane %v1337, 2
      %v1461 = vsel %vm1392, %v1460, %v1459
      %v1462 = vrot.slane %v934, 7
      %v1463 = vsel %vm1450, %v1462, %v931
      %v1464 = vrot.slane %v937, 6
      %v1465 = vsel %vm1380, %v1464, %v1463
      %v1466 = vrot.slane %v940, 5
      %v1467 = vsel %vm1383, %v1466, %v1465
      %v1468 = vrot.slane %v943, 4
      %v1469 = vsel %vm1386, %v1468, %v1467
      %v1470 = vrot.slane %v946, 3
      %v1471 = vsel %vm1389, %v1470, %v1469
      %v1472 = vrot.slane %v949, 2
      %v1473 = vsel %vm1392, %v1472, %v1471
      %v1474 = vrot.slane %v958, 7
      %v1475 = vsel %vm1450, %v1474, %v955
      %v1476 = vrot.slane %v961, 6
      %v1477 = vsel %vm1380, %v1476, %v1475
      %v1478 = vrot.slane %v964, 5
      %v1479 = vsel %vm1383, %v1478, %v1477
      %v1480 = vrot.slane %v967, 4
      %v1481 = vsel %vm1386, %v1480, %v1479
      %v1482 = vrot.slane %v970, 3
      %v1483 = vsel %vm1389, %v1482, %v1481
      %v1484 = vrot.slane %v973, 2
      %v1485 = vsel %vm1392, %v1484, %v1483
      %v1486 = vrot.slane %v982, 7
      %v1487 = vsel %vm1450, %v1486, %v979
      %v1488 = vrot.slane %v985, 6
      %v1489 = vsel %vm1380, %v1488, %v1487
      %v1490 = vrot.slane %v988, 5
      %v1491 = vsel %vm1383, %v1490, %v1489
      %v1492 = vrot.slane %v991, 4
      %v1493 = vsel %vm1386, %v1492, %v1491
      %v1494 = vrot.slane %v994, 3
      %v1495 = vsel %vm1389, %v1494, %v1493
      %v1496 = vrot.slane %v997, 2
      %v1497 = vsel %vm1392, %v1496, %v1495
      %vm1502 = vcmask 1046528
      %v1503 = vsel %vm1502, %v1461, 0.0
      %v1504 = vsel %vm1502, %v1473, 0.0
      %v1505 = vsel %vm1502, %v1485, 0.0
      %v1506 = vsel %vm1502, %v1497, 0.0
      %v1507 = vrot.slane %v1331, 7
      %v1508 = vsel %vm1450, %v1507, %v1330
      %v1509 = vrot.slane %v1332, 6
      %v1510 = vsel %vm1380, %v1509, %v1508
      %v1511 = vrot.slane %v1333, 5
      %v1512 = vsel %vm1383, %v1511, %v1510
      %v1513 = vrot.slane %v1334, 4
      %v1514 = vsel %vm1386, %v1513, %v1512
      %v1515 = vrot.slane %v1335, 3
      %v1516 = vsel %vm1389, %v1515, %v1514
      %v1517 = vrot.slane %v1336, 2
      %v1518 = vsel %vm1392, %v1517, %v1516
      %v1519 = vrot.slane %v1337, 1
      %v1520 = vsel %vm1395, %v1519, %v1518
      %v1521 = vrot.slane %v931, 7
      %v1522 = vsel %vm1450, %v1521, %v928
      %v1523 = vrot.slane %v934, 6
      %v1524 = vsel %vm1380, %v1523, %v1522
      %v1525 = vrot.slane %v937, 5
      %v1526 = vsel %vm1383, %v1525, %v1524
      %v1527 = vrot.slane %v940, 4
      %v1528 = vsel %vm1386, %v1527, %v1526
      %v1529 = vrot.slane %v943, 3
      %v1530 = vsel %vm1389, %v1529, %v1528
      %v1531 = vrot.slane %v946, 2
      %v1532 = vsel %vm1392, %v1531, %v1530
      %v1533 = vrot.slane %v949, 1
      %v1534 = vsel %vm1395, %v1533, %v1532
      %v1535 = vrot.slane %v955, 7
      %v1536 = vsel %vm1450, %v1535, %v952
      %v1537 = vrot.slane %v958, 6
      %v1538 = vsel %vm1380, %v1537, %v1536
      %v1539 = vrot.slane %v961, 5
      %v1540 = vsel %vm1383, %v1539, %v1538
      %v1541 = vrot.slane %v964, 4
      %v1542 = vsel %vm1386, %v1541, %v1540
      %v1543 = vrot.slane %v967, 3
      %v1544 = vsel %vm1389, %v1543, %v1542
      %v1545 = vrot.slane %v970, 2
      %v1546 = vsel %vm1392, %v1545, %v1544
      %v1547 = vrot.slane %v973, 1
      %v1548 = vsel %vm1395, %v1547, %v1546
      %v1549 = vrot.slane %v979, 7
      %v1550 = vsel %vm1450, %v1549, %v976
      %v1551 = vrot.slane %v982, 6
      %v1552 = vsel %vm1380, %v1551, %v1550
      %v1553 = vrot.slane %v985, 5
      %v1554 = vsel %vm1383, %v1553, %v1552
      %v1555 = vrot.slane %v988, 4
      %v1556 = vsel %vm1386, %v1555, %v1554
      %v1557 = vrot.slane %v991, 3
      %v1558 = vsel %vm1389, %v1557, %v1556
      %v1559 = vrot.slane %v994, 2
      %v1560 = vsel %vm1392, %v1559, %v1558
      %v1561 = vrot.slane %v997, 1
      %v1562 = vsel %vm1395, %v1561, %v1560
      %1563 = vrot.lane.b32.xlu0 %v1520, 4
      %v1564 = vpop.permute.xlu0 %1563
      %1565 = vrot.lane.b32.xlu0 %v1534, 4
      %v1566 = vpop.permute.xlu0 %1565
      %1567 = vrot.lane.b32.xlu0 %v1548, 4
      %v1568 = vpop.permute.xlu0 %1567
      %1569 = vrot.lane.b32.xlu0 %v1562, 4
      %v1570 = vpop.permute.xlu0 %1569
      %1579 = vrot.lane.b32.xlu0 %v1503, 8
      %v1580 = vpop.permute.xlu0 %1579
      %1581 = vrot.lane.b32.xlu0 %v1504, 8
      %v1582 = vpop.permute.xlu0 %1581
      %1583 = vrot.lane.b32.xlu0 %v1505, 8
      %v1584 = vpop.permute.xlu0 %1583
      %1585 = vrot.lane.b32.xlu0 %v1506, 8
      %v1586 = vpop.permute.xlu0 %1585
      %v1591 = vsel %vm925, %v1441, %v1564
      %v1592 = vsel %vm925, %v1442, %v1566
      %v1593 = vsel %vm925, %v1443, %v1568
      %v1594 = vsel %vm925, %v1444, %v1570
      %vm1595 = vcmask 64512
      %v1596 = vsel %vm1595, %v1591, %v1580
      %v1597 = vsel %vm1595, %v1592, %v1582
      %v1598 = vsel %vm1595, %v1593, %v1584
      %v1599 = vsel %vm1595, %v1594, %v1586
      %v1600 = vld [vmem:[%s3] sm:$0xff]
      %v1601 = vld [vmem:[%s3 + $0x8] sm:$0xf]
      %v1609 = vsel %vm1380, %v931, %v928
      %v1610 = vsel %vm1383, %v934, %v1609
      %v1611 = vsel %vm1386, %v937, %v1610
      %v1612 = vsel %vm1389, %v940, %v1611
      %v1613 = vsel %vm1392, %v943, %v1612
      %v1614 = vsel %vm1395, %v946, %v1613
      %v1615 = vsel %vm1380, %v955, %v952
      %v1616 = vsel %vm1383, %v958, %v1615
      %v1617 = vsel %vm1386, %v961, %v1616
      %v1618 = vsel %vm1389, %v964, %v1617
      %v1619 = vsel %vm1392, %v967, %v1618
      %v1620 = vsel %vm1395, %v970, %v1619
      %v1621 = vsel %vm1380, %v979, %v976
      %v1622 = vsel %vm1383, %v982, %v1621
      %v1623 = vsel %vm1386, %v985, %v1622
      %v1624 = vsel %vm1389, %v988, %v1623
      %v1625 = vsel %vm1392, %v991, %v1624
      %v1626 = vsel %vm1395, %v994, %v1625
      %v1627 = vsel %vm1380, %v1003, %v1000
      %v1628 = vsel %vm1383, %v1006, %v1627
      %v1629 = vsel %vm1386, %v1009, %v1628
      %v1630 = vsel %vm1389, %v1012, %v1629
      %v1631 = vsel %vm1392, %v1015, %v1630
      %v1632 = vsel %vm1395, %v1018, %v1631
      %v1637 = vsel %vm1440, 0.0, %v1614
      %v1638 = vsel %vm1440, 0.0, %v1620
      %v1639 = vsel %vm1440, 0.0, %v1626
      %v1640 = vsel %vm1440, 0.0, %v1632
      %v1642 = vsel %vm1450, %v934, %v931
      %v1643 = vsel %vm1380, %v937, %v1642
      %v1644 = vsel %vm1383, %v940, %v1643
      %v1645 = vsel %vm1386, %v943, %v1644
      %v1646 = vsel %vm1389, %v946, %v1645
      %v1647 = vsel %vm1392, %v949, %v1646
      %v1648 = vsel %vm1450, %v958, %v955
      %v1649 = vsel %vm1380, %v961, %v1648
      %v1650 = vsel %vm1383, %v964, %v1649
      %v1651 = vsel %vm1386, %v967, %v1650
      %v1652 = vsel %vm1389, %v970, %v1651
      %v1653 = vsel %vm1392, %v973, %v1652
      %v1654 = vsel %vm1450, %v982, %v979
      %v1655 = vsel %vm1380, %v985, %v1654
      %v1656 = vsel %vm1383, %v988, %v1655
      %v1657 = vsel %vm1386, %v991, %v1656
      %v1658 = vsel %vm1389, %v994, %v1657
      %v1659 = vsel %vm1392, %v997, %v1658
      %v1660 = vsel %vm1450, %v1006, %v1003
      %v1661 = vsel %vm1380, %v1009, %v1660
      %v1662 = vsel %vm1383, %v1012, %v1661
      %v1663 = vsel %vm1386, %v1015, %v1662
      %v1664 = vsel %vm1389, %v1018, %v1663
      %v1665 = vsel %vm1392, %v1021, %v1664
      %v1670 = vsel %vm1502, %v1647, 0.0
      %v1671 = vsel %vm1502, %v1653, 0.0
      %v1672 = vsel %vm1502, %v1659, 0.0
      %v1673 = vsel %vm1502, %v1665, 0.0
      %v1674 = vsel %vm1450, %v931, %v928
      %v1675 = vsel %vm1380, %v934, %v1674
      %v1676 = vsel %vm1383, %v937, %v1675
      %v1677 = vsel %vm1386, %v940, %v1676
      %v1678 = vsel %vm1389, %v943, %v1677
      %v1679 = vsel %vm1392, %v946, %v1678
      %v1680 = vsel %vm1395, %v949, %v1679
      %v1681 = vsel %vm1450, %v955, %v952
      %v1682 = vsel %vm1380, %v958, %v1681
      %v1683 = vsel %vm1383, %v961, %v1682
      %v1684 = vsel %vm1386, %v964, %v1683
      %v1685 = vsel %vm1389, %v967, %v1684
      %v1686 = vsel %vm1392, %v970, %v1685
      %v1687 = vsel %vm1395, %v973, %v1686
      %v1688 = vsel %vm1450, %v979, %v976
      %v1689 = vsel %vm1380, %v982, %v1688
      %v1690 = vsel %vm1383, %v985, %v1689
      %v1691 = vsel %vm1386, %v988, %v1690
      %v1692 = vsel %vm1389, %v991, %v1691
      %v1693 = vsel %vm1392, %v994, %v1692
      %v1694 = vsel %vm1395, %v997, %v1693
      %v1695 = vsel %vm1450, %v1003, %v1000
      %v1696 = vsel %vm1380, %v1006, %v1695
      %v1697 = vsel %vm1383, %v1009, %v1696
      %v1698 = vsel %vm1386, %v1012, %v1697
      %v1699 = vsel %vm1389, %v1015, %v1698
      %v1700 = vsel %vm1392, %v1018, %v1699
      %v1701 = vsel %vm1395, %v1021, %v1700
      %1702 = vrot.lane.b32.xlu0 %v1680, 4
      %v1703 = vpop.permute.xlu0 %1702
      %1704 = vrot.lane.b32.xlu0 %v1687, 4
      %v1705 = vpop.permute.xlu0 %1704
      %1706 = vrot.lane.b32.xlu0 %v1694, 4
      %v1707 = vpop.permute.xlu0 %1706
      %1708 = vrot.lane.b32.xlu0 %v1701, 4
      %v1709 = vpop.permute.xlu0 %1708
      %1718 = vrot.lane.b32.xlu0 %v1670, 8
      %v1719 = vpop.permute.xlu0 %1718
      %1720 = vrot.lane.b32.xlu0 %v1671, 8
      %v1721 = vpop.permute.xlu0 %1720
      %1722 = vrot.lane.b32.xlu0 %v1672, 8
      %v1723 = vpop.permute.xlu0 %1722
      %1724 = vrot.lane.b32.xlu0 %v1673, 8
      %v1725 = vpop.permute.xlu0 %1724
      %v1730 = vsel %vm925, %v1637, %v1703
      %v1731 = vsel %vm925, %v1638, %v1705
      %v1732 = vsel %vm925, %v1639, %v1707
      %v1733 = vsel %vm925, %v1640, %v1709
      %v1734 = vsel %vm1595, %v1730, %v1719
      %v1735 = vsel %vm1595, %v1731, %v1721
      %v1736 = vsel %vm1595, %v1732, %v1723
      %v1737 = vsel %vm1595, %v1733, %v1725
      %s1738 = scalar_lea.vmem %s3, 16
      %v1739 = vld [vmem:[%s1738] sm:$0xff]
      %v1740 = vld [vmem:[%s1738 + $0x8] sm:$0xf]
      %vm1741 = vcmask 97280
      %v1743 = vsel %vm1741, %v1734, 0
      %v1746 = vsel %vm1741, %v1735, 0
      %v1749 = vsel %vm1741, %v1736, 0
      %v1752 = vsel %vm1741, %v1737, 0
      %vm1754 = vcmask 1043456
      %v1756 = vsel %vm1754, %v1740, 0
      %1758 = vmatprep.subr.mxu0 0.0
      %1759 = vmatpush1.msra.mxu0 %v1739
      %1760 = vmatprep.subr.mxu0 0.0
      %1761 = vmatpush1.msra.mxu0 %v1756
      %1762 = vmatprep.subr.mxu0 0.0
      %1763 = vmatpush1.msra.mxu0 0.0
      %1764 = vmatprep.subr.mxu0 0.0
      %1765 = vmatpush1.msra.mxu0 0.0
      %1766 = vmatprep.subr.mxu0 0.0
      %1767 = vmatpush1.msra.mxu0 0.0
      %1768 = vmatprep.subr.mxu0 0.0
      %1769 = vmatpush1.msra.mxu0 0.0
      %1770 = vmatprep.subr.mxu0 0.0
      %1771 = vmatpush1.msra.mxu0 0.0
      %1772 = vmatprep.subr.mxu0 0.0
      %1773 = vmatpush1.msra.mxu0 0.0
      %1774 = vmatprep.subr.mxu0 0.0
      %1775 = vmatpush1.msra.mxu0 0.0
      %1776 = vmatprep.subr.mxu0 0.0
      %1777 = vmatpush1.msra.mxu0 0.0
      %1778 = vmatprep.subr.mxu0 0.0
      %1779 = vmatpush1.msra.mxu0 0.0
      %1780 = vmatprep.subr.mxu0 0.0
      %1781 = vmatpush1.msra.mxu0 0.0
      %1782 = vmatprep.subr.mxu0 0.0
      %1783 = vmatpush1.msra.mxu0 0.0
      %1784 = vmatprep.subr.mxu0 0.0
      %1785 = vmatpush1.msra.mxu0 0.0
      %1786 = vmatprep.subr.mxu0 0.0
      %1787 = vmatpush1.msra.mxu0 0.0
      %1788 = vmatprep.subr.mxu0 0.0
      %1789 = vmatpush1.msra.mxu0 0.0
      %1790 = vmatprep.subr.mxu0 0.0
      %1791 = vmatpush1.msra.mxu0 0.0
      %1792 = vmatprep.subr.mxu0 0.0
      %1793 = vmatpush1.msra.mxu0 0.0
      %1794 = vmatprep.subr.mxu0 0.0
      %1795 = vmatpush1.msra.mxu0 0.0
      %1796 = vmatprep.subr.mxu0 0.0
      %1797 = vmatpush1.msra.mxu0 0.0
      %1798 = vmatprep.subr.mxu0 0.0
      %1799 = vmatpush1.msra.mxu0 0.0
      %1800 = vmatprep.subr.mxu0 0.0
      %1801 = vmatpush1.msra.mxu0 0.0
      %1802 = vmatprep.subr.mxu0 0.0
      %1803 = vmatpush1.msra.mxu0 0.0
      %1804 = vmatprep.subr.mxu0 0.0
      %1805 = vmatpush1.msra.mxu0 0.0
      %1806 = vmatprep.subr.mxu0 0.0
      %1807 = vmatpush1.msra.mxu0 0.0
      %1808 = vmatprep.subr.mxu0 0.0
      %1809 = vmatpush1.msra.mxu0 0.0
      %1810 = vmatprep.subr.mxu0 0.0
      %1811 = vmatpush1.msra.mxu0 0.0
      %1812 = vmatprep.subr.mxu0 0.0
      %1813 = vmatpush1.msra.mxu0 0.0
      %1814 = vmatprep.subr.mxu0 0.0
      %1815 = vmatpush1.msra.mxu0 0.0
      %1816 = vmatprep.subr.mxu0 0.0
      %1817 = vmatpush1.msra.mxu0 0.0
      %1818 = vmatprep.subr.mxu0 0.0
      %1819 = vmatpush1.msra.mxu0 0.0
      %1820 = vmatprep.subr.mxu0 0.0
      %1821 = vmatpush1.msra.mxu0 0.0
      %1822 = vmatprep.mubr.f32.mxu0 0.0
      %1823 = vmatmul.mubr.f32.gmra.mrb[0].mxu0 %v1743
      %v1824 = vpop.f32.mrb[0].mxu0
      %v1825 = vadd.f32 0.0, %v1824
      %v1826 = vpop.f32.mrb[0].mxu0
      %1827 = vmatprep.mubr.f32.mxu0 0.0
      %1828 = vmatmul.mubr.f32.gmra.mrb[0].mxu0 %v1746
      %v1829 = vpop.f32.mrb[0].mxu0
      %v1830 = vadd.f32 0.0, %v1829
      %v1831 = vpop.f32.mrb[0].mxu0
      %1832 = vmatprep.mubr.f32.mxu0 0.0
      %1833 = vmatmul.mubr.f32.gmra.mrb[0].mxu0 %v1749
      %v1834 = vpop.f32.mrb[0].mxu0
      %v1835 = vadd.f32 0.0, %v1834
      %v1836 = vpop.f32.mrb[0].mxu0
      %1837 = vmatprep.mubr.f32.mxu0 0.0
      %1838 = vmatmul.mubr.f32.gmra.mrb[0].mxu0 %v1752
      %v1839 = vpop.f32.mrb[0].mxu0
      %v1840 = vadd.f32 0.0, %v1839
      %v1841 = vpop.f32.mrb[0].mxu0
      %1842 = vdwg.mxu0
      %v1844 = vsel %vm1741, %v1596, 0
      %v1847 = vsel %vm1741, %v1597, 0
      %v1850 = vsel %vm1741, %v1598, 0
      %v1853 = vsel %vm1741, %v1599, 0
      %v1856 = vsel %vm1754, %v1601, 0
      %1858 = vmatprep.subr.mxu0 0.0
      %1859 = vmatpush1.msra.mxu0 %v1600
      %1860 = vmatprep.subr.mxu0 0.0
      %1861 = vmatpush1.msra.mxu0 %v1856
      %1862 = vmatprep.subr.mxu0 0.0
      %1863 = vmatpush1.msra.mxu0 0.0
      %1864 = vmatprep.subr.mxu0 0.0
      %1865 = vmatpush1.msra.mxu0 0.0
      %1866 = vmatprep.subr.mxu0 0.0
      %1867 = vmatpush1.msra.mxu0 0.0
      %1868 = vmatprep.subr.mxu0 0.0
      %1869 = vmatpush1.msra.mxu0 0.0
      %1870 = vmatprep.subr.mxu0 0.0
      %1871 = vmatpush1.msra.mxu0 0.0
      %1872 = vmatprep.subr.mxu0 0.0
      %1873 = vmatpush1.msra.mxu0 0.0
      %1874 = vmatprep.subr.mxu0 0.0
      %1875 = vmatpush1.msra.mxu0 0.0
      %1876 = vmatprep.subr.mxu0 0.0
      %1877 = vmatpush1.msra.mxu0 0.0
      %1878 = vmatprep.subr.mxu0 0.0
      %1879 = vmatpush1.msra.mxu0 0.0
      %1880 = vmatprep.subr.mxu0 0.0
      %1881 = vmatpush1.msra.mxu0 0.0
      %1882 = vmatprep.subr.mxu0 0.0
      %1883 = vmatpush1.msra.mxu0 0.0
      %1884 = vmatprep.subr.mxu0 0.0
      %1885 = vmatpush1.msra.mxu0 0.0
      %1886 = vmatprep.subr.mxu0 0.0
      %1887 = vmatpush1.msra.mxu0 0.0
      %1888 = vmatprep.subr.mxu0 0.0
      %1889 = vmatpush1.msra.mxu0 0.0
      %1890 = vmatprep.subr.mxu0 0.0
      %1891 = vmatpush1.msra.mxu0 0.0
      %1892 = vmatprep.subr.mxu0 0.0
      %1893 = vmatpush1.msra.mxu0 0.0
      %1894 = vmatprep.subr.mxu0 0.0
      %1895 = vmatpush1.msra.mxu0 0.0
      %1896 = vmatprep.subr.mxu0 0.0
      %1897 = vmatpush1.msra.mxu0 0.0
      %1898 = vmatprep.subr.mxu0 0.0
      %1899 = vmatpush1.msra.mxu0 0.0
      %1900 = vmatprep.subr.mxu0 0.0
      %1901 = vmatpush1.msra.mxu0 0.0
      %1902 = vmatprep.subr.mxu0 0.0
      %1903 = vmatpush1.msra.mxu0 0.0
      %1904 = vmatprep.subr.mxu0 0.0
      %1905 = vmatpush1.msra.mxu0 0.0
      %1906 = vmatprep.subr.mxu0 0.0
      %1907 = vmatpush1.msra.mxu0 0.0
      %1908 = vmatprep.subr.mxu0 0.0
      %1909 = vmatpush1.msra.mxu0 0.0
      %1910 = vmatprep.subr.mxu0 0.0
      %1911 = vmatpush1.msra.mxu0 0.0
      %1912 = vmatprep.subr.mxu0 0.0
      %1913 = vmatpush1.msra.mxu0 0.0
      %1914 = vmatprep.subr.mxu0 0.0
      %1915 = vmatpush1.msra.mxu0 0.0
      %1916 = vmatprep.subr.mxu0 0.0
      %1917 = vmatpush1.msra.mxu0 0.0
      %1918 = vmatprep.subr.mxu0 0.0
      %1919 = vmatpush1.msra.mxu0 0.0
      %1920 = vmatprep.subr.mxu0 0.0
      %1921 = vmatpush1.msra.mxu0 0.0
      %1922 = vmatprep.mubr.f32.mxu0 0.0
      %1923 = vmatmul.mubr.f32.gmra.mrb[0].mxu0 %v1844
      %v1924 = vpop.f32.mrb[0].mxu0
      %v1925 = vadd.f32 %v1825, %v1924
      %v1926 = vpop.f32.mrb[0].mxu0
      %1927 = vmatprep.mubr.f32.mxu0 0.0
      %1928 = vmatmul.mubr.f32.gmra.mrb[0].mxu0 %v1847
      %v1929 = vpop.f32.mrb[0].mxu0
      %v1930 = vadd.f32 %v1830, %v1929
      %v1931 = vpop.f32.mrb[0].mxu0
      %1932 = vmatprep.mubr.f32.mxu0 0.0
      %1933 = vmatmul.mubr.f32.gmra.mrb[0].mxu0 %v1850
      %v1934 = vpop.f32.mrb[0].mxu0
      %v1935 = vadd.f32 %v1835, %v1934
      %v1936 = vpop.f32.mrb[0].mxu0
      %1937 = vmatprep.mubr.f32.mxu0 0.0
      %1938 = vmatmul.mubr.f32.gmra.mrb[0].mxu0 %v1853
      %v1939 = vpop.f32.mrb[0].mxu0
      %v1940 = vadd.f32 %v1840, %v1939
      %v1941 = vpop.f32.mrb[0].mxu0
      %1942 = vdwg.mxu0
      %v1950 = vrot.slane %v1000, 7
      %v1951 = vrot.slane %v1003, 6
      %v1952 = vsel %vm1380, %v1951, %v1950
      %v1953 = vrot.slane %v1006, 5
      %v1954 = vsel %vm1383, %v1953, %v1952
      %v1955 = vrot.slane %v1009, 4
      %v1956 = vsel %vm1386, %v1955, %v1954
      %v1957 = vrot.slane %v1012, 3
      %v1958 = vsel %vm1389, %v1957, %v1956
      %v1959 = vrot.slane %v1015, 2
      %v1960 = vsel %vm1392, %v1959, %v1958
      %v1961 = vrot.slane %v1018, 1
      %v1962 = vsel %vm1395, %v1961, %v1960
      %v1963 = vrot.slane %v1342, 7
      %v1964 = vrot.slane %v1343, 6
      %v1965 = vsel %vm1380, %v1964, %v1963
      %v1966 = vrot.slane %v1344, 5
      %v1967 = vsel %vm1383, %v1966, %v1965
      %v1968 = vrot.slane %v1345, 4
      %v1969 = vsel %vm1386, %v1968, %v1967
      %v1970 = vrot.slane %v1346, 3
      %v1971 = vsel %vm1389, %v1970, %v1969
      %v1972 = vrot.slane %v1347, 2
      %v1973 = vsel %vm1392, %v1972, %v1971
      %v1974 = vrot.slane %v1348, 1
      %v1975 = vsel %vm1395, %v1974, %v1973
      %v1978 = vsel %vm1440, 0.0, %v1962
      %v1979 = vsel %vm1440, 0.0, %v1975
      %v1981 = vrot.slane %v1006, 7
      %v1982 = vsel %vm1450, %v1981, %v1003
      %v1983 = vrot.slane %v1009, 6
      %v1984 = vsel %vm1380, %v1983, %v1982
      %v1985 = vrot.slane %v1012, 5
      %v1986 = vsel %vm1383, %v1985, %v1984
      %v1987 = vrot.slane %v1015, 4
      %v1988 = vsel %vm1386, %v1987, %v1986
      %v1989 = vrot.slane %v1018, 3
      %v1990 = vsel %vm1389, %v1989, %v1988
      %v1991 = vrot.slane %v1021, 2
      %v1992 = vsel %vm1392, %v1991, %v1990
      %v1993 = vrot.slane %v1344, 7
      %v1994 = vsel %vm1450, %v1993, %v1343
      %v1995 = vrot.slane %v1345, 6
      %v1996 = vsel %vm1380, %v1995, %v1994
      %v1997 = vrot.slane %v1346, 5
      %v1998 = vsel %vm1383, %v1997, %v1996
      %v1999 = vrot.slane %v1347, 4
      %v2000 = vsel %vm1386, %v1999, %v1998
      %v2001 = vrot.slane %v1348, 3
      %v2002 = vsel %vm1389, %v2001, %v2000
      %v2003 = vrot.slane %v1349, 2
      %v2004 = vsel %vm1392, %v2003, %v2002
      %v2007 = vsel %vm1502, %v1992, 0.0
      %v2008 = vsel %vm1502, %v2004, 0.0
      %v2009 = vrot.slane %v1003, 7
      %v2010 = vsel %vm1450, %v2009, %v1000
      %v2011 = vrot.slane %v1006, 6
      %v2012 = vsel %vm1380, %v2011, %v2010
      %v2013 = vrot.slane %v1009, 5
      %v2014 = vsel %vm1383, %v2013, %v2012
      %v2015 = vrot.slane %v1012, 4
      %v2016 = vsel %vm1386, %v2015, %v2014
      %v2017 = vrot.slane %v1015, 3
      %v2018 = vsel %vm1389, %v2017, %v2016
      %v2019 = vrot.slane %v1018, 2
      %v2020 = vsel %vm1392, %v2019, %v2018
      %v2021 = vrot.slane %v1021, 1
      %v2022 = vsel %vm1395, %v2021, %v2020
      %v2023 = vrot.slane %v1343, 7
      %v2024 = vsel %vm1450, %v2023, %v1342
      %v2025 = vrot.slane %v1344, 6
      %v2026 = vsel %vm1380, %v2025, %v2024
      %v2027 = vrot.slane %v1345, 5
      %v2028 = vsel %vm1383, %v2027, %v2026
      %v2029 = vrot.slane %v1346, 4
      %v2030 = vsel %vm1386, %v2029, %v2028
      %v2031 = vrot.slane %v1347, 3
      %v2032 = vsel %vm1389, %v2031, %v2030
      %v2033 = vrot.slane %v1348, 2
      %v2034 = vsel %vm1392, %v2033, %v2032
      %v2035 = vrot.slane %v1349, 1
      %v2036 = vsel %vm1395, %v2035, %v2034
      %2037 = vrot.lane.b32.xlu0 %v2022, 4
      %v2038 = vpop.permute.xlu0 %2037
      %2039 = vrot.lane.b32.xlu0 %v2036, 4
      %v2040 = vpop.permute.xlu0 %2039
      %2045 = vrot.lane.b32.xlu0 %v2007, 8
      %v2046 = vpop.permute.xlu0 %2045
      %2047 = vrot.lane.b32.xlu0 %v2008, 8
      %v2048 = vpop.permute.xlu0 %2047
      %v2051 = vsel %vm925, %v1978, %v2038
      %v2052 = vsel %vm925, %v1979, %v2040
      %v2053 = vsel %vm1595, %v2051, %v2046
      %v2054 = vsel %vm1595, %v2052, %v2048
      %s2055 = scalar_lea.vmem %s3, 32
      %v2056 = vld [vmem:[%s2055] sm:$0xff]
      %v2057 = vld [vmem:[%s2055 + $0x8] sm:$0xf]
      %v2059 = vsel %vm1741, %v2053, 0
      %v2062 = vsel %vm1741, %v2054, 0
      %v2065 = vsel %vm1754, %v2057, 0
      %2067 = vmatprep.subr.mxu0 0.0
      %2068 = vmatpush1.msra.mxu0 %v2056
      %2069 = vmatprep.subr.mxu0 0.0
      %2070 = vmatpush1.msra.mxu0 %v2065
      %2071 = vmatprep.subr.mxu0 0.0
      %2072 = vmatpush1.msra.mxu0 0.0
      %2073 = vmatprep.subr.mxu0 0.0
      %2074 = vmatpush1.msra.mxu0 0.0
      %2075 = vmatprep.subr.mxu0 0.0
      %2076 = vmatpush1.msra.mxu0 0.0
      %2077 = vmatprep.subr.mxu0 0.0
      %2078 = vmatpush1.msra.mxu0 0.0
      %2079 = vmatprep.subr.mxu0 0.0
      %2080 = vmatpush1.msra.mxu0 0.0
      %2081 = vmatprep.subr.mxu0 0.0
      %2082 = vmatpush1.msra.mxu0 0.0
      %2083 = vmatprep.subr.mxu0 0.0
      %2084 = vmatpush1.msra.mxu0 0.0
      %2085 = vmatprep.subr.mxu0 0.0
      %2086 = vmatpush1.msra.mxu0 0.0
      %2087 = vmatprep.subr.mxu0 0.0
      %2088 = vmatpush1.msra.mxu0 0.0
      %2089 = vmatprep.subr.mxu0 0.0
      %2090 = vmatpush1.msra.mxu0 0.0
      %2091 = vmatprep.subr.mxu0 0.0
      %2092 = vmatpush1.msra.mxu0 0.0
      %2093 = vmatprep.subr.mxu0 0.0
      %2094 = vmatpush1.msra.mxu0 0.0
      %2095 = vmatprep.subr.mxu0 0.0
      %2096 = vmatpush1.msra.mxu0 0.0
      %2097 = vmatprep.subr.mxu0 0.0
      %2098 = vmatpush1.msra.mxu0 0.0
      %2099 = vmatprep.subr.mxu0 0.0
      %2100 = vmatpush1.msra.mxu0 0.0
      %2101 = vmatprep.subr.mxu0 0.0
      %2102 = vmatpush1.msra.mxu0 0.0
      %2103 = vmatprep.subr.mxu0 0.0
      %2104 = vmatpush1.msra.mxu0 0.0
      %2105 = vmatprep.subr.mxu0 0.0
      %2106 = vmatpush1.msra.mxu0 0.0
      %2107 = vmatprep.subr.mxu0 0.0
      %2108 = vmatpush1.msra.mxu0 0.0
      %2109 = vmatprep.subr.mxu0 0.0
      %2110 = vmatpush1.msra.mxu0 0.0
      %2111 = vmatprep.subr.mxu0 0.0
      %2112 = vmatpush1.msra.mxu0 0.0
      %2113 = vmatprep.subr.mxu0 0.0
      %2114 = vmatpush1.msra.mxu0 0.0
      %2115 = vmatprep.subr.mxu0 0.0
      %2116 = vmatpush1.msra.mxu0 0.0
      %2117 = vmatprep.subr.mxu0 0.0
      %2118 = vmatpush1.msra.mxu0 0.0
      %2119 = vmatprep.subr.mxu0 0.0
      %2120 = vmatpush1.msra.mxu0 0.0
      %2121 = vmatprep.subr.mxu0 0.0
      %2122 = vmatpush1.msra.mxu0 0.0
      %2123 = vmatprep.subr.mxu0 0.0
      %2124 = vmatpush1.msra.mxu0 0.0
      %2125 = vmatprep.subr.mxu0 0.0
      %2126 = vmatpush1.msra.mxu0 0.0
      %2127 = vmatprep.subr.mxu0 0.0
      %2128 = vmatpush1.msra.mxu0 0.0
      %2129 = vmatprep.subr.mxu0 0.0
      %2130 = vmatpush1.msra.mxu0 0.0
      %2131 = vmatprep.mubr.f32.mxu0 0.0
      %2132 = vmatmul.mubr.f32.gmra.mrb[0].mxu0 %v1850
      %v2133 = vpop.f32.mrb[0].mxu0
      %v2134 = vadd.f32 0.0, %v2133
      %v2135 = vpop.f32.mrb[0].mxu0
      %2136 = vmatprep.mubr.f32.mxu0 0.0
      %2137 = vmatmul.mubr.f32.gmra.mrb[0].mxu0 %v1853
      %v2138 = vpop.f32.mrb[0].mxu0
      %v2139 = vadd.f32 0.0, %v2138
      %v2140 = vpop.f32.mrb[0].mxu0
      %2141 = vmatprep.mubr.f32.mxu0 0.0
      %2142 = vmatmul.mubr.f32.gmra.mrb[0].mxu0 %v2059
      %v2143 = vpop.f32.mrb[0].mxu0
      %v2144 = vadd.f32 0.0, %v2143
      %v2145 = vpop.f32.mrb[0].mxu0
      %2146 = vmatprep.mubr.f32.mxu0 0.0
      %2147 = vmatmul.mubr.f32.gmra.mrb[0].mxu0 %v2062
      %v2148 = vpop.f32.mrb[0].mxu0
      %v2149 = vadd.f32 0.0, %v2148
      %v2150 = vpop.f32.mrb[0].mxu0
      %2151 = vdwg.mxu0
      %v2152 = vadd.f32 %v1925, %v2134
      %v2153 = vadd.f32 %v1930, %v2139
      %v2154 = vadd.f32 %v1935, %v2144
      %v2155 = vadd.f32 %v1940, %v2149
      %2156 = vst.msk [vmem:[%s402] sm:$0xff] %vm1595, %v2152
      %2157 = vst.msk [vmem:[%s402 + $0x8] sm:$0xff] %vm1595, %v2153
      %2158 = vst.msk [vmem:[%s402 + $0x10] sm:$0xff] %vm1595, %v2154
      %2159 = vst.msk [vmem:[%s402 + $0x18] sm:$0xff] %vm1595, %v2155
      %v2160 = vsel %vm1595, %v2152, 0.0
      %v2161 = vsel %vm1595, %v2153, 0.0
      %v2162 = vadd.f32 %v2160, %v2161
      %v2163 = vsel %vm1595, %v2154, 0.0
      %v2164 = vadd.f32 %v2162, %v2163
      %v2165 = vsel %vm1595, %v2155, 0.0
      %v2166 = vadd.f32 %v2164, %v2165
      %v2167 = vrot.slane %v2166, 4
      %v2168 = vadd.f32 %v2166, %v2167
      %v2169 = vrot.slane %v2168, 2
      %v2170 = vadd.f32 %v2168, %v2169
      %v2171 = vrot.slane %v2170, 1
      %v2172 = vadd.f32 %v2170, %v2171
      %vm2173 = vcmask 57344
      %2174 = vst.msk [vmem:[%s411] sm:$0x1] %vm2173, %v2172
      %v2175 = vmul.f32 %v2152, %v2152
      %v2176 = vmul.f32 %v2153, %v2153
      %v2177 = vmul.f32 %v2154, %v2154
      %v2178 = vmul.f32 %v2155, %v2155
      %v2179 = vsel %vm1595, %v2175, 0.0
      %v2180 = vsel %vm1595, %v2176, 0.0
      %v2181 = vadd.f32 %v2179, %v2180
      %v2182 = vsel %vm1595, %v2177, 0.0
      %v2183 = vadd.f32 %v2181, %v2182
      %v2184 = vsel %vm1595, %v2178, 0.0
      %v2185 = vadd.f32 %v2183, %v2184
      %v2186 = vrot.slane %v2185, 4
      %v2187 = vadd.f32 %v2185, %v2186
      %v2188 = vrot.slane %v2187, 2
      %v2189 = vadd.f32 %v2187, %v2188
      %v2190 = vrot.slane %v2189, 1
      %v2191 = vadd.f32 %v2189, %v2190
      %2192 = vst.msk [vmem:[%s411 + $0x1] sm:$0x1] %vm2173, %v2191
      %s2193 = smul.u32 4, %s22
      %p2194 = scmp.lt.s32.totalorder %s21, 1
      %s2195 = scalar_select %p2194, %s21, 1
      %p2196 = scmp.lt.s32.totalorder %s2193, 7
      %s2197 = scalar_select %p2196, %s2193, 7
      %s2198 = smul.addr %s2195, 8
      %s2199 = sadd.s32 %s2197, %s2198
      %s2200 = smul.addr %s2199, 8
      %s2201 = scalar_lea.vmem %s4, %s2200
      %p2202 = scmp.lt.s32.totalorder %s21, 1
      %s2203 = scalar_select %p2202, %s21, 1
      %p2204 = scmp.lt.s32.totalorder %s22, 1
      %s2205 = scalar_select %p2204, %s22, 1
      %s2206 = smul.addr %s2203, 2
      %s2207 = sadd.s32 %s2205, %s2206
      %s2208 = smul.addr %s2207, 2
      %s2209 = scalar_lea.vmem %s5, %s2208
      // Predicated region
      $region37: #{down_forward.3} parent=35 // pred_check
        %p2210 = pneg %p170
      $region38: #{down_forward.3} parent=35 // pred_check_branch
        %2212 = sbr.rel (%p2210) target = $region40
      $region39: #{down_forward.3} parent=35 // pred_region
        %s2213 = smul.u32 4, %s22
      $region40: #{down_forward.3} parent=35 // pred_fallthru
        _
      // Predicated region
      $region41: #{down_forward.3} parent=35 // pred_check
        %p2214 = pneg %p198
      $region42: #{down_forward.3} parent=35 // pred_check_branch
        %2216 = sbr.rel (%p2214) target = $region44
      $region43: #{down_forward.3} parent=35 // pred_region
        _
      $region44: #{down_forward.3} parent=35 // pred_fallthru
        _
    $region36: #{down_forward.3} parent=5 // pred_fallthru
      _
    %p2217 = scmp.le.s32.totalorder 2, %s12
    // Predicated region
    $region45: #{down_forward.3} parent=5 // pred_check
      %p2218 = pneg %p2217
    $region46: #{down_forward.3} parent=5 // pred_check_branch
      %2220 = sbr.rel (%p2218) target = $region48
    $region47: #{down_forward.3} parent=5 // pred_region
      %s2221 = ssub.s32 %s12, 2
      // Predicated region
      $region49: #{down_forward.3} parent=47 // pred_check
        %p2222 = pneg %p176
      $region50: #{down_forward.3} parent=47 // pred_check_branch
        %2224 = sbr.rel (%p2222) target = $region52
      $region51: #{down_forward.3} parent=47 // pred_region
        %s2225 = smul.u32 4, %s24
        %p2226 = scmp.lt.s32.totalorder %s23, 1
        %s2227 = scalar_select %p2226, %s23, 1
        %p2228 = scmp.lt.s32.totalorder %s2225, 7
        %s2229 = scalar_select %p2228, %s2225, 7
        %s2230 = smul.addr %s2227, 8
        %s2231 = sadd.s32 %s2229, %s2230
        %s2232 = smul.addr %s2231, 8
        %s2233 = scalar_lea.vmem %s4, %s2232
      $region52: #{down_forward.3} parent=47 // pred_fallthru
        _
      // Predicated region
      $region53: #{down_forward.3} parent=47 // pred_check
        %p2234 = pneg %p204
      $region54: #{down_forward.3} parent=47 // pred_check_branch
        %2236 = sbr.rel (%p2234) target = $region56
      $region55: #{down_forward.3} parent=47 // pred_region
        %p2237 = scmp.lt.s32.totalorder %s23, 1
        %s2238 = scalar_select %p2237, %s23, 1
        %p2239 = scmp.lt.s32.totalorder %s24, 1
        %s2240 = scalar_select %p2239, %s24, 1
        %s2241 = smul.addr %s2238, 2
        %s2242 = sadd.s32 %s2240, %s2241
        %s2243 = smul.addr %s2242, 2
        %s2244 = scalar_lea.vmem %s5, %s2243
      $region56: #{down_forward.3} parent=47 // pred_fallthru
        _
    $region48: #{down_forward.3} parent=5 // pred_fallthru
      _
  $region6: #{down_forward.3} parent=0 // loop_footer
    %s16 = sadd.s32 1, %s12
  $region7: #{down_forward.3} parent=0 // loop_footer_branch
    %11 = sbr.rel target = $region3
  $region8: #{down_forward.3} parent=0 // loop_exit
    _

</llo_original>
